<compile_context>
chip_gen: v7x
topology: tpu7x:2x2x1
jax: 0.10.0
libtpu: 0.0.40
codegen_flags: <defaults>
</compile_context>

<pallas_src>
import math
import numpy as np
import jax
import jax.numpy as jnp
from jax.experimental import pallas as pl
from jax.experimental.pallas import tpu as pltpu

# ----------------------------------------------------------------------------
# Skeleton topology helpers (numpy ports of the PyTorch helpers)
# ----------------------------------------------------------------------------
def distance_joints(parents, i, j, init_dist=0):
    if parents[i] == j:
        return init_dist + 1
    elif parents[i] == 0:
        return 0
    else:
        return distance_joints(parents, parents[i], j, init_dist + 1)


def calc_distance_mat(parents):
    n = len(parents)
    D = np.ones((n, n)) * np.inf
    for i in range(n):
        D[i, i] = 0
    for i in range(n):
        for j in range(n):
            if i != j:
                d = distance_joints(parents, i, j)
                if d != 0:
                    D[i, j] = d
                    D[j, i] = d
    for k in range(n):
        for i in range(n):
            for j in range(n):
                D[i][j] = min(D[i][j], D[i][k] + D[k][j])
    return D


def find_neighbor(parents, max_dist):
    D = calc_distance_mat(parents)
    n = len(parents)
    return [[j for j in range(n) if D[i, j] <= max_dist] for i in range(n)]


# ----------------------------------------------------------------------------
# Module constants (as constructed by Generator22.__init__)
# ----------------------------------------------------------------------------
PARENTS = [0, 0, 0, 0, 1, 2, 3, 4, 5, 6, 7, 8, 9, 9, 9, 12, 13, 14, 16, 17, 18, 19]
J = 22            # joints
CPJ = 6           # in/out channels per joint for every SkeletonConv here
C = J * CPJ       # 132 real channels
CP = 256          # channel axis padded to a multiple of 128 inside the kernel
K = 3             # kernel size
NUM_LAYERS = 5
NEG_SLOPE = 0.2   # LeakyReLU slope


# ----------------------------------------------------------------------------
# Deterministic parameter construction (synthetic, mirrors SkeletonConv init)
# ----------------------------------------------------------------------------
def init_params(key):
    neighbors = find_neighbor(PARENTS, 2)

    # sparsity mask: out-joint i only sees channels of its skeletal neighbors
    mask = np.zeros((C, C, K), np.float32)
    for i, nb in enumerate(neighbors):
        for j in nb:
            mask[CPJ * i:CPJ * (i + 1), CPJ * j:CPJ * (j + 1), :] = 1.0

    weights, biases = [], []
    for _ in range(NUM_LAYERS):
        key, kw, kb = jax.random.split(key, 3)
        w_rand = np.asarray(jax.random.uniform(kw, (C, C, K), jnp.float32, -1.0, 1.0))
        b_rand = np.asarray(jax.random.uniform(kb, (C,), jnp.float32, -1.0, 1.0))
        w = np.zeros((C, C, K), np.float32)
        b = np.zeros((C,), np.float32)
        for i, nb in enumerate(neighbors):
            fan_in = len(nb) * CPJ * K
            bound = 1.0 / math.sqrt(fan_in)   # kaiming_uniform(a=sqrt(5)) bound
            w[CPJ * i:CPJ * (i + 1)] = w_rand[CPJ * i:CPJ * (i + 1)] * bound
            b[CPJ * i:CPJ * (i + 1)] = b_rand[CPJ * i:CPJ * (i + 1)] * bound
        weights.append(w * mask)              # masked weights (as in forward)
        biases.append(b)

    W = np.stack(weights)                     # (L, Cout, Cin, K) f32
    B = np.stack(biases)                      # (L, C)            f32
    Wt = np.transpose(W, (0, 3, 2, 1))        # (L, K, Cin, Cout)

    # padded kernel layout: (L, K, CP, CP) bf16; rows/cols >= C are exact zeros
    # (keeps padded output lanes exactly zero and makes garbage input lanes
    # irrelevant to the contraction).
    Wp = np.zeros((NUM_LAYERS, K, CP, CP), np.float32)
    Wp[:, :, :C, :C] = Wt
    Bp = np.zeros((NUM_LAYERS, 1, CP), np.float32)
    Bp[:, 0, :C] = B

    return (jnp.asarray(Wp, jnp.bfloat16),          # kernel weights (padded)
            jnp.asarray(Bp, jnp.float32),           # kernel bias   (padded)
            jnp.asarray(Wt, jnp.float32),           # reference weights
            jnp.asarray(B[:, None, :], jnp.float32))  # reference bias (L,1,C)


# ----------------------------------------------------------------------------
# Pallas kernel: 5 fused [conv1d(reflect pad) + LeakyReLU] layers per step
# ----------------------------------------------------------------------------
def gen22_kernel(x_ref, w_ref, b_ref, o_ref, xact_ref):
    Bb, T, _ = x_ref.shape          # input block is (Bb, T, C=132)
    M = Bb * T

    # Widen 132 -> 256 lanes inside the kernel.  Padded lanes must be finite
    # (zero) so that "garbage * zero-weight-row" cannot produce NaN.
    xact_ref[...] = jnp.zeros_like(xact_ref)
    xact_ref[:, :, :C] = x_ref[...].astype(jnp.bfloat16)

    for l in range(NUM_LAYERS):
        xb = xact_ref[...]                                    # (Bb, T, CP) bf16
        # reflect pad=1 along frames: tap0[t] = x[t-1], tap2[t] = x[t+1],
        # with boundary rows reflected (xp[0] = x[1], xp[T+1] = x[T-2]).
        tap0 = jnp.concatenate([xb[:, 1:2], xb[:, :T - 1]], axis=1)
        tap2 = jnp.concatenate([xb[:, 1:T], xb[:, T - 2:T - 1]], axis=1)
        # three accumulating MXU matmuls (bf16 operands, f32 accumulation);
        # no im2col slab -> no extra full-width scratch stores per layer.
        y = jnp.dot(tap0.reshape(M, CP), w_ref[l, 0],
                    preferred_element_type=jnp.float32)
        y = y + jnp.dot(xb.reshape(M, CP), w_ref[l, 1],
                        preferred_element_type=jnp.float32)
        y = y + jnp.dot(tap2.reshape(M, CP), w_ref[l, 2],
                        preferred_element_type=jnp.float32)
        y = y + b_ref[l]                                      # (1, CP) f32 bias
        y = jnp.where(y >= 0, y, NEG_SLOPE * y)               # LeakyReLU(0.2)
        if l < NUM_LAYERS - 1:
            xact_ref[...] = y.reshape(Bb, T, CP).astype(jnp.bfloat16)
        else:
            # last layer: write the un-rounded f32 result, drop padded lanes
            o_ref[...] = y.reshape(Bb, T, CP)[:, :, :C].astype(o_ref.dtype)


def _pick_block_rows(bsz, T, min_m=256, max_m=2048):
    """Batch rows folded into the matmul M dim per grid step.

    Prefer >=2 'parallel' grid steps (v7x has 2 TensorCores) but only when
    every step keeps the MXU well fed (M = Bb*T >= min_m); cap M to bound
    live VMEM per step.  Otherwise run the whole batch in a single step.
    """
    divs = [d for d in range(1, bsz + 1) if bsz % d == 0]
    good = [d for d in divs if d < bsz and d * T >= min_m]     # >=2 steps, fed
    for d in sorted(good, reverse=True):                       # largest fed Bb
        if d * T <= max_m:
            return d
    if good:                         # every fed split exceeds the VMEM cap
        return min(good)
    if bsz * T <= max_m:             # cannot feed the MXU with >=2 steps
        return bsz                   # -> single step over the whole batch
    under = [d for d in divs if d * T <= max_m]
    return max(under) if under else 1


def generator22_forward(x_in, Wp, Bp):
    # x_in: (batch, frames, 22, 6) float32
    bsz, T = x_in.shape[0], x_in.shape[1]
    assert T >= 2, "reflect pad=1 requires at least 2 frames"
    x = x_in.reshape(bsz, T, C)                     # no host-side channel pad
    Bb = _pick_block_rows(bsz, T)
    grid = (bsz // Bb,)

    flops = 2 * NUM_LAYERS * bsz * T * (K * CP) * CP
    bytes_accessed = (bsz * T * C * 4 * 2           # activations in + out
                      + NUM_LAYERS * K * CP * CP * 2
                      + NUM_LAYERS * CP * 4)

    out = pl.pallas_call(
        gen22_kernel,
        out_shape=jax.ShapeDtypeStruct((bsz, T, C), x_in.dtype),
        grid_spec=pltpu.PrefetchScalarGridSpec(
            num_scalar_prefetch=0,
            grid=grid,
            in_specs=[
                pl.BlockSpec((Bb, T, C), lambda g: (g, 0, 0)),
                # constant index_maps -> weights/bias DMA'd into VMEM once
                pl.BlockSpec((NUM_LAYERS, K, CP, CP), lambda g: (0, 0, 0, 0)),
                pl.BlockSpec((NUM_LAYERS, 1, CP), lambda g: (0, 0, 0)),
            ],
            out_specs=pl.BlockSpec((Bb, T, C), lambda g: (g, 0, 0)),
            scratch_shapes=[
                pltpu.VMEM((Bb, T, CP), jnp.bfloat16),   # inter-layer activation
            ],
        ),
        compiler_params=pltpu.CompilerParams(
            dimension_semantics=("parallel",),
            vmem_limit_bytes=48 * 1024 * 1024),
        cost_estimate=pl.CostEstimate(flops=flops, transcendentals=0,
                                      bytes_accessed=bytes_accessed),
    )(x, Wp, Bp)
    return out.reshape(bsz, T, J, CPJ)


# ----------------------------------------------------------------------------
# Pure-JAX references (for correctness checks only)
# ----------------------------------------------------------------------------
def reference_forward_bf16(x_in, Wt, B):
    # Exact mirror of the kernel math: bf16 matmul operands, f32 accumulation,
    # inter-layer values rounded to bf16, final layer output left in f32.
    bsz, T = x_in.shape[0], x_in.shape[1]
    x = x_in.reshape(bsz, T, C).astype(jnp.float32)
    Wb = Wt.astype(jnp.bfloat16)
    for l in range(NUM_LAYERS):
        xb = x.astype(jnp.bfloat16)
        xp = jnp.pad(xb, ((0, 0), (1, 1), (0, 0)), mode="reflect")
        y = jnp.zeros((bsz, T, C), jnp.float32)
        for k in range(K):
            y = y + jnp.einsum("btc,cd->btd", xp[:, k:k + T], Wb[l, k],
                               preferred_element_type=jnp.float32)
        y = y + B[l][None]
        x = jnp.where(y >= 0, y, NEG_SLOPE * y)
    return x.reshape(bsz, T, J, CPJ)


def reference_forward_f32(x_in, Wt, B):
    # Full-f32 module semantics (PyTorch forward pass).
    bsz, T = x_in.shape[0], x_in.shape[1]
    x = x_in.reshape(bsz, T, C).astype(jnp.float32)
    for l in range(NUM_LAYERS):
        xp = jnp.pad(x, ((0, 0), (1, 1), (0, 0)), mode="reflect")
        y = jnp.zeros((bsz, T, C), jnp.float32)
        for k in range(K):
            y = y + jnp.einsum("btc,cd->btd", xp[:, k:k + T], Wt[l, k],
                               precision=jax.lax.Precision.HIGHEST)
        y = y + B[l][None]
        x = jnp.where(y >= 0, y, NEG_SLOPE * y)
    return x.reshape(bsz, T, J, CPJ)


if __name__ == "__main__":
    key = jax.random.PRNGKey(0)
    kp, kx = jax.random.split(key)
    Wp, Bp, Wt, Bf = init_params(kp)

    batch, frames = 2, 16
    x_in = jax.random.normal(kx, (batch, frames, J, CPJ), dtype=jnp.float32)

    out = jax.block_until_ready(generator22_forward(x_in, Wp, Bp))
    assert out.shape == (batch, frames, J, CPJ)

    # Tight check against a pure-JAX mirror of the kernel math
    # (bf16 operands / inter-layer values, f32 accumulation + epilogue).
    ref_bf16 = jax.block_until_ready(reference_forward_bf16(x_in, Wt, Bf))
    np.testing.assert_allclose(np.asarray(out), np.asarray(ref_bf16),
                               rtol=2e-3, atol=2e-3)

    # Semantic check against the full-f32 module math (loose tolerance only
    # accounts for bf16 rounding of matmul operands over 5 layers).
    ref_f32 = jax.block_until_ready(reference_forward_f32(x_in, Wt, Bf))
    np.testing.assert_allclose(np.asarray(out), np.asarray(ref_f32),
                               rtol=2e-2, atol=2e-2)

    print("KERNEL_OK")
</pallas_src>

<mosaic_0001>
module attributes {stable_mosaic.version = 11 : i64} {
  func.func @gen22_kernel(%arg0: i32, %arg1: memref<2x16x132xf32, #tpu.memory_space<vmem>>, %arg2: memref<5x3x256x256xbf16, #tpu.memory_space<vmem>>, %arg3: memref<5x1x256xf32, #tpu.memory_space<vmem>>, %arg4: memref<2x16x132xf32, #tpu.memory_space<vmem>>, %arg5: memref<2x16x256xbf16, #tpu.memory_space<vmem>>) attributes {dimension_semantics = [#tpu.dimension_semantics<parallel>], iteration_bounds = array<i64: 1>, scalar_prefetch = 0 : i64, scratch_operands = 1 : i64, tpu.core_type = #tpu.core_type<tc>, window_params = [{transform_indices = @transform_0, window_bounds = array<i64: 2, 16, 132>}, {pipeline_mode = #tpu.pipeline_mode<synchronous>, transform_indices = @transform_1, window_bounds = array<i64: 5, 3, 256, 256>}, {pipeline_mode = #tpu.pipeline_mode<synchronous>, transform_indices = @transform_2, window_bounds = array<i64: 5, 1, 256>}, {transform_indices = @transform_3, window_bounds = array<i64: 2, 16, 132>}]} {
    %cst = arith.constant 0.000000e+00 : bf16
    %0 = vector.broadcast %cst : bf16 to vector<2x16x256xbf16>
    %c0 = arith.constant 0 : index
    %c0_0 = arith.constant 0 : index
    %c0_1 = arith.constant 0 : index
    %1 = vector.load %arg5[%c0, %c0_0, %c0_1] : memref<2x16x256xbf16, #tpu.memory_space<vmem>>, vector<2x16x256xbf16>
    tpu.vector_store %arg5[%c0, %c0_0, %c0_1], %0 {strides = array<i32>} : memref<2x16x256xbf16, #tpu.memory_space<vmem>>, vector<2x16x256xbf16>,
    %c0_2 = arith.constant 0 : index
    %c0_3 = arith.constant 0 : index
    %c0_4 = arith.constant 0 : index
    %2 = vector.load %arg1[%c0_2, %c0_3, %c0_4] : memref<2x16x132xf32, #tpu.memory_space<vmem>>, vector<2x16x132xf32>
    %3 = arith.truncf %2 : vector<2x16x132xf32> to vector<2x16x132xbf16>
    %c0_5 = arith.constant 0 : index
    %c0_6 = arith.constant 0 : index
    %c0_7 = arith.constant 0 : index
    %4 = vector.load %arg5[%c0_5, %c0_6, %c0_7] : memref<2x16x256xbf16, #tpu.memory_space<vmem>>, vector<2x16x132xbf16>
    tpu.vector_store %arg5[%c0_5, %c0_6, %c0_7], %3 {strides = array<i32>} : memref<2x16x256xbf16, #tpu.memory_space<vmem>>, vector<2x16x132xbf16>,
    %c0_8 = arith.constant 0 : index
    %c0_9 = arith.constant 0 : index
    %c0_10 = arith.constant 0 : index
    %5 = vector.load %arg5[%c0_8, %c0_9, %c0_10] : memref<2x16x256xbf16, #tpu.memory_space<vmem>>, vector<2x16x256xbf16>
    %6 = vector.extract_strided_slice %5 {offsets = [0, 1, 0], sizes = [2, 1, 256], strides = [1, 1, 1]} : vector<2x16x256xbf16> to vector<2x1x256xbf16>
    %7 = vector.extract_strided_slice %5 {offsets = [0, 0, 0], sizes = [2, 15, 256], strides = [1, 1, 1]} : vector<2x16x256xbf16> to vector<2x15x256xbf16>
    %8 = tpu.concatenate %6, %7 in 1 : vector<2x1x256xbf16>, vector<2x15x256xbf16> -> vector<2x16x256xbf16>
    %9 = vector.extract_strided_slice %5 {offsets = [0, 1, 0], sizes = [2, 15, 256], strides = [1, 1, 1]} : vector<2x16x256xbf16> to vector<2x15x256xbf16>
    %10 = vector.extract_strided_slice %5 {offsets = [0, 14, 0], sizes = [2, 1, 256], strides = [1, 1, 1]} : vector<2x16x256xbf16> to vector<2x1x256xbf16>
    %11 = tpu.concatenate %9, %10 in 1 : vector<2x15x256xbf16>, vector<2x1x256xbf16> -> vector<2x16x256xbf16>
    %12 = vector.shape_cast %8 : vector<2x16x256xbf16> to vector<32x256xbf16>
    %c0_11 = arith.constant 0 : index
    %c0_12 = arith.constant 0 : index
    %c0_13 = arith.constant 0 : index
    %c0_14 = arith.constant 0 : index
    %13 = vector.load %arg2[%c0_11, %c0_12, %c0_13, %c0_14] : memref<5x3x256x256xbf16, #tpu.memory_space<vmem>>, vector<1x1x256x256xbf16>
    %14 = vector.shape_cast %13 : vector<1x1x256x256xbf16> to vector<256x256xbf16>
    %cst_15 = arith.constant dense<0.000000e+00> : vector<32x256xf32>
    %15 = tpu.matmul %12, %14, %cst_15 {dimension_numbers = #tpu.dot_dimension_numbers<[1], [0], [0], [1], [0, 0, 1, 1], [], []>} : vector<32x256xbf16>, vector<256x256xbf16>, vector<32x256xf32> -> vector<32x256xf32>
    %16 = vector.shape_cast %5 : vector<2x16x256xbf16> to vector<32x256xbf16>
    %c0_16 = arith.constant 0 : index
    %c1 = arith.constant 1 : index
    %c0_17 = arith.constant 0 : index
    %c0_18 = arith.constant 0 : index
    %17 = vector.load %arg2[%c0_16, %c1, %c0_17, %c0_18] : memref<5x3x256x256xbf16, #tpu.memory_space<vmem>>, vector<1x1x256x256xbf16>
    %18 = vector.shape_cast %17 : vector<1x1x256x256xbf16> to vector<256x256xbf16>
    %cst_19 = arith.constant dense<0.000000e+00> : vector<32x256xf32>
    %19 = tpu.matmul %16, %18, %cst_19 {dimension_numbers = #tpu.dot_dimension_numbers<[1], [0], [0], [1], [0, 0, 1, 1], [], []>} : vector<32x256xbf16>, vector<256x256xbf16>, vector<32x256xf32> -> vector<32x256xf32>
    %20 = arith.addf %15, %19 : vector<32x256xf32>
    %21 = vector.shape_cast %11 : vector<2x16x256xbf16> to vector<32x256xbf16>
    %c0_20 = arith.constant 0 : index
    %c2 = arith.constant 2 : index
    %c0_21 = arith.constant 0 : index
    %c0_22 = arith.constant 0 : index
    %22 = vector.load %arg2[%c0_20, %c2, %c0_21, %c0_22] : memref<5x3x256x256xbf16, #tpu.memory_space<vmem>>, vector<1x1x256x256xbf16>
    %23 = vector.shape_cast %22 : vector<1x1x256x256xbf16> to vector<256x256xbf16>
    %cst_23 = arith.constant dense<0.000000e+00> : vector<32x256xf32>
    %24 = tpu.matmul %21, %23, %cst_23 {dimension_numbers = #tpu.dot_dimension_numbers<[1], [0], [0], [1], [0, 0, 1, 1], [], []>} : vector<32x256xbf16>, vector<256x256xbf16>, vector<32x256xf32> -> vector<32x256xf32>
    %25 = arith.addf %20, %24 : vector<32x256xf32>
    %c0_24 = arith.constant 0 : index
    %c0_25 = arith.constant 0 : index
    %c0_26 = arith.constant 0 : index
    %26 = vector.load %arg3[%c0_24, %c0_25, %c0_26] : memref<5x1x256xf32, #tpu.memory_space<vmem>>, vector<1x1x256xf32>
    %27 = vector.shape_cast %26 : vector<1x1x256xf32> to vector<1x256xf32>
    %28 = vector.broadcast %27 : vector<1x256xf32> to vector<32x256xf32>
    %29 = arith.addf %25, %28 : vector<32x256xf32>
    %cst_27 = arith.constant 0.000000e+00 : f32
    %30 = vector.broadcast %cst_27 : f32 to vector<32x256xf32>
    %31 = arith.cmpf oge, %29, %30 : vector<32x256xf32>
    %cst_28 = arith.constant 2.000000e-01 : f32
    %32 = vector.broadcast %cst_28 : f32 to vector<32x256xf32>
    %33 = arith.mulf %32, %29 : vector<32x256xf32>
    %34 = arith.select %31, %29, %33 : vector<32x256xi1>, vector<32x256xf32>
    %35 = vector.shape_cast %34 : vector<32x256xf32> to vector<2x16x256xf32>
    %36 = arith.truncf %35 : vector<2x16x256xf32> to vector<2x16x256xbf16>
    %c0_29 = arith.constant 0 : index
    %c0_30 = arith.constant 0 : index
    %c0_31 = arith.constant 0 : index
    %37 = vector.load %arg5[%c0_29, %c0_30, %c0_31] : memref<2x16x256xbf16, #tpu.memory_space<vmem>>, vector<2x16x256xbf16>
    tpu.vector_store %arg5[%c0_29, %c0_30, %c0_31], %36 {strides = array<i32>} : memref<2x16x256xbf16, #tpu.memory_space<vmem>>, vector<2x16x256xbf16>,
    %c0_32 = arith.constant 0 : index
    %c0_33 = arith.constant 0 : index
    %c0_34 = arith.constant 0 : index
    %38 = vector.load %arg5[%c0_32, %c0_33, %c0_34] : memref<2x16x256xbf16, #tpu.memory_space<vmem>>, vector<2x16x256xbf16>
    %39 = vector.extract_strided_slice %38 {offsets = [0, 1, 0], sizes = [2, 1, 256], strides = [1, 1, 1]} : vector<2x16x256xbf16> to vector<2x1x256xbf16>
    %40 = vector.extract_strided_slice %38 {offsets = [0, 0, 0], sizes = [2, 15, 256], strides = [1, 1, 1]} : vector<2x16x256xbf16> to vector<2x15x256xbf16>
    %41 = tpu.concatenate %39, %40 in 1 : vector<2x1x256xbf16>, vector<2x15x256xbf16> -> vector<2x16x256xbf16>
    %42 = vector.extract_strided_slice %38 {offsets = [0, 1, 0], sizes = [2, 15, 256], strides = [1, 1, 1]} : vector<2x16x256xbf16> to vector<2x15x256xbf16>
    %43 = vector.extract_strided_slice %38 {offsets = [0, 14, 0], sizes = [2, 1, 256], strides = [1, 1, 1]} : vector<2x16x256xbf16> to vector<2x1x256xbf16>
    %44 = tpu.concatenate %42, %43 in 1 : vector<2x15x256xbf16>, vector<2x1x256xbf16> -> vector<2x16x256xbf16>
    %45 = vector.shape_cast %41 : vector<2x16x256xbf16> to vector<32x256xbf16>
    %c1_35 = arith.constant 1 : index
    %c0_36 = arith.constant 0 : index
    %c0_37 = arith.constant 0 : index
    %c0_38 = arith.constant 0 : index
    %46 = vector.load %arg2[%c1_35, %c0_36, %c0_37, %c0_38] : memref<5x3x256x256xbf16, #tpu.memory_space<vmem>>, vector<1x1x256x256xbf16>
    %47 = vector.shape_cast %46 : vector<1x1x256x256xbf16> to vector<256x256xbf16>
    %cst_39 = arith.constant dense<0.000000e+00> : vector<32x256xf32>
    %48 = tpu.matmul %45, %47, %cst_39 {dimension_numbers = #tpu.dot_dimension_numbers<[1], [0], [0], [1], [0, 0, 1, 1], [], []>} : vector<32x256xbf16>, vector<256x256xbf16>, vector<32x256xf32> -> vector<32x256xf32>
    %49 = vector.shape_cast %38 : vector<2x16x256xbf16> to vector<32x256xbf16>
    %c1_40 = arith.constant 1 : index
    %c1_41 = arith.constant 1 : index
    %c0_42 = arith.constant 0 : index
    %c0_43 = arith.constant 0 : index
    %50 = vector.load %arg2[%c1_40, %c1_41, %c0_42, %c0_43] : memref<5x3x256x256xbf16, #tpu.memory_space<vmem>>, vector<1x1x256x256xbf16>
    %51 = vector.shape_cast %50 : vector<1x1x256x256xbf16> to vector<256x256xbf16>
    %cst_44 = arith.constant dense<0.000000e+00> : vector<32x256xf32>
    %52 = tpu.matmul %49, %51, %cst_44 {dimension_numbers = #tpu.dot_dimension_numbers<[1], [0], [0], [1], [0, 0, 1, 1], [], []>} : vector<32x256xbf16>, vector<256x256xbf16>, vector<32x256xf32> -> vector<32x256xf32>
    %53 = arith.addf %48, %52 : vector<32x256xf32>
    %54 = vector.shape_cast %44 : vector<2x16x256xbf16> to vector<32x256xbf16>
    %c1_45 = arith.constant 1 : index
    %c2_46 = arith.constant 2 : index
    %c0_47 = arith.constant 0 : index
    %c0_48 = arith.constant 0 : index
    %55 = vector.load %arg2[%c1_45, %c2_46, %c0_47, %c0_48] : memref<5x3x256x256xbf16, #tpu.memory_space<vmem>>, vector<1x1x256x256xbf16>
    %56 = vector.shape_cast %55 : vector<1x1x256x256xbf16> to vector<256x256xbf16>
    %cst_49 = arith.constant dense<0.000000e+00> : vector<32x256xf32>
    %57 = tpu.matmul %54, %56, %cst_49 {dimension_numbers = #tpu.dot_dimension_numbers<[1], [0], [0], [1], [0, 0, 1, 1], [], []>} : vector<32x256xbf16>, vector<256x256xbf16>, vector<32x256xf32> -> vector<32x256xf32>
    %58 = arith.addf %53, %57 : vector<32x256xf32>
    %c1_50 = arith.constant 1 : index
    %c0_51 = arith.constant 0 : index
    %c0_52 = arith.constant 0 : index
    %59 = vector.load %arg3[%c1_50, %c0_51, %c0_52] : memref<5x1x256xf32, #tpu.memory_space<vmem>>, vector<1x1x256xf32>
    %60 = vector.shape_cast %59 : vector<1x1x256xf32> to vector<1x256xf32>
    %61 = vector.broadcast %60 : vector<1x256xf32> to vector<32x256xf32>
    %62 = arith.addf %58, %61 : vector<32x256xf32>
    %cst_53 = arith.constant 0.000000e+00 : f32
    %63 = vector.broadcast %cst_53 : f32 to vector<32x256xf32>
    %64 = arith.cmpf oge, %62, %63 : vector<32x256xf32>
    %cst_54 = arith.constant 2.000000e-01 : f32
    %65 = vector.broadcast %cst_54 : f32 to vector<32x256xf32>
    %66 = arith.mulf %65, %62 : vector<32x256xf32>
    %67 = arith.select %64, %62, %66 : vector<32x256xi1>, vector<32x256xf32>
    %68 = vector.shape_cast %67 : vector<32x256xf32> to vector<2x16x256xf32>
    %69 = arith.truncf %68 : vector<2x16x256xf32> to vector<2x16x256xbf16>
    %c0_55 = arith.constant 0 : index
    %c0_56 = arith.constant 0 : index
    %c0_57 = arith.constant 0 : index
    %70 = vector.load %arg5[%c0_55, %c0_56, %c0_57] : memref<2x16x256xbf16, #tpu.memory_space<vmem>>, vector<2x16x256xbf16>
    tpu.vector_store %arg5[%c0_55, %c0_56, %c0_57], %69 {strides = array<i32>} : memref<2x16x256xbf16, #tpu.memory_space<vmem>>, vector<2x16x256xbf16>,
    %c0_58 = arith.constant 0 : index
    %c0_59 = arith.constant 0 : index
    %c0_60 = arith.constant 0 : index
    %71 = vector.load %arg5[%c0_58, %c0_59, %c0_60] : memref<2x16x256xbf16, #tpu.memory_space<vmem>>, vector<2x16x256xbf16>
    %72 = vector.extract_strided_slice %71 {offsets = [0, 1, 0], sizes = [2, 1, 256], strides = [1, 1, 1]} : vector<2x16x256xbf16> to vector<2x1x256xbf16>
    %73 = vector.extract_strided_slice %71 {offsets = [0, 0, 0], sizes = [2, 15, 256], strides = [1, 1, 1]} : vector<2x16x256xbf16> to vector<2x15x256xbf16>
    %74 = tpu.concatenate %72, %73 in 1 : vector<2x1x256xbf16>, vector<2x15x256xbf16> -> vector<2x16x256xbf16>
    %75 = vector.extract_strided_slice %71 {offsets = [0, 1, 0], sizes = [2, 15, 256], strides = [1, 1, 1]} : vector<2x16x256xbf16> to vector<2x15x256xbf16>
    %76 = vector.extract_strided_slice %71 {offsets = [0, 14, 0], sizes = [2, 1, 256], strides = [1, 1, 1]} : vector<2x16x256xbf16> to vector<2x1x256xbf16>
    %77 = tpu.concatenate %75, %76 in 1 : vector<2x15x256xbf16>, vector<2x1x256xbf16> -> vector<2x16x256xbf16>
    %78 = vector.shape_cast %74 : vector<2x16x256xbf16> to vector<32x256xbf16>
    %c2_61 = arith.constant 2 : index
    %c0_62 = arith.constant 0 : index
    %c0_63 = arith.constant 0 : index
    %c0_64 = arith.constant 0 : index
    %79 = vector.load %arg2[%c2_61, %c0_62, %c0_63, %c0_64] : memref<5x3x256x256xbf16, #tpu.memory_space<vmem>>, vector<1x1x256x256xbf16>
    %80 = vector.shape_cast %79 : vector<1x1x256x256xbf16> to vector<256x256xbf16>
    %cst_65 = arith.constant dense<0.000000e+00> : vector<32x256xf32>
    %81 = tpu.matmul %78, %80, %cst_65 {dimension_numbers = #tpu.dot_dimension_numbers<[1], [0], [0], [1], [0, 0, 1, 1], [], []>} : vector<32x256xbf16>, vector<256x256xbf16>, vector<32x256xf32> -> vector<32x256xf32>
    %82 = vector.shape_cast %71 : vector<2x16x256xbf16> to vector<32x256xbf16>
    %c2_66 = arith.constant 2 : index
    %c1_67 = arith.constant 1 : index
    %c0_68 = arith.constant 0 : index
    %c0_69 = arith.constant 0 : index
    %83 = vector.load %arg2[%c2_66, %c1_67, %c0_68, %c0_69] : memref<5x3x256x256xbf16, #tpu.memory_space<vmem>>, vector<1x1x256x256xbf16>
    %84 = vector.shape_cast %83 : vector<1x1x256x256xbf16> to vector<256x256xbf16>
    %cst_70 = arith.constant dense<0.000000e+00> : vector<32x256xf32>
    %85 = tpu.matmul %82, %84, %cst_70 {dimension_numbers = #tpu.dot_dimension_numbers<[1], [0], [0], [1], [0, 0, 1, 1], [], []>} : vector<32x256xbf16>, vector<256x256xbf16>, vector<32x256xf32> -> vector<32x256xf32>
    %86 = arith.addf %81, %85 : vector<32x256xf32>
    %87 = vector.shape_cast %77 : vector<2x16x256xbf16> to vector<32x256xbf16>
    %c2_71 = arith.constant 2 : index
    %c2_72 = arith.constant 2 : index
    %c0_73 = arith.constant 0 : index
    %c0_74 = arith.constant 0 : index
    %88 = vector.load %arg2[%c2_71, %c2_72, %c0_73, %c0_74] : memref<5x3x256x256xbf16, #tpu.memory_space<vmem>>, vector<1x1x256x256xbf16>
    %89 = vector.shape_cast %88 : vector<1x1x256x256xbf16> to vector<256x256xbf16>
    %cst_75 = arith.constant dense<0.000000e+00> : vector<32x256xf32>
    %90 = tpu.matmul %87, %89, %cst_75 {dimension_numbers = #tpu.dot_dimension_numbers<[1], [0], [0], [1], [0, 0, 1, 1], [], []>} : vector<32x256xbf16>, vector<256x256xbf16>, vector<32x256xf32> -> vector<32x256xf32>
    %91 = arith.addf %86, %90 : vector<32x256xf32>
    %c2_76 = arith.constant 2 : index
    %c0_77 = arith.constant 0 : index
    %c0_78 = arith.constant 0 : index
    %92 = vector.load %arg3[%c2_76, %c0_77, %c0_78] : memref<5x1x256xf32, #tpu.memory_space<vmem>>, vector<1x1x256xf32>
    %93 = vector.shape_cast %92 : vector<1x1x256xf32> to vector<1x256xf32>
    %94 = vector.broadcast %93 : vector<1x256xf32> to vector<32x256xf32>
    %95 = arith.addf %91, %94 : vector<32x256xf32>
    %cst_79 = arith.constant 0.000000e+00 : f32
    %96 = vector.broadcast %cst_79 : f32 to vector<32x256xf32>
    %97 = arith.cmpf oge, %95, %96 : vector<32x256xf32>
    %cst_80 = arith.constant 2.000000e-01 : f32
    %98 = vector.broadcast %cst_80 : f32 to vector<32x256xf32>
    %99 = arith.mulf %98, %95 : vector<32x256xf32>
    %100 = arith.select %97, %95, %99 : vector<32x256xi1>, vector<32x256xf32>
    %101 = vector.shape_cast %100 : vector<32x256xf32> to vector<2x16x256xf32>
    %102 = arith.truncf %101 : vector<2x16x256xf32> to vector<2x16x256xbf16>
    %c0_81 = arith.constant 0 : index
    %c0_82 = arith.constant 0 : index
    %c0_83 = arith.constant 0 : index
    %103 = vector.load %arg5[%c0_81, %c0_82, %c0_83] : memref<2x16x256xbf16, #tpu.memory_space<vmem>>, vector<2x16x256xbf16>
    tpu.vector_store %arg5[%c0_81, %c0_82, %c0_83], %102 {strides = array<i32>} : memref<2x16x256xbf16, #tpu.memory_space<vmem>>, vector<2x16x256xbf16>,
    %c0_84 = arith.constant 0 : index
    %c0_85 = arith.constant 0 : index
    %c0_86 = arith.constant 0 : index
    %104 = vector.load %arg5[%c0_84, %c0_85, %c0_86] : memref<2x16x256xbf16, #tpu.memory_space<vmem>>, vector<2x16x256xbf16>
    %105 = vector.extract_strided_slice %104 {offsets = [0, 1, 0], sizes = [2, 1, 256], strides = [1, 1, 1]} : vector<2x16x256xbf16> to vector<2x1x256xbf16>
    %106 = vector.extract_strided_slice %104 {offsets = [0, 0, 0], sizes = [2, 15, 256], strides = [1, 1, 1]} : vector<2x16x256xbf16> to vector<2x15x256xbf16>
    %107 = tpu.concatenate %105, %106 in 1 : vector<2x1x256xbf16>, vector<2x15x256xbf16> -> vector<2x16x256xbf16>
    %108 = vector.extract_strided_slice %104 {offsets = [0, 1, 0], sizes = [2, 15, 256], strides = [1, 1, 1]} : vector<2x16x256xbf16> to vector<2x15x256xbf16>
    %109 = vector.extract_strided_slice %104 {offsets = [0, 14, 0], sizes = [2, 1, 256], strides = [1, 1, 1]} : vector<2x16x256xbf16> to vector<2x1x256xbf16>
    %110 = tpu.concatenate %108, %109 in 1 : vector<2x15x256xbf16>, vector<2x1x256xbf16> -> vector<2x16x256xbf16>
    %111 = vector.shape_cast %107 : vector<2x16x256xbf16> to vector<32x256xbf16>
    %c3 = arith.constant 3 : index
    %c0_87 = arith.constant 0 : index
    %c0_88 = arith.constant 0 : index
    %c0_89 = arith.constant 0 : index
    %112 = vector.load %arg2[%c3, %c0_87, %c0_88, %c0_89] : memref<5x3x256x256xbf16, #tpu.memory_space<vmem>>, vector<1x1x256x256xbf16>
    %113 = vector.shape_cast %112 : vector<1x1x256x256xbf16> to vector<256x256xbf16>
    %cst_90 = arith.constant dense<0.000000e+00> : vector<32x256xf32>
    %114 = tpu.matmul %111, %113, %cst_90 {dimension_numbers = #tpu.dot_dimension_numbers<[1], [0], [0], [1], [0, 0, 1, 1], [], []>} : vector<32x256xbf16>, vector<256x256xbf16>, vector<32x256xf32> -> vector<32x256xf32>
    %115 = vector.shape_cast %104 : vector<2x16x256xbf16> to vector<32x256xbf16>
    %c3_91 = arith.constant 3 : index
    %c1_92 = arith.constant 1 : index
    %c0_93 = arith.constant 0 : index
    %c0_94 = arith.constant 0 : index
    %116 = vector.load %arg2[%c3_91, %c1_92, %c0_93, %c0_94] : memref<5x3x256x256xbf16, #tpu.memory_space<vmem>>, vector<1x1x256x256xbf16>
    %117 = vector.shape_cast %116 : vector<1x1x256x256xbf16> to vector<256x256xbf16>
    %cst_95 = arith.constant dense<0.000000e+00> : vector<32x256xf32>
    %118 = tpu.matmul %115, %117, %cst_95 {dimension_numbers = #tpu.dot_dimension_numbers<[1], [0], [0], [1], [0, 0, 1, 1], [], []>} : vector<32x256xbf16>, vector<256x256xbf16>, vector<32x256xf32> -> vector<32x256xf32>
    %119 = arith.addf %114, %118 : vector<32x256xf32>
    %120 = vector.shape_cast %110 : vector<2x16x256xbf16> to vector<32x256xbf16>
    %c3_96 = arith.constant 3 : index
    %c2_97 = arith.constant 2 : index
    %c0_98 = arith.constant 0 : index
    %c0_99 = arith.constant 0 : index
    %121 = vector.load %arg2[%c3_96, %c2_97, %c0_98, %c0_99] : memref<5x3x256x256xbf16, #tpu.memory_space<vmem>>, vector<1x1x256x256xbf16>
    %122 = vector.shape_cast %121 : vector<1x1x256x256xbf16> to vector<256x256xbf16>
    %cst_100 = arith.constant dense<0.000000e+00> : vector<32x256xf32>
    %123 = tpu.matmul %120, %122, %cst_100 {dimension_numbers = #tpu.dot_dimension_numbers<[1], [0], [0], [1], [0, 0, 1, 1], [], []>} : vector<32x256xbf16>, vector<256x256xbf16>, vector<32x256xf32> -> vector<32x256xf32>
    %124 = arith.addf %119, %123 : vector<32x256xf32>
    %c3_101 = arith.constant 3 : index
    %c0_102 = arith.constant 0 : index
    %c0_103 = arith.constant 0 : index
    %125 = vector.load %arg3[%c3_101, %c0_102, %c0_103] : memref<5x1x256xf32, #tpu.memory_space<vmem>>, vector<1x1x256xf32>
    %126 = vector.shape_cast %125 : vector<1x1x256xf32> to vector<1x256xf32>
    %127 = vector.broadcast %126 : vector<1x256xf32> to vector<32x256xf32>
    %128 = arith.addf %124, %127 : vector<32x256xf32>
    %cst_104 = arith.constant 0.000000e+00 : f32
    %129 = vector.broadcast %cst_104 : f32 to vector<32x256xf32>
    %130 = arith.cmpf oge, %128, %129 : vector<32x256xf32>
    %cst_105 = arith.constant 2.000000e-01 : f32
    %131 = vector.broadcast %cst_105 : f32 to vector<32x256xf32>
    %132 = arith.mulf %131, %128 : vector<32x256xf32>
    %133 = arith.select %130, %128, %132 : vector<32x256xi1>, vector<32x256xf32>
    %134 = vector.shape_cast %133 : vector<32x256xf32> to vector<2x16x256xf32>
    %135 = arith.truncf %134 : vector<2x16x256xf32> to vector<2x16x256xbf16>
    %c0_106 = arith.constant 0 : index
    %c0_107 = arith.constant 0 : index
    %c0_108 = arith.constant 0 : index
    %136 = vector.load %arg5[%c0_106, %c0_107, %c0_108] : memref<2x16x256xbf16, #tpu.memory_space<vmem>>, vector<2x16x256xbf16>
    tpu.vector_store %arg5[%c0_106, %c0_107, %c0_108], %135 {strides = array<i32>} : memref<2x16x256xbf16, #tpu.memory_space<vmem>>, vector<2x16x256xbf16>,
    %c0_109 = arith.constant 0 : index
    %c0_110 = arith.constant 0 : index
    %c0_111 = arith.constant 0 : index
    %137 = vector.load %arg5[%c0_109, %c0_110, %c0_111] : memref<2x16x256xbf16, #tpu.memory_space<vmem>>, vector<2x16x256xbf16>
    %138 = vector.extract_strided_slice %137 {offsets = [0, 1, 0], sizes = [2, 1, 256], strides = [1, 1, 1]} : vector<2x16x256xbf16> to vector<2x1x256xbf16>
    %139 = vector.extract_strided_slice %137 {offsets = [0, 0, 0], sizes = [2, 15, 256], strides = [1, 1, 1]} : vector<2x16x256xbf16> to vector<2x15x256xbf16>
    %140 = tpu.concatenate %138, %139 in 1 : vector<2x1x256xbf16>, vector<2x15x256xbf16> -> vector<2x16x256xbf16>
    %141 = vector.extract_strided_slice %137 {offsets = [0, 1, 0], sizes = [2, 15, 256], strides = [1, 1, 1]} : vector<2x16x256xbf16> to vector<2x15x256xbf16>
    %142 = vector.extract_strided_slice %137 {offsets = [0, 14, 0], sizes = [2, 1, 256], strides = [1, 1, 1]} : vector<2x16x256xbf16> to vector<2x1x256xbf16>
    %143 = tpu.concatenate %141, %142 in 1 : vector<2x15x256xbf16>, vector<2x1x256xbf16> -> vector<2x16x256xbf16>
    %144 = vector.shape_cast %140 : vector<2x16x256xbf16> to vector<32x256xbf16>
    %c4 = arith.constant 4 : index
    %c0_112 = arith.constant 0 : index
    %c0_113 = arith.constant 0 : index
    %c0_114 = arith.constant 0 : index
    %145 = vector.load %arg2[%c4, %c0_112, %c0_113, %c0_114] : memref<5x3x256x256xbf16, #tpu.memory_space<vmem>>, vector<1x1x256x256xbf16>
    %146 = vector.shape_cast %145 : vector<1x1x256x256xbf16> to vector<256x256xbf16>
    %cst_115 = arith.constant dense<0.000000e+00> : vector<32x256xf32>
    %147 = tpu.matmul %144, %146, %cst_115 {dimension_numbers = #tpu.dot_dimension_numbers<[1], [0], [0], [1], [0, 0, 1, 1], [], []>} : vector<32x256xbf16>, vector<256x256xbf16>, vector<32x256xf32> -> vector<32x256xf32>
    %148 = vector.shape_cast %137 : vector<2x16x256xbf16> to vector<32x256xbf16>
    %c4_116 = arith.constant 4 : index
    %c1_117 = arith.constant 1 : index
    %c0_118 = arith.constant 0 : index
    %c0_119 = arith.constant 0 : index
    %149 = vector.load %arg2[%c4_116, %c1_117, %c0_118, %c0_119] : memref<5x3x256x256xbf16, #tpu.memory_space<vmem>>, vector<1x1x256x256xbf16>
    %150 = vector.shape_cast %149 : vector<1x1x256x256xbf16> to vector<256x256xbf16>
    %cst_120 = arith.constant dense<0.000000e+00> : vector<32x256xf32>
    %151 = tpu.matmul %148, %150, %cst_120 {dimension_numbers = #tpu.dot_dimension_numbers<[1], [0], [0], [1], [0, 0, 1, 1], [], []>} : vector<32x256xbf16>, vector<256x256xbf16>, vector<32x256xf32> -> vector<32x256xf32>
    %152 = arith.addf %147, %151 : vector<32x256xf32>
    %153 = vector.shape_cast %143 : vector<2x16x256xbf16> to vector<32x256xbf16>
    %c4_121 = arith.constant 4 : index
    %c2_122 = arith.constant 2 : index
    %c0_123 = arith.constant 0 : index
    %c0_124 = arith.constant 0 : index
    %154 = vector.load %arg2[%c4_121, %c2_122, %c0_123, %c0_124] : memref<5x3x256x256xbf16, #tpu.memory_space<vmem>>, vector<1x1x256x256xbf16>
    %155 = vector.shape_cast %154 : vector<1x1x256x256xbf16> to vector<256x256xbf16>
    %cst_125 = arith.constant dense<0.000000e+00> : vector<32x256xf32>
    %156 = tpu.matmul %153, %155, %cst_125 {dimension_numbers = #tpu.dot_dimension_numbers<[1], [0], [0], [1], [0, 0, 1, 1], [], []>} : vector<32x256xbf16>, vector<256x256xbf16>, vector<32x256xf32> -> vector<32x256xf32>
    %157 = arith.addf %152, %156 : vector<32x256xf32>
    %c4_126 = arith.constant 4 : index
    %c0_127 = arith.constant 0 : index
    %c0_128 = arith.constant 0 : index
    %158 = vector.load %arg3[%c4_126, %c0_127, %c0_128] : memref<5x1x256xf32, #tpu.memory_space<vmem>>, vector<1x1x256xf32>
    %159 = vector.shape_cast %158 : vector<1x1x256xf32> to vector<1x256xf32>
    %160 = vector.broadcast %159 : vector<1x256xf32> to vector<32x256xf32>
    %161 = arith.addf %157, %160 : vector<32x256xf32>
    %cst_129 = arith.constant 0.000000e+00 : f32
    %162 = vector.broadcast %cst_129 : f32 to vector<32x256xf32>
    %163 = arith.cmpf oge, %161, %162 : vector<32x256xf32>
    %cst_130 = arith.constant 2.000000e-01 : f32
    %164 = vector.broadcast %cst_130 : f32 to vector<32x256xf32>
    %165 = arith.mulf %164, %161 : vector<32x256xf32>
    %166 = arith.select %163, %161, %165 : vector<32x256xi1>, vector<32x256xf32>
    %167 = vector.shape_cast %166 : vector<32x256xf32> to vector<2x16x256xf32>
    %168 = vector.extract_strided_slice %167 {offsets = [0, 0, 0], sizes = [2, 16, 132], strides = [1, 1, 1]} : vector<2x16x256xf32> to vector<2x16x132xf32>
    %c0_131 = arith.constant 0 : index
    %c0_132 = arith.constant 0 : index
    %c0_133 = arith.constant 0 : index
    %169 = vector.load %arg4[%c0_131, %c0_132, %c0_133] : memref<2x16x132xf32, #tpu.memory_space<vmem>>, vector<2x16x132xf32>
    tpu.vector_store %arg4[%c0_131, %c0_132, %c0_133], %168 {strides = array<i32>} : memref<2x16x132xf32, #tpu.memory_space<vmem>>, vector<2x16x132xf32>,
    return
  }
  func.func @transform_0(%arg0: i32) -> (i32, i32, i32) {
    %c0_i32 = arith.constant 0 : i32
    %c0_i32_0 = arith.constant 0 : i32
    %c0_i32_1 = arith.constant 0 : i32
    return %arg0, %c0_i32, %c0_i32_0 : i32, i32, i32
  }
  func.func @transform_1(%arg0: i32) -> (i32, i32, i32, i32) {
    %c0_i32 = arith.constant 0 : i32
    %c0_i32_0 = arith.constant 0 : i32
    %c0_i32_1 = arith.constant 0 : i32
    %c0_i32_2 = arith.constant 0 : i32
    %c0_i32_3 = arith.constant 0 : i32
    return %c0_i32, %c0_i32_0, %c0_i32_1, %c0_i32_2 : i32, i32, i32, i32
  }
  func.func @transform_2(%arg0: i32) -> (i32, i32, i32) {
    %c0_i32 = arith.constant 0 : i32
    %c0_i32_0 = arith.constant 0 : i32
    %c0_i32_1 = arith.constant 0 : i32
    %c0_i32_2 = arith.constant 0 : i32
    return %c0_i32, %c0_i32_0, %c0_i32_1 : i32, i32, i32
  }
  func.func @transform_3(%arg0: i32) -> (i32, i32, i32) {
    %c0_i32 = arith.constant 0 : i32
    %c0_i32_0 = arith.constant 0 : i32
    %c0_i32_1 = arith.constant 0 : i32
    return %arg0, %c0_i32, %c0_i32_0 : i32, i32, i32
  }
}

</mosaic_0001>

<llo_original>
// kernel: tpu_custom_call.1
$region0: #{tpu_custom_call.1}
  #allocation0 [shape = 'u32[]', space=smem, size = 0x4, offset = 0x4, fixed_abs, tag = 'smem constant byte address 0x4 - core index']
  #allocation1 [shape = 'u32[144,128]{1,0:T(1,128)}', space=vmem, size = 0x12000, scoped, tag = 'internal scratch']
  #allocation2 [shape = 'bf16[2,16,256]{2,1,0:T(16,128)(2,1)}', space=vmem, size = 0x4000, scoped, tag = 'scratch operand']
  %s0 = inlined_call_operand.hbm [shape: f32[2,16,132], index: 0, kind: input, shape index: {}]
  %s1 = inlined_call_operand.hbm [shape: bf16[5,3,256,256], index: 1, kind: input, shape index: {}]
  %s2 = inlined_call_operand.hbm [shape: f32[5,1,256], index: 2, kind: input, shape index: {}]
  %s3 = inlined_call_operand.hbm [shape: f32[2,16,132], index: 3, kind: output, shape index: {}]
  %s4 = sld [smem:[#allocation0]]
  $region34: #{tpu_custom_call.1} parent=0
    _
  %s6 = ssub.s32 1, %s4
  %s7 = scalar_select 0, %s6, %s4
  $region1: #{tpu_custom_call.1} parent=0
    #allocation3 [shape = 'u8[32768]{0}', space=vmem, size = 0x8000, scoped, tag = 'input window, operand 0, single buffered']
    #allocation4 [shape = 's32[1]{0}', space=sflag, size = 0x4, scoped, tag = 'scoped memory for tpu_custom_call.1']
    #allocation5 [shape = 's32[1]{0}', space=sflag, size = 0x4, scoped, tag = 'scoped memory for tpu_custom_call.1']
    #allocation6 [shape = 'u8[1966080]{0}', space=vmem, size = 0x1e0000, scoped, tag = 'input window, operand 1, single buffered']
    #allocation7 [shape = 's32[1]{0}', space=sflag, size = 0x4, scoped, tag = 'scoped memory for tpu_custom_call.1']
    #allocation8 [shape = 'u8[5120]{0}', space=vmem, size = 0x1400, scoped, tag = 'input window, operand 2, single buffered']
    #allocation9 [shape = 'u8[32768]{0}', space=vmem, size = 0x8000, scoped, tag = 'output window, operand 0, single buffered']
    %8 = vsyncpa [#allocation4], 0
    %9 = vsyncpa [#allocation7], 0
    %10 = vsyncpa [#allocation5], 0
    // Predicated region
    $region2: #{tpu_custom_call.1} parent=1 // pred_check
      _
    $region3: #{tpu_custom_call.1} parent=1 // pred_check_branch
      %12 = sbr.rel (0) target = $region5
    $region4: #{tpu_custom_call.1} parent=1 // pred_region
      %s14 = ssub.s32 1024, 1024
      %15 = vsyncadd [#allocation4], %s14
      %s16 = sshll.u32 [#allocation3], 4
      %s17 = int_to_ptr.vmem [resolvable:$true] %s16
      %22 = dma.hbm_to_vmem [thread:$0]  %s0, 1024, %s17, [#allocation4], 256, 256, 16
    $region5: #{tpu_custom_call.1} parent=1 // pred_fallthru
      _
    // Predicated region
    $region6: #{tpu_custom_call.1} parent=1 // pred_check
      _
    $region7: #{tpu_custom_call.1} parent=1 // pred_check_branch
      %24 = sbr.rel (0) target = $region9
    $region8: #{tpu_custom_call.1} parent=1 // pred_region
      %s26 = ssub.s32 61440, 61440
      %27 = vsyncadd [#allocation7], %s26
      %s28 = sshll.u32 [#allocation6], 4
      %s29 = int_to_ptr.vmem [resolvable:$true] %s28
      %34 = dma.hbm_to_vmem [thread:$0]  %s1, 61440, %s29, [#allocation7], 128, 128, 8
    $region9: #{tpu_custom_call.1} parent=1 // pred_fallthru
      _
    // Predicated region
    $region10: #{tpu_custom_call.1} parent=1 // pred_check
      _
    $region11: #{tpu_custom_call.1} parent=1 // pred_check_branch
      %36 = sbr.rel (0) target = $region13
    $region12: #{tpu_custom_call.1} parent=1 // pred_region
      %s38 = ssub.s32 160, 160
      %39 = vsyncadd [#allocation7], %s38
      %s40 = sshll.u32 [#allocation8], 4
      %s41 = int_to_ptr.vmem [resolvable:$true] %s40
      %46 = dma.hbm_to_vmem [thread:$0]  %s2, 160, %s41, [#allocation7], 32, 32, 2
    $region13: #{tpu_custom_call.1} parent=1 // pred_fallthru
      _
    // Predicated region
    $region14: #{tpu_custom_call.1} parent=1 // pred_check
      _
    $region15: #{tpu_custom_call.1} parent=1 // pred_check_branch
      %48 = sbr.rel (0) target = $region17
    $region16: #{tpu_custom_call.1} parent=1 // pred_region
      %49 = dma.done [#allocation4], 1024
    $region17: #{tpu_custom_call.1} parent=1 // pred_fallthru
      _
    // Predicated region
    $region18: #{tpu_custom_call.1} parent=1 // pred_check
      _
    $region19: #{tpu_custom_call.1} parent=1 // pred_check_branch
      %51 = sbr.rel (0) target = $region21
    $region20: #{tpu_custom_call.1} parent=1 // pred_region
      %52 = dma.done [#allocation7], 61440
    $region21: #{tpu_custom_call.1} parent=1 // pred_fallthru
      _
    // Predicated region
    $region22: #{tpu_custom_call.1} parent=1 // pred_check
      _
    $region23: #{tpu_custom_call.1} parent=1 // pred_check_branch
      %54 = sbr.rel (0) target = $region25
    $region24: #{tpu_custom_call.1} parent=1 // pred_region
      %55 = dma.done [#allocation7], 160
    $region25: #{tpu_custom_call.1} parent=1 // pred_fallthru
      _
    %57 = vst [vmem:[#allocation2] sm:$0xff] 0
    %58 = vst [vmem:[#allocation2 + $0x8] sm:$0xff] 0
    %59 = vst [vmem:[#allocation2 + $0x10] sm:$0xff] 0
    %60 = vst [vmem:[#allocation2 + $0x18] sm:$0xff] 0
    %v61 = vld [vmem:[#allocation3] sm:$0xff]
    %v62 = vld [vmem:[#allocation3 + $0x8] sm:$0xff]
    %v63 = vld [vmem:[#allocation3 + $0x10] sm:$0xff]
    %v64 = vld [vmem:[#allocation3 + $0x18] sm:$0xff]
    %v65 = vld [vmem:[#allocation3 + $0x20] sm:$0xff]
    %v66 = vld [vmem:[#allocation3 + $0x28] sm:$0xff]
    %v67 = vld [vmem:[#allocation3 + $0x30] sm:$0xff]
    %v68 = vld [vmem:[#allocation3 + $0x38] sm:$0xff]
    %v69 = vpack.c.bf16 %v63, %v61
    %v70 = vpack.c.bf16 %v64, %v62
    %v71 = vpack.c.bf16 %v67, %v65
    %v72 = vpack.c.bf16 %v68, %v66
    %73 = vst [vmem:[#allocation2] sm:$0xff] %v69
    %vm74 = vcmask 31744
    %75 = vst.msk [vmem:[#allocation2 + $0x8] sm:$0xff] %vm74, %v70
    %76 = vst [vmem:[#allocation2 + $0x10] sm:$0xff] %v71
    %77 = vst.msk [vmem:[#allocation2 + $0x18] sm:$0xff] %vm74, %v72
    %v78 = vld [vmem:[#allocation2] sm:$0xff]
    %v79 = vld [vmem:[#allocation2 + $0x8] sm:$0xff]
    %v80 = vld [vmem:[#allocation2 + $0x10] sm:$0xff]
    %v81 = vld [vmem:[#allocation2 + $0x18] sm:$0xff]
    %v83 = vshrl.u32 %v78, 16
    %v86 = vshrl.u32 %v79, 16
    %v89 = vshrl.u32 %v80, 16
    %v92 = vshrl.u32 %v81, 16
    %v98 = vrot.slane %v83, 7
    %v99 = vshll.u32 %v78, 16
    %v101 = vor.u32 %v98, %v99
    %v102 = vrot.slane %v86, 7
    %v103 = vshll.u32 %v79, 16
    %v105 = vor.u32 %v102, %v103
    %v106 = vrot.slane %v89, 7
    %v107 = vshll.u32 %v80, 16
    %v109 = vor.u32 %v106, %v107
    %v110 = vrot.slane %v92, 7
    %v111 = vshll.u32 %v81, 16
    %v113 = vor.u32 %v110, %v111
    %vm118 = vcmask 1040384
    %vm119 = vsmask.f32 256
    %vm120 = vmand %vm118, %vm119
    %v121 = vsel %vm120, %v83, %v101
    %v122 = vsel %vm120, %v86, %v105
    %v123 = vsel %vm120, %v89, %v109
    %v124 = vsel %vm120, %v92, %v113
    %v125 = vrot.slane %v99, 1
    %v126 = vor.u32 %v83, %v125
    %v127 = vrot.slane %v103, 1
    %v128 = vor.u32 %v86, %v127
    %v129 = vrot.slane %v107, 1
    %v130 = vor.u32 %v89, %v129
    %v131 = vrot.slane %v111, 1
    %v132 = vor.u32 %v92, %v131
    %vm141 = vcmask 1047552
    %vm142 = vsmask.f32 7424
    %vm143 = vmand %vm141, %vm142
    %v144 = vsel %vm143, %v126, %v99
    %v145 = vsel %vm143, %v128, %v103
    %v146 = vsel %vm143, %v130, %v107
    %v147 = vsel %vm143, %v132, %v111
    %v148 = vld [vmem:[#allocation6] sm:$0xff]
    %v149 = vld [vmem:[#allocation6 + $0x8] sm:$0xff]
    %v150 = vld [vmem:[#allocation6 + $0x10] sm:$0xff]
    %v151 = vld [vmem:[#allocation6 + $0x18] sm:$0xff]
    %v152 = vld [vmem:[#allocation6 + $0x20] sm:$0xff]
    %v153 = vld [vmem:[#allocation6 + $0x28] sm:$0xff]
    %v154 = vld [vmem:[#allocation6 + $0x30] sm:$0xff]
    %v155 = vld [vmem:[#allocation6 + $0x38] sm:$0xff]
    %v156 = vld [vmem:[#allocation6 + $0x40] sm:$0xff]
    %v157 = vld [vmem:[#allocation6 + $0x48] sm:$0xff]
    %v158 = vld [vmem:[#allocation6 + $0x50] sm:$0xff]
    %v159 = vld [vmem:[#allocation6 + $0x58] sm:$0xff]
    %v160 = vld [vmem:[#allocation6 + $0x60] sm:$0xff]
    %v161 = vld [vmem:[#allocation6 + $0x68] sm:$0xff]
    %v162 = vld [vmem:[#allocation6 + $0x70] sm:$0xff]
    %v163 = vld [vmem:[#allocation6 + $0x78] sm:$0xff]
    %v164 = vld [vmem:[#allocation6 + $0x80] sm:$0xff]
    %v165 = vld [vmem:[#allocation6 + $0x88] sm:$0xff]
    %v166 = vld [vmem:[#allocation6 + $0x90] sm:$0xff]
    %v167 = vld [vmem:[#allocation6 + $0x98] sm:$0xff]
    %v168 = vld [vmem:[#allocation6 + $0xa0] sm:$0xff]
    %v169 = vld [vmem:[#allocation6 + $0xa8] sm:$0xff]
    %v170 = vld [vmem:[#allocation6 + $0xb0] sm:$0xff]
    %v171 = vld [vmem:[#allocation6 + $0xb8] sm:$0xff]
    %v172 = vld [vmem:[#allocation6 + $0xc0] sm:$0xff]
    %v173 = vld [vmem:[#allocation6 + $0xc8] sm:$0xff]
    %v174 = vld [vmem:[#allocation6 + $0xd0] sm:$0xff]
    %v175 = vld [vmem:[#allocation6 + $0xd8] sm:$0xff]
    %v176 = vld [vmem:[#allocation6 + $0xe0] sm:$0xff]
    %v177 = vld [vmem:[#allocation6 + $0xe8] sm:$0xff]
    %v178 = vld [vmem:[#allocation6 + $0xf0] sm:$0xff]
    %v179 = vld [vmem:[#allocation6 + $0xf8] sm:$0xff]
    %s180 = scalar_lea.vmem [#allocation6], 256
    %v181 = vld [vmem:[%s180] sm:$0xff]
    %v182 = vld [vmem:[%s180 + $0x8] sm:$0xff]
    %v183 = vld [vmem:[%s180 + $0x10] sm:$0xff]
    %v184 = vld [vmem:[%s180 + $0x18] sm:$0xff]
    %v185 = vld [vmem:[%s180 + $0x20] sm:$0xff]
    %v186 = vld [vmem:[%s180 + $0x28] sm:$0xff]
    %v187 = vld [vmem:[%s180 + $0x30] sm:$0xff]
    %v188 = vld [vmem:[%s180 + $0x38] sm:$0xff]
    %v189 = vld [vmem:[%s180 + $0x40] sm:$0xff]
    %v190 = vld [vmem:[%s180 + $0x48] sm:$0xff]
    %v191 = vld [vmem:[%s180 + $0x50] sm:$0xff]
    %v192 = vld [vmem:[%s180 + $0x58] sm:$0xff]
    %v193 = vld [vmem:[%s180 + $0x60] sm:$0xff]
    %v194 = vld [vmem:[%s180 + $0x68] sm:$0xff]
    %v195 = vld [vmem:[%s180 + $0x70] sm:$0xff]
    %v196 = vld [vmem:[%s180 + $0x78] sm:$0xff]
    %v197 = vld [vmem:[%s180 + $0x80] sm:$0xff]
    %v198 = vld [vmem:[%s180 + $0x88] sm:$0xff]
    %v199 = vld [vmem:[%s180 + $0x90] sm:$0xff]
    %v200 = vld [vmem:[%s180 + $0x98] sm:$0xff]
    %v201 = vld [vmem:[%s180 + $0xa0] sm:$0xff]
    %v202 = vld [vmem:[%s180 + $0xa8] sm:$0xff]
    %v203 = vld [vmem:[%s180 + $0xb0] sm:$0xff]
    %v204 = vld [vmem:[%s180 + $0xb8] sm:$0xff]
    %v205 = vld [vmem:[%s180 + $0xc0] sm:$0xff]
    %v206 = vld [vmem:[%s180 + $0xc8] sm:$0xff]
    %v207 = vld [vmem:[%s180 + $0xd0] sm:$0xff]
    %v208 = vld [vmem:[%s180 + $0xd8] sm:$0xff]
    %v209 = vld [vmem:[%s180 + $0xe0] sm:$0xff]
    %v210 = vld [vmem:[%s180 + $0xe8] sm:$0xff]
    %v211 = vld [vmem:[%s180 + $0xf0] sm:$0xff]
    %v212 = vld [vmem:[%s180 + $0xf8] sm:$0xff]
    %v245 = vunpack.c.l.b16 %v181
    %v246 = vunpack.c.h.b16 %v181
    %v247 = vunpack.c.l.b16 %v182
    %v248 = vunpack.c.h.b16 %v182
    %v249 = vunpack.c.l.b16 %v183
    %v250 = vunpack.c.h.b16 %v183
    %v251 = vunpack.c.l.b16 %v184
    %v252 = vunpack.c.h.b16 %v184
    %v253 = vunpack.c.l.b16 %v185
    %v254 = vunpack.c.h.b16 %v185
    %v255 = vunpack.c.l.b16 %v186
    %v256 = vunpack.c.h.b16 %v186
    %v257 = vunpack.c.l.b16 %v187
    %v258 = vunpack.c.h.b16 %v187
    %v259 = vunpack.c.l.b16 %v188
    %v260 = vunpack.c.h.b16 %v188
    %v261 = vunpack.c.l.b16 %v189
    %v262 = vunpack.c.h.b16 %v189
    %v263 = vunpack.c.l.b16 %v190
    %v264 = vunpack.c.h.b16 %v190
    %v265 = vunpack.c.l.b16 %v191
    %v266 = vunpack.c.h.b16 %v191
    %v267 = vunpack.c.l.b16 %v192
    %v268 = vunpack.c.h.b16 %v192
    %v269 = vunpack.c.l.b16 %v193
    %v270 = vunpack.c.h.b16 %v193
    %v271 = vunpack.c.l.b16 %v194
    %v272 = vunpack.c.h.b16 %v194
    %v273 = vunpack.c.l.b16 %v195
    %v274 = vunpack.c.h.b16 %v195
    %v275 = vunpack.c.l.b16 %v196
    %v276 = vunpack.c.h.b16 %v196
    %v277 = vunpack.c.l.b16 %v197
    %v278 = vunpack.c.h.b16 %v197
    %v279 = vunpack.c.l.b16 %v198
    %v280 = vunpack.c.h.b16 %v198
    %v281 = vunpack.c.l.b16 %v199
    %v282 = vunpack.c.h.b16 %v199
    %v283 = vunpack.c.l.b16 %v200
    %v284 = vunpack.c.h.b16 %v200
    %v285 = vunpack.c.l.b16 %v201
    %v286 = vunpack.c.h.b16 %v201
    %v287 = vunpack.c.l.b16 %v202
    %v288 = vunpack.c.h.b16 %v202
    %v289 = vunpack.c.l.b16 %v203
    %v290 = vunpack.c.h.b16 %v203
    %v291 = vunpack.c.l.b16 %v204
    %v292 = vunpack.c.h.b16 %v204
    %v293 = vunpack.c.l.b16 %v205
    %v294 = vunpack.c.h.b16 %v205
    %v295 = vunpack.c.l.b16 %v206
    %v296 = vunpack.c.h.b16 %v206
    %v297 = vunpack.c.l.b16 %v207
    %v298 = vunpack.c.h.b16 %v207
    %v299 = vunpack.c.l.b16 %v208
    %v300 = vunpack.c.h.b16 %v208
    %v301 = vunpack.c.l.b16 %v209
    %v302 = vunpack.c.h.b16 %v209
    %v303 = vunpack.c.l.b16 %v210
    %v304 = vunpack.c.h.b16 %v210
    %v305 = vunpack.c.l.b16 %v211
    %v306 = vunpack.c.h.b16 %v211
    %v307 = vunpack.c.l.b16 %v212
    %v308 = vunpack.c.h.b16 %v212
    %v309 = vpack.c.b16 %v247, %v245
    %v310 = vpack.c.b16 %v248, %v246
    %v311 = vpack.c.b16 %v251, %v249
    %v312 = vpack.c.b16 %v252, %v250
    %v313 = vpack.c.b16 %v255, %v253
    %v314 = vpack.c.b16 %v256, %v254
    %v315 = vpack.c.b16 %v259, %v257
    %v316 = vpack.c.b16 %v260, %v258
    %v317 = vpack.c.b16 %v263, %v261
    %v318 = vpack.c.b16 %v264, %v262
    %v319 = vpack.c.b16 %v267, %v265
    %v320 = vpack.c.b16 %v268, %v266
    %v321 = vpack.c.b16 %v271, %v269
    %v322 = vpack.c.b16 %v272, %v270
    %v323 = vpack.c.b16 %v275, %v273
    %v324 = vpack.c.b16 %v276, %v274
    %v325 = vpack.c.b16 %v279, %v277
    %v326 = vpack.c.b16 %v280, %v278
    %v327 = vpack.c.b16 %v283, %v281
    %v328 = vpack.c.b16 %v284, %v282
    %v329 = vpack.c.b16 %v287, %v285
    %v330 = vpack.c.b16 %v288, %v286
    %v331 = vpack.c.b16 %v291, %v289
    %v332 = vpack.c.b16 %v292, %v290
    %v333 = vpack.c.b16 %v295, %v293
    %v334 = vpack.c.b16 %v296, %v294
    %v335 = vpack.c.b16 %v299, %v297
    %v336 = vpack.c.b16 %v300, %v298
    %v337 = vpack.c.b16 %v303, %v301
    %v338 = vpack.c.b16 %v304, %v302
    %v339 = vpack.c.b16 %v307, %v305
    %v340 = vpack.c.b16 %v308, %v306
    %373 = vmatprep.subr.bf16.mxu0 %v310
    %374 = vmatpush1.bf16.msra.mxu0 %v309
    %375 = vmatprep.subr.bf16.mxu0 %v312
    %376 = vmatpush1.bf16.msra.mxu0 %v311
    %377 = vmatprep.subr.bf16.mxu0 %v314
    %378 = vmatpush1.bf16.msra.mxu0 %v313
    %379 = vmatprep.subr.bf16.mxu0 %v316
    %380 = vmatpush1.bf16.msra.mxu0 %v315
    %381 = vmatprep.subr.bf16.mxu0 %v318
    %382 = vmatpush1.bf16.msra.mxu0 %v317
    %383 = vmatprep.subr.bf16.mxu0 %v320
    %384 = vmatpush1.bf16.msra.mxu0 %v319
    %385 = vmatprep.subr.bf16.mxu0 %v322
    %386 = vmatpush1.bf16.msra.mxu0 %v321
    %387 = vmatprep.subr.bf16.mxu0 %v324
    %388 = vmatpush1.bf16.msra.mxu0 %v323
    %389 = vmatprep.subr.bf16.mxu0 %v326
    %390 = vmatpush1.bf16.msra.mxu0 %v325
    %391 = vmatprep.subr.bf16.mxu0 %v328
    %392 = vmatpush1.bf16.msra.mxu0 %v327
    %393 = vmatprep.subr.bf16.mxu0 %v330
    %394 = vmatpush1.bf16.msra.mxu0 %v329
    %395 = vmatprep.subr.bf16.mxu0 %v332
    %396 = vmatpush1.bf16.msra.mxu0 %v331
    %397 = vmatprep.subr.bf16.mxu0 %v334
    %398 = vmatpush1.bf16.msra.mxu0 %v333
    %399 = vmatprep.subr.bf16.mxu0 %v336
    %400 = vmatpush1.bf16.msra.mxu0 %v335
    %401 = vmatprep.subr.bf16.mxu0 %v338
    %402 = vmatpush1.bf16.msra.mxu0 %v337
    %403 = vmatprep.subr.bf16.mxu0 %v340
    %404 = vmatpush1.bf16.msra.mxu0 %v339
    %405 = vmatprep.mubr.bf16.mxu0 %v79
    %406 = vmatmul.mubr.bf16.gmra.mrb[0].mxu0 %v78
    %v407 = vpop.f32.mrb[0].mxu0
    %v408 = vadd.f32 0.0, %v407
    %v409 = vpop.f32.mrb[0].mxu0
    %v410 = vadd.f32 0.0, %v409
    %v411 = vpop.f32.mrb[0].mxu0
    %v412 = vadd.f32 0.0, %v411
    %v413 = vpop.f32.mrb[0].mxu0
    %v414 = vadd.f32 0.0, %v413
    %415 = vmatprep.mubr.bf16.mxu0 %v81
    %416 = vmatmul.mubr.bf16.gmra.mrb[0].mxu0 %v80
    %v417 = vpop.f32.mrb[0].mxu0
    %v418 = vadd.f32 0.0, %v417
    %v419 = vpop.f32.mrb[0].mxu0
    %v420 = vadd.f32 0.0, %v419
    %v421 = vpop.f32.mrb[0].mxu0
    %v422 = vadd.f32 0.0, %v421
    %v423 = vpop.f32.mrb[0].mxu0
    %v424 = vadd.f32 0.0, %v423
    %425 = vdwg.mxu0
    %v458 = vunpack.c.l.b16 %v148
    %v459 = vunpack.c.h.b16 %v148
    %v460 = vunpack.c.l.b16 %v149
    %v461 = vunpack.c.h.b16 %v149
    %v462 = vunpack.c.l.b16 %v150
    %v463 = vunpack.c.h.b16 %v150
    %v464 = vunpack.c.l.b16 %v151
    %v465 = vunpack.c.h.b16 %v151
    %v466 = vunpack.c.l.b16 %v152
    %v467 = vunpack.c.h.b16 %v152
    %v468 = vunpack.c.l.b16 %v153
    %v469 = vunpack.c.h.b16 %v153
    %v470 = vunpack.c.l.b16 %v154
    %v471 = vunpack.c.h.b16 %v154
    %v472 = vunpack.c.l.b16 %v155
    %v473 = vunpack.c.h.b16 %v155
    %v474 = vunpack.c.l.b16 %v156
    %v475 = vunpack.c.h.b16 %v156
    %v476 = vunpack.c.l.b16 %v157
    %v477 = vunpack.c.h.b16 %v157
    %v478 = vunpack.c.l.b16 %v158
    %v479 = vunpack.c.h.b16 %v158
    %v480 = vunpack.c.l.b16 %v159
    %v481 = vunpack.c.h.b16 %v159
    %v482 = vunpack.c.l.b16 %v160
    %v483 = vunpack.c.h.b16 %v160
    %v484 = vunpack.c.l.b16 %v161
    %v485 = vunpack.c.h.b16 %v161
    %v486 = vunpack.c.l.b16 %v162
    %v487 = vunpack.c.h.b16 %v162
    %v488 = vunpack.c.l.b16 %v163
    %v489 = vunpack.c.h.b16 %v163
    %v490 = vunpack.c.l.b16 %v164
    %v491 = vunpack.c.h.b16 %v164
    %v492 = vunpack.c.l.b16 %v165
    %v493 = vunpack.c.h.b16 %v165
    %v494 = vunpack.c.l.b16 %v166
    %v495 = vunpack.c.h.b16 %v166
    %v496 = vunpack.c.l.b16 %v167
    %v497 = vunpack.c.h.b16 %v167
    %v498 = vunpack.c.l.b16 %v168
    %v499 = vunpack.c.h.b16 %v168
    %v500 = vunpack.c.l.b16 %v169
    %v501 = vunpack.c.h.b16 %v169
    %v502 = vunpack.c.l.b16 %v170
    %v503 = vunpack.c.h.b16 %v170
    %v504 = vunpack.c.l.b16 %v171
    %v505 = vunpack.c.h.b16 %v171
    %v506 = vunpack.c.l.b16 %v172
    %v507 = vunpack.c.h.b16 %v172
    %v508 = vunpack.c.l.b16 %v173
    %v509 = vunpack.c.h.b16 %v173
    %v510 = vunpack.c.l.b16 %v174
    %v511 = vunpack.c.h.b16 %v174
    %v512 = vunpack.c.l.b16 %v175
    %v513 = vunpack.c.h.b16 %v175
    %v514 = vunpack.c.l.b16 %v176
    %v515 = vunpack.c.h.b16 %v176
    %v516 = vunpack.c.l.b16 %v177
    %v517 = vunpack.c.h.b16 %v177
    %v518 = vunpack.c.l.b16 %v178
    %v519 = vunpack.c.h.b16 %v178
    %v520 = vunpack.c.l.b16 %v179
    %v521 = vunpack.c.h.b16 %v179
    %v522 = vpack.c.b16 %v460, %v458
    %v523 = vpack.c.b16 %v461, %v459
    %v524 = vpack.c.b16 %v464, %v462
    %v525 = vpack.c.b16 %v465, %v463
    %v526 = vpack.c.b16 %v468, %v466
    %v527 = vpack.c.b16 %v469, %v467
    %v528 = vpack.c.b16 %v472, %v470
    %v529 = vpack.c.b16 %v473, %v471
    %v530 = vpack.c.b16 %v476, %v474
    %v531 = vpack.c.b16 %v477, %v475
    %v532 = vpack.c.b16 %v480, %v478
    %v533 = vpack.c.b16 %v481, %v479
    %v534 = vpack.c.b16 %v484, %v482
    %v535 = vpack.c.b16 %v485, %v483
    %v536 = vpack.c.b16 %v488, %v486
    %v537 = vpack.c.b16 %v489, %v487
    %v538 = vpack.c.b16 %v492, %v490
    %v539 = vpack.c.b16 %v493, %v491
    %v540 = vpack.c.b16 %v496, %v494
    %v541 = vpack.c.b16 %v497, %v495
    %v542 = vpack.c.b16 %v500, %v498
    %v543 = vpack.c.b16 %v501, %v499
    %v544 = vpack.c.b16 %v504, %v502
    %v545 = vpack.c.b16 %v505, %v503
    %v546 = vpack.c.b16 %v508, %v506
    %v547 = vpack.c.b16 %v509, %v507
    %v548 = vpack.c.b16 %v512, %v510
    %v549 = vpack.c.b16 %v513, %v511
    %v550 = vpack.c.b16 %v516, %v514
    %v551 = vpack.c.b16 %v517, %v515
    %v552 = vpack.c.b16 %v520, %v518
    %v553 = vpack.c.b16 %v521, %v519
    %586 = vmatprep.subr.bf16.mxu0 %v523
    %587 = vmatpush1.bf16.msra.mxu0 %v522
    %588 = vmatprep.subr.bf16.mxu0 %v525
    %589 = vmatpush1.bf16.msra.mxu0 %v524
    %590 = vmatprep.subr.bf16.mxu0 %v527
    %591 = vmatpush1.bf16.msra.mxu0 %v526
    %592 = vmatprep.subr.bf16.mxu0 %v529
    %593 = vmatpush1.bf16.msra.mxu0 %v528
    %594 = vmatprep.subr.bf16.mxu0 %v531
    %595 = vmatpush1.bf16.msra.mxu0 %v530
    %596 = vmatprep.subr.bf16.mxu0 %v533
    %597 = vmatpush1.bf16.msra.mxu0 %v532
    %598 = vmatprep.subr.bf16.mxu0 %v535
    %599 = vmatpush1.bf16.msra.mxu0 %v534
    %600 = vmatprep.subr.bf16.mxu0 %v537
    %601 = vmatpush1.bf16.msra.mxu0 %v536
    %602 = vmatprep.subr.bf16.mxu0 %v539
    %603 = vmatpush1.bf16.msra.mxu0 %v538
    %604 = vmatprep.subr.bf16.mxu0 %v541
    %605 = vmatpush1.bf16.msra.mxu0 %v540
    %606 = vmatprep.subr.bf16.mxu0 %v543
    %607 = vmatpush1.bf16.msra.mxu0 %v542
    %608 = vmatprep.subr.bf16.mxu0 %v545
    %609 = vmatpush1.bf16.msra.mxu0 %v544
    %610 = vmatprep.subr.bf16.mxu0 %v547
    %611 = vmatpush1.bf16.msra.mxu0 %v546
    %612 = vmatprep.subr.bf16.mxu0 %v549
    %613 = vmatpush1.bf16.msra.mxu0 %v548
    %614 = vmatprep.subr.bf16.mxu0 %v551
    %615 = vmatpush1.bf16.msra.mxu0 %v550
    %616 = vmatprep.subr.bf16.mxu0 %v553
    %617 = vmatpush1.bf16.msra.mxu0 %v552
    %618 = vmatprep.mubr.bf16.mxu0 %v122
    %619 = vmatmul.mubr.bf16.gmra.mrb[0].mxu0 %v121
    %v620 = vpop.f32.mrb[0].mxu0
    %v621 = vadd.f32 %v408, %v620
    %v622 = vpop.f32.mrb[0].mxu0
    %v623 = vadd.f32 %v410, %v622
    %v624 = vpop.f32.mrb[0].mxu0
    %v625 = vadd.f32 %v412, %v624
    %v626 = vpop.f32.mrb[0].mxu0
    %v627 = vadd.f32 %v414, %v626
    %628 = vmatprep.mubr.bf16.mxu0 %v124
    %629 = vmatmul.mubr.bf16.gmra.mrb[0].mxu0 %v123
    %v630 = vpop.f32.mrb[0].mxu0
    %v631 = vadd.f32 %v418, %v630
    %v632 = vpop.f32.mrb[0].mxu0
    %v633 = vadd.f32 %v420, %v632
    %v634 = vpop.f32.mrb[0].mxu0
    %v635 = vadd.f32 %v422, %v634
    %v636 = vpop.f32.mrb[0].mxu0
    %v637 = vadd.f32 %v424, %v636
    %638 = vdwg.mxu0
    %s639 = scalar_lea.vmem [#allocation6], 512
    %v640 = vld [vmem:[%s639] sm:$0xff]
    %v641 = vld [vmem:[%s639 + $0x8] sm:$0xff]
    %v642 = vld [vmem:[%s639 + $0x10] sm:$0xff]
    %v643 = vld [vmem:[%s639 + $0x18] sm:$0xff]
    %v644 = vld [vmem:[%s639 + $0x20] sm:$0xff]
    %v645 = vld [vmem:[%s639 + $0x28] sm:$0xff]
    %v646 = vld [vmem:[%s639 + $0x30] sm:$0xff]
    %v647 = vld [vmem:[%s639 + $0x38] sm:$0xff]
    %v648 = vld [vmem:[%s639 + $0x40] sm:$0xff]
    %v649 = vld [vmem:[%s639 + $0x48] sm:$0xff]
    %v650 = vld [vmem:[%s639 + $0x50] sm:$0xff]
    %v651 = vld [vmem:[%s639 + $0x58] sm:$0xff]
    %v652 = vld [vmem:[%s639 + $0x60] sm:$0xff]
    %v653 = vld [vmem:[%s639 + $0x68] sm:$0xff]
    %v654 = vld [vmem:[%s639 + $0x70] sm:$0xff]
    %v655 = vld [vmem:[%s639 + $0x78] sm:$0xff]
    %v656 = vld [vmem:[%s639 + $0x80] sm:$0xff]
    %v657 = vld [vmem:[%s639 + $0x88] sm:$0xff]
    %v658 = vld [vmem:[%s639 + $0x90] sm:$0xff]
    %v659 = vld [vmem:[%s639 + $0x98] sm:$0xff]
    %v660 = vld [vmem:[%s639 + $0xa0] sm:$0xff]
    %v661 = vld [vmem:[%s639 + $0xa8] sm:$0xff]
    %v662 = vld [vmem:[%s639 + $0xb0] sm:$0xff]
    %v663 = vld [vmem:[%s639 + $0xb8] sm:$0xff]
    %v664 = vld [vmem:[%s639 + $0xc0] sm:$0xff]
    %v665 = vld [vmem:[%s639 + $0xc8] sm:$0xff]
    %v666 = vld [vmem:[%s639 + $0xd0] sm:$0xff]
    %v667 = vld [vmem:[%s639 + $0xd8] sm:$0xff]
    %v668 = vld [vmem:[%s639 + $0xe0] sm:$0xff]
    %v669 = vld [vmem:[%s639 + $0xe8] sm:$0xff]
    %v670 = vld [vmem:[%s639 + $0xf0] sm:$0xff]
    %v671 = vld [vmem:[%s639 + $0xf8] sm:$0xff]
    %v704 = vunpack.c.l.b16 %v640
    %v705 = vunpack.c.h.b16 %v640
    %v706 = vunpack.c.l.b16 %v641
    %v707 = vunpack.c.h.b16 %v641
    %v708 = vunpack.c.l.b16 %v642
    %v709 = vunpack.c.h.b16 %v642
    %v710 = vunpack.c.l.b16 %v643
    %v711 = vunpack.c.h.b16 %v643
    %v712 = vunpack.c.l.b16 %v644
    %v713 = vunpack.c.h.b16 %v644
    %v714 = vunpack.c.l.b16 %v645
    %v715 = vunpack.c.h.b16 %v645
    %v716 = vunpack.c.l.b16 %v646
    %v717 = vunpack.c.h.b16 %v646
    %v718 = vunpack.c.l.b16 %v647
    %v719 = vunpack.c.h.b16 %v647
    %v720 = vunpack.c.l.b16 %v648
    %v721 = vunpack.c.h.b16 %v648
    %v722 = vunpack.c.l.b16 %v649
    %v723 = vunpack.c.h.b16 %v649
    %v724 = vunpack.c.l.b16 %v650
    %v725 = vunpack.c.h.b16 %v650
    %v726 = vunpack.c.l.b16 %v651
    %v727 = vunpack.c.h.b16 %v651
    %v728 = vunpack.c.l.b16 %v652
    %v729 = vunpack.c.h.b16 %v652
    %v730 = vunpack.c.l.b16 %v653
    %v731 = vunpack.c.h.b16 %v653
    %v732 = vunpack.c.l.b16 %v654
    %v733 = vunpack.c.h.b16 %v654
    %v734 = vunpack.c.l.b16 %v655
    %v735 = vunpack.c.h.b16 %v655
    %v736 = vunpack.c.l.b16 %v656
    %v737 = vunpack.c.h.b16 %v656
    %v738 = vunpack.c.l.b16 %v657
    %v739 = vunpack.c.h.b16 %v657
    %v740 = vunpack.c.l.b16 %v658
    %v741 = vunpack.c.h.b16 %v658
    %v742 = vunpack.c.l.b16 %v659
    %v743 = vunpack.c.h.b16 %v659
    %v744 = vunpack.c.l.b16 %v660
    %v745 = vunpack.c.h.b16 %v660
    %v746 = vunpack.c.l.b16 %v661
    %v747 = vunpack.c.h.b16 %v661
    %v748 = vunpack.c.l.b16 %v662
    %v749 = vunpack.c.h.b16 %v662
    %v750 = vunpack.c.l.b16 %v663
    %v751 = vunpack.c.h.b16 %v663
    %v752 = vunpack.c.l.b16 %v664
    %v753 = vunpack.c.h.b16 %v664
    %v754 = vunpack.c.l.b16 %v665
    %v755 = vunpack.c.h.b16 %v665
    %v756 = vunpack.c.l.b16 %v666
    %v757 = vunpack.c.h.b16 %v666
    %v758 = vunpack.c.l.b16 %v667
    %v759 = vunpack.c.h.b16 %v667
    %v760 = vunpack.c.l.b16 %v668
    %v761 = vunpack.c.h.b16 %v668
    %v762 = vunpack.c.l.b16 %v669
    %v763 = vunpack.c.h.b16 %v669
    %v764 = vunpack.c.l.b16 %v670
    %v765 = vunpack.c.h.b16 %v670
    %v766 = vunpack.c.l.b16 %v671
    %v767 = vunpack.c.h.b16 %v671
    %v768 = vpack.c.b16 %v706, %v704
    %v769 = vpack.c.b16 %v707, %v705
    %v770 = vpack.c.b16 %v710, %v708
    %v771 = vpack.c.b16 %v711, %v709
    %v772 = vpack.c.b16 %v714, %v712
    %v773 = vpack.c.b16 %v715, %v713
    %v774 = vpack.c.b16 %v718, %v716
    %v775 = vpack.c.b16 %v719, %v717
    %v776 = vpack.c.b16 %v722, %v720
    %v777 = vpack.c.b16 %v723, %v721
    %v778 = vpack.c.b16 %v726, %v724
    %v779 = vpack.c.b16 %v727, %v725
    %v780 = vpack.c.b16 %v730, %v728
    %v781 = vpack.c.b16 %v731, %v729
    %v782 = vpack.c.b16 %v734, %v732
    %v783 = vpack.c.b16 %v735, %v733
    %v784 = vpack.c.b16 %v738, %v736
    %v785 = vpack.c.b16 %v739, %v737
    %v786 = vpack.c.b16 %v742, %v740
    %v787 = vpack.c.b16 %v743, %v741
    %v788 = vpack.c.b16 %v746, %v744
    %v789 = vpack.c.b16 %v747, %v745
    %v790 = vpack.c.b16 %v750, %v748
    %v791 = vpack.c.b16 %v751, %v749
    %v792 = vpack.c.b16 %v754, %v752
    %v793 = vpack.c.b16 %v755, %v753
    %v794 = vpack.c.b16 %v758, %v756
    %v795 = vpack.c.b16 %v759, %v757
    %v796 = vpack.c.b16 %v762, %v760
    %v797 = vpack.c.b16 %v763, %v761
    %v798 = vpack.c.b16 %v766, %v764
    %v799 = vpack.c.b16 %v767, %v765
    %832 = vmatprep.subr.bf16.mxu0 %v769
    %833 = vmatpush1.bf16.msra.mxu0 %v768
    %834 = vmatprep.subr.bf16.mxu0 %v771
    %835 = vmatpush1.bf16.msra.mxu0 %v770
    %836 = vmatprep.subr.bf16.mxu0 %v773
    %837 = vmatpush1.bf16.msra.mxu0 %v772
    %838 = vmatprep.subr.bf16.mxu0 %v775
    %839 = vmatpush1.bf16.msra.mxu0 %v774
    %840 = vmatprep.subr.bf16.mxu0 %v777
    %841 = vmatpush1.bf16.msra.mxu0 %v776
    %842 = vmatprep.subr.bf16.mxu0 %v779
    %843 = vmatpush1.bf16.msra.mxu0 %v778
    %844 = vmatprep.subr.bf16.mxu0 %v781
    %845 = vmatpush1.bf16.msra.mxu0 %v780
    %846 = vmatprep.subr.bf16.mxu0 %v783
    %847 = vmatpush1.bf16.msra.mxu0 %v782
    %848 = vmatprep.subr.bf16.mxu0 %v785
    %849 = vmatpush1.bf16.msra.mxu0 %v784
    %850 = vmatprep.subr.bf16.mxu0 %v787
    %851 = vmatpush1.bf16.msra.mxu0 %v786
    %852 = vmatprep.subr.bf16.mxu0 %v789
    %853 = vmatpush1.bf16.msra.mxu0 %v788
    %854 = vmatprep.subr.bf16.mxu0 %v791
    %855 = vmatpush1.bf16.msra.mxu0 %v790
    %856 = vmatprep.subr.bf16.mxu0 %v793
    %857 = vmatpush1.bf16.msra.mxu0 %v792
    %858 = vmatprep.subr.bf16.mxu0 %v795
    %859 = vmatpush1.bf16.msra.mxu0 %v794
    %860 = vmatprep.subr.bf16.mxu0 %v797
    %861 = vmatpush1.bf16.msra.mxu0 %v796
    %862 = vmatprep.subr.bf16.mxu0 %v799
    %863 = vmatpush1.bf16.msra.mxu0 %v798
    %864 = vmatprep.mubr.bf16.mxu0 %v145
    %865 = vmatmul.mubr.bf16.gmra.mrb[0].mxu0 %v144
    %v866 = vpop.f32.mrb[0].mxu0
    %v867 = vadd.f32 0.0, %v866
    %v868 = vpop.f32.mrb[0].mxu0
    %v869 = vadd.f32 0.0, %v868
    %v870 = vpop.f32.mrb[0].mxu0
    %v871 = vadd.f32 0.0, %v870
    %v872 = vpop.f32.mrb[0].mxu0
    %v873 = vadd.f32 0.0, %v872
    %874 = vmatprep.mubr.bf16.mxu0 %v147
    %875 = vmatmul.mubr.bf16.gmra.mrb[0].mxu0 %v146
    %v876 = vpop.f32.mrb[0].mxu0
    %v877 = vadd.f32 0.0, %v876
    %v878 = vpop.f32.mrb[0].mxu0
    %v879 = vadd.f32 0.0, %v878
    %v880 = vpop.f32.mrb[0].mxu0
    %v881 = vadd.f32 0.0, %v880
    %v882 = vpop.f32.mrb[0].mxu0
    %v883 = vadd.f32 0.0, %v882
    %884 = vdwg.mxu0
    %v885 = vadd.f32 %v621, %v867
    %v886 = vadd.f32 %v623, %v869
    %v887 = vadd.f32 %v625, %v871
    %v888 = vadd.f32 %v627, %v873
    %v889 = vadd.f32 %v631, %v877
    %v890 = vadd.f32 %v633, %v879
    %v891 = vadd.f32 %v635, %v881
    %v892 = vadd.f32 %v637, %v883
    %v893 = vld [vmem:[#allocation8] sm:$0x3]
    %v895 = vlaneseq
    %v896 = vshrl.u32 %v895, 7
    %v897 = vsub.s32 0, %v896
    %v898 = vrot.slane %v893, %v897
    %v899 = vlaneseq
    %v900 = vshrl.u32 %v899, 7
    %v901 = vsub.s32 1, %v900
    %v902 = vrot.slane %v893, %v901
    %v905 = vadd.f32 %v885, %v898
    %v906 = vadd.f32 %v886, %v902
    %v907 = vadd.f32 %v887, %v898
    %v908 = vadd.f32 %v888, %v902
    %v909 = vadd.f32 %v889, %v898
    %v910 = vadd.f32 %v890, %v902
    %v911 = vadd.f32 %v891, %v898
    %v912 = vadd.f32 %v892, %v902
    %vm913 = vcmp.ge.f32.partialorder %v905, 0.0
    %vm914 = vcmp.ge.f32.partialorder %v906, 0.0
    %vm915 = vcmp.ge.f32.partialorder %v907, 0.0
    %vm916 = vcmp.ge.f32.partialorder %v908, 0.0
    %vm917 = vcmp.ge.f32.partialorder %v909, 0.0
    %vm918 = vcmp.ge.f32.partialorder %v910, 0.0
    %vm919 = vcmp.ge.f32.partialorder %v911, 0.0
    %vm920 = vcmp.ge.f32.partialorder %v912, 0.0
    %v921 = vmul.f32 %v905, 0.2
    %v922 = vmul.f32 %v906, 0.2
    %v923 = vmul.f32 %v907, 0.2
    %v924 = vmul.f32 %v908, 0.2
    %v925 = vmul.f32 %v909, 0.2
    %v926 = vmul.f32 %v910, 0.2
    %v927 = vmul.f32 %v911, 0.2
    %v928 = vmul.f32 %v912, 0.2
    %v929 = vsel %vm913, %v905, %v921
    %v930 = vsel %vm914, %v906, %v922
    %v931 = vsel %vm915, %v907, %v923
    %v932 = vsel %vm916, %v908, %v924
    %v933 = vsel %vm917, %v909, %v925
    %v934 = vsel %vm918, %v910, %v926
    %v935 = vsel %vm919, %v911, %v927
    %v936 = vsel %vm920, %v912, %v928
    %v937 = vpack.c.bf16 %v931, %v929
    %v938 = vpack.c.bf16 %v932, %v930
    %v939 = vpack.c.bf16 %v935, %v933
    %v940 = vpack.c.bf16 %v936, %v934
    %941 = vst [vmem:[#allocation2] sm:$0xff] %v937
    %942 = vst [vmem:[#allocation2 + $0x8] sm:$0xff] %v938
    %943 = vst [vmem:[#allocation2 + $0x10] sm:$0xff] %v939
    %944 = vst [vmem:[#allocation2 + $0x18] sm:$0xff] %v940
    %v945 = vld [vmem:[#allocation2] sm:$0xff]
    %v946 = vld [vmem:[#allocation2 + $0x8] sm:$0xff]
    %v947 = vld [vmem:[#allocation2 + $0x10] sm:$0xff]
    %v948 = vld [vmem:[#allocation2 + $0x18] sm:$0xff]
    %v950 = vshrl.u32 %v945, 16
    %v953 = vshrl.u32 %v946, 16
    %v956 = vshrl.u32 %v947, 16
    %v959 = vshrl.u32 %v948, 16
    %v965 = vrot.slane %v950, 7
    %v966 = vshll.u32 %v945, 16
    %v968 = vor.u32 %v965, %v966
    %v969 = vrot.slane %v953, 7
    %v970 = vshll.u32 %v946, 16
    %v972 = vor.u32 %v969, %v970
    %v973 = vrot.slane %v956, 7
    %v974 = vshll.u32 %v947, 16
    %v976 = vor.u32 %v973, %v974
    %v977 = vrot.slane %v959, 7
    %v978 = vshll.u32 %v948, 16
    %v980 = vor.u32 %v977, %v978
    %v985 = vsel %vm120, %v950, %v968
    %v986 = vsel %vm120, %v953, %v972
    %v987 = vsel %vm120, %v956, %v976
    %v988 = vsel %vm120, %v959, %v980
    %v989 = vrot.slane %v966, 1
    %v990 = vor.u32 %v950, %v989
    %v991 = vrot.slane %v970, 1
    %v992 = vor.u32 %v953, %v991
    %v993 = vrot.slane %v974, 1
    %v994 = vor.u32 %v956, %v993
    %v995 = vrot.slane %v978, 1
    %v996 = vor.u32 %v959, %v995
    %v1005 = vsel %vm143, %v990, %v966
    %v1006 = vsel %vm143, %v992, %v970
    %v1007 = vsel %vm143, %v994, %v974
    %v1008 = vsel %vm143, %v996, %v978
    %s1009 = scalar_lea.vmem [#allocation6], 768
    %v1010 = vld [vmem:[%s1009] sm:$0xff]
    %v1011 = vld [vmem:[%s1009 + $0x8] sm:$0xff]
    %v1012 = vld [vmem:[%s1009 + $0x10] sm:$0xff]
    %v1013 = vld [vmem:[%s1009 + $0x18] sm:$0xff]
    %v1014 = vld [vmem:[%s1009 + $0x20] sm:$0xff]
    %v1015 = vld [vmem:[%s1009 + $0x28] sm:$0xff]
    %v1016 = vld [vmem:[%s1009 + $0x30] sm:$0xff]
    %v1017 = vld [vmem:[%s1009 + $0x38] sm:$0xff]
    %v1018 = vld [vmem:[%s1009 + $0x40] sm:$0xff]
    %v1019 = vld [vmem:[%s1009 + $0x48] sm:$0xff]
    %v1020 = vld [vmem:[%s1009 + $0x50] sm:$0xff]
    %v1021 = vld [vmem:[%s1009 + $0x58] sm:$0xff]
    %v1022 = vld [vmem:[%s1009 + $0x60] sm:$0xff]
    %v1023 = vld [vmem:[%s1009 + $0x68] sm:$0xff]
    %v1024 = vld [vmem:[%s1009 + $0x70] sm:$0xff]
    %v1025 = vld [vmem:[%s1009 + $0x78] sm:$0xff]
    %v1026 = vld [vmem:[%s1009 + $0x80] sm:$0xff]
    %v1027 = vld [vmem:[%s1009 + $0x88] sm:$0xff]
    %v1028 = vld [vmem:[%s1009 + $0x90] sm:$0xff]
    %v1029 = vld [vmem:[%s1009 + $0x98] sm:$0xff]
    %v1030 = vld [vmem:[%s1009 + $0xa0] sm:$0xff]
    %v1031 = vld [vmem:[%s1009 + $0xa8] sm:$0xff]
    %v1032 = vld [vmem:[%s1009 + $0xb0] sm:$0xff]
    %v1033 = vld [vmem:[%s1009 + $0xb8] sm:$0xff]
    %v1034 = vld [vmem:[%s1009 + $0xc0] sm:$0xff]
    %v1035 = vld [vmem:[%s1009 + $0xc8] sm:$0xff]
    %v1036 = vld [vmem:[%s1009 + $0xd0] sm:$0xff]
    %v1037 = vld [vmem:[%s1009 + $0xd8] sm:$0xff]
    %v1038 = vld [vmem:[%s1009 + $0xe0] sm:$0xff]
    %v1039 = vld [vmem:[%s1009 + $0xe8] sm:$0xff]
    %v1040 = vld [vmem:[%s1009 + $0xf0] sm:$0xff]
    %v1041 = vld [vmem:[%s1009 + $0xf8] sm:$0xff]
    %s1042 = scalar_lea.vmem [#allocation6], 1024
    %v1043 = vld [vmem:[%s1042] sm:$0xff]
    %v1044 = vld [vmem:[%s1042 + $0x8] sm:$0xff]
    %v1045 = vld [vmem:[%s1042 + $0x10] sm:$0xff]
    %v1046 = vld [vmem:[%s1042 + $0x18] sm:$0xff]
    %v1047 = vld [vmem:[%s1042 + $0x20] sm:$0xff]
    %v1048 = vld [vmem:[%s1042 + $0x28] sm:$0xff]
    %v1049 = vld [vmem:[%s1042 + $0x30] sm:$0xff]
    %v1050 = vld [vmem:[%s1042 + $0x38] sm:$0xff]
    %v1051 = vld [vmem:[%s1042 + $0x40] sm:$0xff]
    %v1052 = vld [vmem:[%s1042 + $0x48] sm:$0xff]
    %v1053 = vld [vmem:[%s1042 + $0x50] sm:$0xff]
    %v1054 = vld [vmem:[%s1042 + $0x58] sm:$0xff]
    %v1055 = vld [vmem:[%s1042 + $0x60] sm:$0xff]
    %v1056 = vld [vmem:[%s1042 + $0x68] sm:$0xff]
    %v1057 = vld [vmem:[%s1042 + $0x70] sm:$0xff]
    %v1058 = vld [vmem:[%s1042 + $0x78] sm:$0xff]
    %v1059 = vld [vmem:[%s1042 + $0x80] sm:$0xff]
    %v1060 = vld [vmem:[%s1042 + $0x88] sm:$0xff]
    %v1061 = vld [vmem:[%s1042 + $0x90] sm:$0xff]
    %v1062 = vld [vmem:[%s1042 + $0x98] sm:$0xff]
    %v1063 = vld [vmem:[%s1042 + $0xa0] sm:$0xff]
    %v1064 = vld [vmem:[%s1042 + $0xa8] sm:$0xff]
    %v1065 = vld [vmem:[%s1042 + $0xb0] sm:$0xff]
    %v1066 = vld [vmem:[%s1042 + $0xb8] sm:$0xff]
    %v1067 = vld [vmem:[%s1042 + $0xc0] sm:$0xff]
    %v1068 = vld [vmem:[%s1042 + $0xc8] sm:$0xff]
    %v1069 = vld [vmem:[%s1042 + $0xd0] sm:$0xff]
    %v1070 = vld [vmem:[%s1042 + $0xd8] sm:$0xff]
    %v1071 = vld [vmem:[%s1042 + $0xe0] sm:$0xff]
    %v1072 = vld [vmem:[%s1042 + $0xe8] sm:$0xff]
    %v1073 = vld [vmem:[%s1042 + $0xf0] sm:$0xff]
    %v1074 = vld [vmem:[%s1042 + $0xf8] sm:$0xff]
    %v1107 = vunpack.c.l.b16 %v1043
    %v1108 = vunpack.c.h.b16 %v1043
    %v1109 = vunpack.c.l.b16 %v1044
    %v1110 = vunpack.c.h.b16 %v1044
    %v1111 = vunpack.c.l.b16 %v1045
    %v1112 = vunpack.c.h.b16 %v1045
    %v1113 = vunpack.c.l.b16 %v1046
    %v1114 = vunpack.c.h.b16 %v1046
    %v1115 = vunpack.c.l.b16 %v1047
    %v1116 = vunpack.c.h.b16 %v1047
    %v1117 = vunpack.c.l.b16 %v1048
    %v1118 = vunpack.c.h.b16 %v1048
    %v1119 = vunpack.c.l.b16 %v1049
    %v1120 = vunpack.c.h.b16 %v1049
    %v1121 = vunpack.c.l.b16 %v1050
    %v1122 = vunpack.c.h.b16 %v1050
    %v1123 = vunpack.c.l.b16 %v1051
    %v1124 = vunpack.c.h.b16 %v1051
    %v1125 = vunpack.c.l.b16 %v1052
    %v1126 = vunpack.c.h.b16 %v1052
    %v1127 = vunpack.c.l.b16 %v1053
    %v1128 = vunpack.c.h.b16 %v1053
    %v1129 = vunpack.c.l.b16 %v1054
    %v1130 = vunpack.c.h.b16 %v1054
    %v1131 = vunpack.c.l.b16 %v1055
    %v1132 = vunpack.c.h.b16 %v1055
    %v1133 = vunpack.c.l.b16 %v1056
    %v1134 = vunpack.c.h.b16 %v1056
    %v1135 = vunpack.c.l.b16 %v1057
    %v1136 = vunpack.c.h.b16 %v1057
    %v1137 = vunpack.c.l.b16 %v1058
    %v1138 = vunpack.c.h.b16 %v1058
    %v1139 = vunpack.c.l.b16 %v1059
    %v1140 = vunpack.c.h.b16 %v1059
    %v1141 = vunpack.c.l.b16 %v1060
    %v1142 = vunpack.c.h.b16 %v1060
    %v1143 = vunpack.c.l.b16 %v1061
    %v1144 = vunpack.c.h.b16 %v1061
    %v1145 = vunpack.c.l.b16 %v1062
    %v1146 = vunpack.c.h.b16 %v1062
    %v1147 = vunpack.c.l.b16 %v1063
    %v1148 = vunpack.c.h.b16 %v1063
    %v1149 = vunpack.c.l.b16 %v1064
    %v1150 = vunpack.c.h.b16 %v1064
    %v1151 = vunpack.c.l.b16 %v1065
    %v1152 = vunpack.c.h.b16 %v1065
    %v1153 = vunpack.c.l.b16 %v1066
    %v1154 = vunpack.c.h.b16 %v1066
    %v1155 = vunpack.c.l.b16 %v1067
    %v1156 = vunpack.c.h.b16 %v1067
    %v1157 = vunpack.c.l.b16 %v1068
    %v1158 = vunpack.c.h.b16 %v1068
    %v1159 = vunpack.c.l.b16 %v1069
    %v1160 = vunpack.c.h.b16 %v1069
    %v1161 = vunpack.c.l.b16 %v1070
    %v1162 = vunpack.c.h.b16 %v1070
    %v1163 = vunpack.c.l.b16 %v1071
    %v1164 = vunpack.c.h.b16 %v1071
    %v1165 = vunpack.c.l.b16 %v1072
    %v1166 = vunpack.c.h.b16 %v1072
    %v1167 = vunpack.c.l.b16 %v1073
    %v1168 = vunpack.c.h.b16 %v1073
    %v1169 = vunpack.c.l.b16 %v1074
    %v1170 = vunpack.c.h.b16 %v1074
    %v1171 = vpack.c.b16 %v1109, %v1107
    %v1172 = vpack.c.b16 %v1110, %v1108
    %v1173 = vpack.c.b16 %v1113, %v1111
    %v1174 = vpack.c.b16 %v1114, %v1112
    %v1175 = vpack.c.b16 %v1117, %v1115
    %v1176 = vpack.c.b16 %v1118, %v1116
    %v1177 = vpack.c.b16 %v1121, %v1119
    %v1178 = vpack.c.b16 %v1122, %v1120
    %v1179 = vpack.c.b16 %v1125, %v1123
    %v1180 = vpack.c.b16 %v1126, %v1124
    %v1181 = vpack.c.b16 %v1129, %v1127
    %v1182 = vpack.c.b16 %v1130, %v1128
    %v1183 = vpack.c.b16 %v1133, %v1131
    %v1184 = vpack.c.b16 %v1134, %v1132
    %v1185 = vpack.c.b16 %v1137, %v1135
    %v1186 = vpack.c.b16 %v1138, %v1136
    %v1187 = vpack.c.b16 %v1141, %v1139
    %v1188 = vpack.c.b16 %v1142, %v1140
    %v1189 = vpack.c.b16 %v1145, %v1143
    %v1190 = vpack.c.b16 %v1146, %v1144
    %v1191 = vpack.c.b16 %v1149, %v1147
    %v1192 = vpack.c.b16 %v1150, %v1148
    %v1193 = vpack.c.b16 %v1153, %v1151
    %v1194 = vpack.c.b16 %v1154, %v1152
    %v1195 = vpack.c.b16 %v1157, %v1155
    %v1196 = vpack.c.b16 %v1158, %v1156
    %v1197 = vpack.c.b16 %v1161, %v1159
    %v1198 = vpack.c.b16 %v1162, %v1160
    %v1199 = vpack.c.b16 %v1165, %v1163
    %v1200 = vpack.c.b16 %v1166, %v1164
    %v1201 = vpack.c.b16 %v1169, %v1167
    %v1202 = vpack.c.b16 %v1170, %v1168
    %1235 = vmatprep.subr.bf16.mxu0 %v1172
    %1236 = vmatpush1.bf16.msra.mxu0 %v1171
    %1237 = vmatprep.subr.bf16.mxu0 %v1174
    %1238 = vmatpush1.bf16.msra.mxu0 %v1173
    %1239 = vmatprep.subr.bf16.mxu0 %v1176
    %1240 = vmatpush1.bf16.msra.mxu0 %v1175
    %1241 = vmatprep.subr.bf16.mxu0 %v1178
    %1242 = vmatpush1.bf16.msra.mxu0 %v1177
    %1243 = vmatprep.subr.bf16.mxu0 %v1180
    %1244 = vmatpush1.bf16.msra.mxu0 %v1179
    %1245 = vmatprep.subr.bf16.mxu0 %v1182
    %1246 = vmatpush1.bf16.msra.mxu0 %v1181
    %1247 = vmatprep.subr.bf16.mxu0 %v1184
    %1248 = vmatpush1.bf16.msra.mxu0 %v1183
    %1249 = vmatprep.subr.bf16.mxu0 %v1186
    %1250 = vmatpush1.bf16.msra.mxu0 %v1185
    %1251 = vmatprep.subr.bf16.mxu0 %v1188
    %1252 = vmatpush1.bf16.msra.mxu0 %v1187
    %1253 = vmatprep.subr.bf16.mxu0 %v1190
    %1254 = vmatpush1.bf16.msra.mxu0 %v1189
    %1255 = vmatprep.subr.bf16.mxu0 %v1192
    %1256 = vmatpush1.bf16.msra.mxu0 %v1191
    %1257 = vmatprep.subr.bf16.mxu0 %v1194
    %1258 = vmatpush1.bf16.msra.mxu0 %v1193
    %1259 = vmatprep.subr.bf16.mxu0 %v1196
    %1260 = vmatpush1.bf16.msra.mxu0 %v1195
    %1261 = vmatprep.subr.bf16.mxu0 %v1198
    %1262 = vmatpush1.bf16.msra.mxu0 %v1197
    %1263 = vmatprep.subr.bf16.mxu0 %v1200
    %1264 = vmatpush1.bf16.msra.mxu0 %v1199
    %1265 = vmatprep.subr.bf16.mxu0 %v1202
    %1266 = vmatpush1.bf16.msra.mxu0 %v1201
    %1267 = vmatprep.mubr.bf16.mxu0 %v946
    %1268 = vmatmul.mubr.bf16.gmra.mrb[0].mxu0 %v945
    %v1269 = vpop.f32.mrb[0].mxu0
    %v1270 = vadd.f32 0.0, %v1269
    %v1271 = vpop.f32.mrb[0].mxu0
    %v1272 = vadd.f32 0.0, %v1271
    %v1273 = vpop.f32.mrb[0].mxu0
    %v1274 = vadd.f32 0.0, %v1273
    %v1275 = vpop.f32.mrb[0].mxu0
    %v1276 = vadd.f32 0.0, %v1275
    %1277 = vmatprep.mubr.bf16.mxu0 %v948
    %1278 = vmatmul.mubr.bf16.gmra.mrb[0].mxu0 %v947
    %v1279 = vpop.f32.mrb[0].mxu0
    %v1280 = vadd.f32 0.0, %v1279
    %v1281 = vpop.f32.mrb[0].mxu0
    %v1282 = vadd.f32 0.0, %v1281
    %v1283 = vpop.f32.mrb[0].mxu0
    %v1284 = vadd.f32 0.0, %v1283
    %v1285 = vpop.f32.mrb[0].mxu0
    %v1286 = vadd.f32 0.0, %v1285
    %1287 = vdwg.mxu0
    %v1320 = vunpack.c.l.b16 %v1010
    %v1321 = vunpack.c.h.b16 %v1010
    %v1322 = vunpack.c.l.b16 %v1011
    %v1323 = vunpack.c.h.b16 %v1011
    %v1324 = vunpack.c.l.b16 %v1012
    %v1325 = vunpack.c.h.b16 %v1012
    %v1326 = vunpack.c.l.b16 %v1013
    %v1327 = vunpack.c.h.b16 %v1013
    %v1328 = vunpack.c.l.b16 %v1014
    %v1329 = vunpack.c.h.b16 %v1014
    %v1330 = vunpack.c.l.b16 %v1015
    %v1331 = vunpack.c.h.b16 %v1015
    %v1332 = vunpack.c.l.b16 %v1016
    %v1333 = vunpack.c.h.b16 %v1016
    %v1334 = vunpack.c.l.b16 %v1017
    %v1335 = vunpack.c.h.b16 %v1017
    %v1336 = vunpack.c.l.b16 %v1018
    %v1337 = vunpack.c.h.b16 %v1018
    %v1338 = vunpack.c.l.b16 %v1019
    %v1339 = vunpack.c.h.b16 %v1019
    %v1340 = vunpack.c.l.b16 %v1020
    %v1341 = vunpack.c.h.b16 %v1020
    %v1342 = vunpack.c.l.b16 %v1021
    %v1343 = vunpack.c.h.b16 %v1021
    %v1344 = vunpack.c.l.b16 %v1022
    %v1345 = vunpack.c.h.b16 %v1022
    %v1346 = vunpack.c.l.b16 %v1023
    %v1347 = vunpack.c.h.b16 %v1023
    %v1348 = vunpack.c.l.b16 %v1024
    %v1349 = vunpack.c.h.b16 %v1024
    %v1350 = vunpack.c.l.b16 %v1025
    %v1351 = vunpack.c.h.b16 %v1025
    %v1352 = vunpack.c.l.b16 %v1026
    %v1353 = vunpack.c.h.b16 %v1026
    %v1354 = vunpack.c.l.b16 %v1027
    %v1355 = vunpack.c.h.b16 %v1027
    %v1356 = vunpack.c.l.b16 %v1028
    %v1357 = vunpack.c.h.b16 %v1028
    %v1358 = vunpack.c.l.b16 %v1029
    %v1359 = vunpack.c.h.b16 %v1029
    %v1360 = vunpack.c.l.b16 %v1030
    %v1361 = vunpack.c.h.b16 %v1030
    %v1362 = vunpack.c.l.b16 %v1031
    %v1363 = vunpack.c.h.b16 %v1031
    %v1364 = vunpack.c.l.b16 %v1032
    %v1365 = vunpack.c.h.b16 %v1032
    %v1366 = vunpack.c.l.b16 %v1033
    %v1367 = vunpack.c.h.b16 %v1033
    %v1368 = vunpack.c.l.b16 %v1034
    %v1369 = vunpack.c.h.b16 %v1034
    %v1370 = vunpack.c.l.b16 %v1035
    %v1371 = vunpack.c.h.b16 %v1035
    %v1372 = vunpack.c.l.b16 %v1036
    %v1373 = vunpack.c.h.b16 %v1036
    %v1374 = vunpack.c.l.b16 %v1037
    %v1375 = vunpack.c.h.b16 %v1037
    %v1376 = vunpack.c.l.b16 %v1038
    %v1377 = vunpack.c.h.b16 %v1038
    %v1378 = vunpack.c.l.b16 %v1039
    %v1379 = vunpack.c.h.b16 %v1039
    %v1380 = vunpack.c.l.b16 %v1040
    %v1381 = vunpack.c.h.b16 %v1040
    %v1382 = vunpack.c.l.b16 %v1041
    %v1383 = vunpack.c.h.b16 %v1041
    %v1384 = vpack.c.b16 %v1322, %v1320
    %v1385 = vpack.c.b16 %v1323, %v1321
    %v1386 = vpack.c.b16 %v1326, %v1324
    %v1387 = vpack.c.b16 %v1327, %v1325
    %v1388 = vpack.c.b16 %v1330, %v1328
    %v1389 = vpack.c.b16 %v1331, %v1329
    %v1390 = vpack.c.b16 %v1334, %v1332
    %v1391 = vpack.c.b16 %v1335, %v1333
    %v1392 = vpack.c.b16 %v1338, %v1336
    %v1393 = vpack.c.b16 %v1339, %v1337
    %v1394 = vpack.c.b16 %v1342, %v1340
    %v1395 = vpack.c.b16 %v1343, %v1341
    %v1396 = vpack.c.b16 %v1346, %v1344
    %v1397 = vpack.c.b16 %v1347, %v1345
    %v1398 = vpack.c.b16 %v1350, %v1348
    %v1399 = vpack.c.b16 %v1351, %v1349
    %v1400 = vpack.c.b16 %v1354, %v1352
    %v1401 = vpack.c.b16 %v1355, %v1353
    %v1402 = vpack.c.b16 %v1358, %v1356
    %v1403 = vpack.c.b16 %v1359, %v1357
    %v1404 = vpack.c.b16 %v1362, %v1360
    %v1405 = vpack.c.b16 %v1363, %v1361
    %v1406 = vpack.c.b16 %v1366, %v1364
    %v1407 = vpack.c.b16 %v1367, %v1365
    %v1408 = vpack.c.b16 %v1370, %v1368
    %v1409 = vpack.c.b16 %v1371, %v1369
    %v1410 = vpack.c.b16 %v1374, %v1372
    %v1411 = vpack.c.b16 %v1375, %v1373
    %v1412 = vpack.c.b16 %v1378, %v1376
    %v1413 = vpack.c.b16 %v1379, %v1377
    %v1414 = vpack.c.b16 %v1382, %v1380
    %v1415 = vpack.c.b16 %v1383, %v1381
    %1448 = vmatprep.subr.bf16.mxu0 %v1385
    %1449 = vmatpush1.bf16.msra.mxu0 %v1384
    %1450 = vmatprep.subr.bf16.mxu0 %v1387
    %1451 = vmatpush1.bf16.msra.mxu0 %v1386
    %1452 = vmatprep.subr.bf16.mxu0 %v1389
    %1453 = vmatpush1.bf16.msra.mxu0 %v1388
    %1454 = vmatprep.subr.bf16.mxu0 %v1391
    %1455 = vmatpush1.bf16.msra.mxu0 %v1390
    %1456 = vmatprep.subr.bf16.mxu0 %v1393
    %1457 = vmatpush1.bf16.msra.mxu0 %v1392
    %1458 = vmatprep.subr.bf16.mxu0 %v1395
    %1459 = vmatpush1.bf16.msra.mxu0 %v1394
    %1460 = vmatprep.subr.bf16.mxu0 %v1397
    %1461 = vmatpush1.bf16.msra.mxu0 %v1396
    %1462 = vmatprep.subr.bf16.mxu0 %v1399
    %1463 = vmatpush1.bf16.msra.mxu0 %v1398
    %1464 = vmatprep.subr.bf16.mxu0 %v1401
    %1465 = vmatpush1.bf16.msra.mxu0 %v1400
    %1466 = vmatprep.subr.bf16.mxu0 %v1403
    %1467 = vmatpush1.bf16.msra.mxu0 %v1402
    %1468 = vmatprep.subr.bf16.mxu0 %v1405
    %1469 = vmatpush1.bf16.msra.mxu0 %v1404
    %1470 = vmatprep.subr.bf16.mxu0 %v1407
    %1471 = vmatpush1.bf16.msra.mxu0 %v1406
    %1472 = vmatprep.subr.bf16.mxu0 %v1409
    %1473 = vmatpush1.bf16.msra.mxu0 %v1408
    %1474 = vmatprep.subr.bf16.mxu0 %v1411
    %1475 = vmatpush1.bf16.msra.mxu0 %v1410
    %1476 = vmatprep.subr.bf16.mxu0 %v1413
    %1477 = vmatpush1.bf16.msra.mxu0 %v1412
    %1478 = vmatprep.subr.bf16.mxu0 %v1415
    %1479 = vmatpush1.bf16.msra.mxu0 %v1414
    %1480 = vmatprep.mubr.bf16.mxu0 %v986
    %1481 = vmatmul.mubr.bf16.gmra.mrb[0].mxu0 %v985
    %v1482 = vpop.f32.mrb[0].mxu0
    %v1483 = vadd.f32 %v1270, %v1482
    %v1484 = vpop.f32.mrb[0].mxu0
    %v1485 = vadd.f32 %v1272, %v1484
    %v1486 = vpop.f32.mrb[0].mxu0
    %v1487 = vadd.f32 %v1274, %v1486
    %v1488 = vpop.f32.mrb[0].mxu0
    %v1489 = vadd.f32 %v1276, %v1488
    %1490 = vmatprep.mubr.bf16.mxu0 %v988
    %1491 = vmatmul.mubr.bf16.gmra.mrb[0].mxu0 %v987
    %v1492 = vpop.f32.mrb[0].mxu0
    %v1493 = vadd.f32 %v1280, %v1492
    %v1494 = vpop.f32.mrb[0].mxu0
    %v1495 = vadd.f32 %v1282, %v1494
    %v1496 = vpop.f32.mrb[0].mxu0
    %v1497 = vadd.f32 %v1284, %v1496
    %v1498 = vpop.f32.mrb[0].mxu0
    %v1499 = vadd.f32 %v1286, %v1498
    %1500 = vdwg.mxu0
    %s1501 = scalar_lea.vmem [#allocation6], 1280
    %v1502 = vld [vmem:[%s1501] sm:$0xff]
    %v1503 = vld [vmem:[%s1501 + $0x8] sm:$0xff]
    %v1504 = vld [vmem:[%s1501 + $0x10] sm:$0xff]
    %v1505 = vld [vmem:[%s1501 + $0x18] sm:$0xff]
    %v1506 = vld [vmem:[%s1501 + $0x20] sm:$0xff]
    %v1507 = vld [vmem:[%s1501 + $0x28] sm:$0xff]
    %v1508 = vld [vmem:[%s1501 + $0x30] sm:$0xff]
    %v1509 = vld [vmem:[%s1501 + $0x38] sm:$0xff]
    %v1510 = vld [vmem:[%s1501 + $0x40] sm:$0xff]
    %v1511 = vld [vmem:[%s1501 + $0x48] sm:$0xff]
    %v1512 = vld [vmem:[%s1501 + $0x50] sm:$0xff]
    %v1513 = vld [vmem:[%s1501 + $0x58] sm:$0xff]
    %v1514 = vld [vmem:[%s1501 + $0x60] sm:$0xff]
    %v1515 = vld [vmem:[%s1501 + $0x68] sm:$0xff]
    %v1516 = vld [vmem:[%s1501 + $0x70] sm:$0xff]
    %v1517 = vld [vmem:[%s1501 + $0x78] sm:$0xff]
    %v1518 = vld [vmem:[%s1501 + $0x80] sm:$0xff]
    %v1519 = vld [vmem:[%s1501 + $0x88] sm:$0xff]
    %v1520 = vld [vmem:[%s1501 + $0x90] sm:$0xff]
    %v1521 = vld [vmem:[%s1501 + $0x98] sm:$0xff]
    %v1522 = vld [vmem:[%s1501 + $0xa0] sm:$0xff]
    %v1523 = vld [vmem:[%s1501 + $0xa8] sm:$0xff]
    %v1524 = vld [vmem:[%s1501 + $0xb0] sm:$0xff]
    %v1525 = vld [vmem:[%s1501 + $0xb8] sm:$0xff]
    %v1526 = vld [vmem:[%s1501 + $0xc0] sm:$0xff]
    %v1527 = vld [vmem:[%s1501 + $0xc8] sm:$0xff]
    %v1528 = vld [vmem:[%s1501 + $0xd0] sm:$0xff]
    %v1529 = vld [vmem:[%s1501 + $0xd8] sm:$0xff]
    %v1530 = vld [vmem:[%s1501 + $0xe0] sm:$0xff]
    %v1531 = vld [vmem:[%s1501 + $0xe8] sm:$0xff]
    %v1532 = vld [vmem:[%s1501 + $0xf0] sm:$0xff]
    %v1533 = vld [vmem:[%s1501 + $0xf8] sm:$0xff]
    %v1566 = vunpack.c.l.b16 %v1502
    %v1567 = vunpack.c.h.b16 %v1502
    %v1568 = vunpack.c.l.b16 %v1503
    %v1569 = vunpack.c.h.b16 %v1503
    %v1570 = vunpack.c.l.b16 %v1504
    %v1571 = vunpack.c.h.b16 %v1504
    %v1572 = vunpack.c.l.b16 %v1505
    %v1573 = vunpack.c.h.b16 %v1505
    %v1574 = vunpack.c.l.b16 %v1506
    %v1575 = vunpack.c.h.b16 %v1506
    %v1576 = vunpack.c.l.b16 %v1507
    %v1577 = vunpack.c.h.b16 %v1507
    %v1578 = vunpack.c.l.b16 %v1508
    %v1579 = vunpack.c.h.b16 %v1508
    %v1580 = vunpack.c.l.b16 %v1509
    %v1581 = vunpack.c.h.b16 %v1509
    %v1582 = vunpack.c.l.b16 %v1510
    %v1583 = vunpack.c.h.b16 %v1510
    %v1584 = vunpack.c.l.b16 %v1511
    %v1585 = vunpack.c.h.b16 %v1511
    %v1586 = vunpack.c.l.b16 %v1512
    %v1587 = vunpack.c.h.b16 %v1512
    %v1588 = vunpack.c.l.b16 %v1513
    %v1589 = vunpack.c.h.b16 %v1513
    %v1590 = vunpack.c.l.b16 %v1514
    %v1591 = vunpack.c.h.b16 %v1514
    %v1592 = vunpack.c.l.b16 %v1515
    %v1593 = vunpack.c.h.b16 %v1515
    %v1594 = vunpack.c.l.b16 %v1516
    %v1595 = vunpack.c.h.b16 %v1516
    %v1596 = vunpack.c.l.b16 %v1517
    %v1597 = vunpack.c.h.b16 %v1517
    %v1598 = vunpack.c.l.b16 %v1518
    %v1599 = vunpack.c.h.b16 %v1518
    %v1600 = vunpack.c.l.b16 %v1519
    %v1601 = vunpack.c.h.b16 %v1519
    %v1602 = vunpack.c.l.b16 %v1520
    %v1603 = vunpack.c.h.b16 %v1520
    %v1604 = vunpack.c.l.b16 %v1521
    %v1605 = vunpack.c.h.b16 %v1521
    %v1606 = vunpack.c.l.b16 %v1522
    %v1607 = vunpack.c.h.b16 %v1522
    %v1608 = vunpack.c.l.b16 %v1523
    %v1609 = vunpack.c.h.b16 %v1523
    %v1610 = vunpack.c.l.b16 %v1524
    %v1611 = vunpack.c.h.b16 %v1524
    %v1612 = vunpack.c.l.b16 %v1525
    %v1613 = vunpack.c.h.b16 %v1525
    %v1614 = vunpack.c.l.b16 %v1526
    %v1615 = vunpack.c.h.b16 %v1526
    %v1616 = vunpack.c.l.b16 %v1527
    %v1617 = vunpack.c.h.b16 %v1527
    %v1618 = vunpack.c.l.b16 %v1528
    %v1619 = vunpack.c.h.b16 %v1528
    %v1620 = vunpack.c.l.b16 %v1529
    %v1621 = vunpack.c.h.b16 %v1529
    %v1622 = vunpack.c.l.b16 %v1530
    %v1623 = vunpack.c.h.b16 %v1530
    %v1624 = vunpack.c.l.b16 %v1531
    %v1625 = vunpack.c.h.b16 %v1531
    %v1626 = vunpack.c.l.b16 %v1532
    %v1627 = vunpack.c.h.b16 %v1532
    %v1628 = vunpack.c.l.b16 %v1533
    %v1629 = vunpack.c.h.b16 %v1533
    %v1630 = vpack.c.b16 %v1568, %v1566
    %v1631 = vpack.c.b16 %v1569, %v1567
    %v1632 = vpack.c.b16 %v1572, %v1570
    %v1633 = vpack.c.b16 %v1573, %v1571
    %v1634 = vpack.c.b16 %v1576, %v1574
    %v1635 = vpack.c.b16 %v1577, %v1575
    %v1636 = vpack.c.b16 %v1580, %v1578
    %v1637 = vpack.c.b16 %v1581, %v1579
    %v1638 = vpack.c.b16 %v1584, %v1582
    %v1639 = vpack.c.b16 %v1585, %v1583
    %v1640 = vpack.c.b16 %v1588, %v1586
    %v1641 = vpack.c.b16 %v1589, %v1587
    %v1642 = vpack.c.b16 %v1592, %v1590
    %v1643 = vpack.c.b16 %v1593, %v1591
    %v1644 = vpack.c.b16 %v1596, %v1594
    %v1645 = vpack.c.b16 %v1597, %v1595
    %v1646 = vpack.c.b16 %v1600, %v1598
    %v1647 = vpack.c.b16 %v1601, %v1599
    %v1648 = vpack.c.b16 %v1604, %v1602
    %v1649 = vpack.c.b16 %v1605, %v1603
    %v1650 = vpack.c.b16 %v1608, %v1606
    %v1651 = vpack.c.b16 %v1609, %v1607
    %v1652 = vpack.c.b16 %v1612, %v1610
    %v1653 = vpack.c.b16 %v1613, %v1611
    %v1654 = vpack.c.b16 %v1616, %v1614
    %v1655 = vpack.c.b16 %v1617, %v1615
    %v1656 = vpack.c.b16 %v1620, %v1618
    %v1657 = vpack.c.b16 %v1621, %v1619
    %v1658 = vpack.c.b16 %v1624, %v1622
    %v1659 = vpack.c.b16 %v1625, %v1623
    %v1660 = vpack.c.b16 %v1628, %v1626
    %v1661 = vpack.c.b16 %v1629, %v1627
    %1694 = vmatprep.subr.bf16.mxu0 %v1631
    %1695 = vmatpush1.bf16.msra.mxu0 %v1630
    %1696 = vmatprep.subr.bf16.mxu0 %v1633
    %1697 = vmatpush1.bf16.msra.mxu0 %v1632
    %1698 = vmatprep.subr.bf16.mxu0 %v1635
    %1699 = vmatpush1.bf16.msra.mxu0 %v1634
    %1700 = vmatprep.subr.bf16.mxu0 %v1637
    %1701 = vmatpush1.bf16.msra.mxu0 %v1636
    %1702 = vmatprep.subr.bf16.mxu0 %v1639
    %1703 = vmatpush1.bf16.msra.mxu0 %v1638
    %1704 = vmatprep.subr.bf16.mxu0 %v1641
    %1705 = vmatpush1.bf16.msra.mxu0 %v1640
    %1706 = vmatprep.subr.bf16.mxu0 %v1643
    %1707 = vmatpush1.bf16.msra.mxu0 %v1642
    %1708 = vmatprep.subr.bf16.mxu0 %v1645
    %1709 = vmatpush1.bf16.msra.mxu0 %v1644
    %1710 = vmatprep.subr.bf16.mxu0 %v1647
    %1711 = vmatpush1.bf16.msra.mxu0 %v1646
    %1712 = vmatprep.subr.bf16.mxu0 %v1649
    %1713 = vmatpush1.bf16.msra.mxu0 %v1648
    %1714 = vmatprep.subr.bf16.mxu0 %v1651
    %1715 = vmatpush1.bf16.msra.mxu0 %v1650
    %1716 = vmatprep.subr.bf16.mxu0 %v1653
    %1717 = vmatpush1.bf16.msra.mxu0 %v1652
    %1718 = vmatprep.subr.bf16.mxu0 %v1655
    %1719 = vmatpush1.bf16.msra.mxu0 %v1654
    %1720 = vmatprep.subr.bf16.mxu0 %v1657
    %1721 = vmatpush1.bf16.msra.mxu0 %v1656
    %1722 = vmatprep.subr.bf16.mxu0 %v1659
    %1723 = vmatpush1.bf16.msra.mxu0 %v1658
    %1724 = vmatprep.subr.bf16.mxu0 %v1661
    %1725 = vmatpush1.bf16.msra.mxu0 %v1660
    %1726 = vmatprep.mubr.bf16.mxu0 %v1006
    %1727 = vmatmul.mubr.bf16.gmra.mrb[0].mxu0 %v1005
    %v1728 = vpop.f32.mrb[0].mxu0
    %v1729 = vadd.f32 0.0, %v1728
    %v1730 = vpop.f32.mrb[0].mxu0
    %v1731 = vadd.f32 0.0, %v1730
    %v1732 = vpop.f32.mrb[0].mxu0
    %v1733 = vadd.f32 0.0, %v1732
    %v1734 = vpop.f32.mrb[0].mxu0
    %v1735 = vadd.f32 0.0, %v1734
    %1736 = vmatprep.mubr.bf16.mxu0 %v1008
    %1737 = vmatmul.mubr.bf16.gmra.mrb[0].mxu0 %v1007
    %v1738 = vpop.f32.mrb[0].mxu0
    %v1739 = vadd.f32 0.0, %v1738
    %v1740 = vpop.f32.mrb[0].mxu0
    %v1741 = vadd.f32 0.0, %v1740
    %v1742 = vpop.f32.mrb[0].mxu0
    %v1743 = vadd.f32 0.0, %v1742
    %v1744 = vpop.f32.mrb[0].mxu0
    %v1745 = vadd.f32 0.0, %v1744
    %1746 = vdwg.mxu0
    %v1747 = vadd.f32 %v1483, %v1729
    %v1748 = vadd.f32 %v1485, %v1731
    %v1749 = vadd.f32 %v1487, %v1733
    %v1750 = vadd.f32 %v1489, %v1735
    %v1751 = vadd.f32 %v1493, %v1739
    %v1752 = vadd.f32 %v1495, %v1741
    %v1753 = vadd.f32 %v1497, %v1743
    %v1754 = vadd.f32 %v1499, %v1745
    %s1755 = scalar_lea.vmem [#allocation8], 2
    %v1756 = vld [vmem:[%s1755] sm:$0x3]
    %v1758 = vlaneseq
    %v1759 = vshrl.u32 %v1758, 7
    %v1760 = vsub.s32 0, %v1759
    %v1761 = vrot.slane %v1756, %v1760
    %v1762 = vlaneseq
    %v1763 = vshrl.u32 %v1762, 7
    %v1764 = vsub.s32 1, %v1763
    %v1765 = vrot.slane %v1756, %v1764
    %v1768 = vadd.f32 %v1747, %v1761
    %v1769 = vadd.f32 %v1748, %v1765
    %v1770 = vadd.f32 %v1749, %v1761
    %v1771 = vadd.f32 %v1750, %v1765
    %v1772 = vadd.f32 %v1751, %v1761
    %v1773 = vadd.f32 %v1752, %v1765
    %v1774 = vadd.f32 %v1753, %v1761
    %v1775 = vadd.f32 %v1754, %v1765
    %vm1776 = vcmp.ge.f32.partialorder %v1768, 0.0
    %vm1777 = vcmp.ge.f32.partialorder %v1769, 0.0
    %vm1778 = vcmp.ge.f32.partialorder %v1770, 0.0
    %vm1779 = vcmp.ge.f32.partialorder %v1771, 0.0
    %vm1780 = vcmp.ge.f32.partialorder %v1772, 0.0
    %vm1781 = vcmp.ge.f32.partialorder %v1773, 0.0
    %vm1782 = vcmp.ge.f32.partialorder %v1774, 0.0
    %vm1783 = vcmp.ge.f32.partialorder %v1775, 0.0
    %v1784 = vmul.f32 %v1768, 0.2
    %v1785 = vmul.f32 %v1769, 0.2
    %v1786 = vmul.f32 %v1770, 0.2
    %v1787 = vmul.f32 %v1771, 0.2
    %v1788 = vmul.f32 %v1772, 0.2
    %v1789 = vmul.f32 %v1773, 0.2
    %v1790 = vmul.f32 %v1774, 0.2
    %v1791 = vmul.f32 %v1775, 0.2
    %v1792 = vsel %vm1776, %v1768, %v1784
    %v1793 = vsel %vm1777, %v1769, %v1785
    %v1794 = vsel %vm1778, %v1770, %v1786
    %v1795 = vsel %vm1779, %v1771, %v1787
    %v1796 = vsel %vm1780, %v1772, %v1788
    %v1797 = vsel %vm1781, %v1773, %v1789
    %v1798 = vsel %vm1782, %v1774, %v1790
    %v1799 = vsel %vm1783, %v1775, %v1791
    %v1800 = vpack.c.bf16 %v1794, %v1792
    %v1801 = vpack.c.bf16 %v1795, %v1793
    %v1802 = vpack.c.bf16 %v1798, %v1796
    %v1803 = vpack.c.bf16 %v1799, %v1797
    %1804 = vst [vmem:[#allocation2] sm:$0xff] %v1800
    %1805 = vst [vmem:[#allocation2 + $0x8] sm:$0xff] %v1801
    %1806 = vst [vmem:[#allocation2 + $0x10] sm:$0xff] %v1802
    %1807 = vst [vmem:[#allocation2 + $0x18] sm:$0xff] %v1803
    %v1808 = vld [vmem:[#allocation2] sm:$0xff]
    %v1809 = vld [vmem:[#allocation2 + $0x8] sm:$0xff]
    %v1810 = vld [vmem:[#allocation2 + $0x10] sm:$0xff]
    %v1811 = vld [vmem:[#allocation2 + $0x18] sm:$0xff]
    %v1813 = vshrl.u32 %v1808, 16
    %v1816 = vshrl.u32 %v1809, 16
    %v1819 = vshrl.u32 %v1810, 16
    %v1822 = vshrl.u32 %v1811, 16
    %v1828 = vrot.slane %v1813, 7
    %v1829 = vshll.u32 %v1808, 16
    %v1831 = vor.u32 %v1828, %v1829
    %v1832 = vrot.slane %v1816, 7
    %v1833 = vshll.u32 %v1809, 16
    %v1835 = vor.u32 %v1832, %v1833
    %v1836 = vrot.slane %v1819, 7
    %v1837 = vshll.u32 %v1810, 16
    %v1839 = vor.u32 %v1836, %v1837
    %v1840 = vrot.slane %v1822, 7
    %v1841 = vshll.u32 %v1811, 16
    %v1843 = vor.u32 %v1840, %v1841
    %v1848 = vsel %vm120, %v1813, %v1831
    %v1849 = vsel %vm120, %v1816, %v1835
    %v1850 = vsel %vm120, %v1819, %v1839
    %v1851 = vsel %vm120, %v1822, %v1843
    %v1852 = vrot.slane %v1829, 1
    %v1853 = vor.u32 %v1813, %v1852
    %v1854 = vrot.slane %v1833, 1
    %v1855 = vor.u32 %v1816, %v1854
    %v1856 = vrot.slane %v1837, 1
    %v1857 = vor.u32 %v1819, %v1856
    %v1858 = vrot.slane %v1841, 1
    %v1859 = vor.u32 %v1822, %v1858
    %v1868 = vsel %vm143, %v1853, %v1829
    %v1869 = vsel %vm143, %v1855, %v1833
    %v1870 = vsel %vm143, %v1857, %v1837
    %v1871 = vsel %vm143, %v1859, %v1841
    %s1872 = scalar_lea.vmem [#allocation6], 1536
    %v1873 = vld [vmem:[%s1872] sm:$0xff]
    %v1874 = vld [vmem:[%s1872 + $0x8] sm:$0xff]
    %v1875 = vld [vmem:[%s1872 + $0x10] sm:$0xff]
    %v1876 = vld [vmem:[%s1872 + $0x18] sm:$0xff]
    %v1877 = vld [vmem:[%s1872 + $0x20] sm:$0xff]
    %v1878 = vld [vmem:[%s1872 + $0x28] sm:$0xff]
    %v1879 = vld [vmem:[%s1872 + $0x30] sm:$0xff]
    %v1880 = vld [vmem:[%s1872 + $0x38] sm:$0xff]
    %v1881 = vld [vmem:[%s1872 + $0x40] sm:$0xff]
    %v1882 = vld [vmem:[%s1872 + $0x48] sm:$0xff]
    %v1883 = vld [vmem:[%s1872 + $0x50] sm:$0xff]
    %v1884 = vld [vmem:[%s1872 + $0x58] sm:$0xff]
    %v1885 = vld [vmem:[%s1872 + $0x60] sm:$0xff]
    %v1886 = vld [vmem:[%s1872 + $0x68] sm:$0xff]
    %v1887 = vld [vmem:[%s1872 + $0x70] sm:$0xff]
    %v1888 = vld [vmem:[%s1872 + $0x78] sm:$0xff]
    %v1889 = vld [vmem:[%s1872 + $0x80] sm:$0xff]
    %v1890 = vld [vmem:[%s1872 + $0x88] sm:$0xff]
    %v1891 = vld [vmem:[%s1872 + $0x90] sm:$0xff]
    %v1892 = vld [vmem:[%s1872 + $0x98] sm:$0xff]
    %v1893 = vld [vmem:[%s1872 + $0xa0] sm:$0xff]
    %v1894 = vld [vmem:[%s1872 + $0xa8] sm:$0xff]
    %v1895 = vld [vmem:[%s1872 + $0xb0] sm:$0xff]
    %v1896 = vld [vmem:[%s1872 + $0xb8] sm:$0xff]
    %v1897 = vld [vmem:[%s1872 + $0xc0] sm:$0xff]
    %v1898 = vld [vmem:[%s1872 + $0xc8] sm:$0xff]
    %v1899 = vld [vmem:[%s1872 + $0xd0] sm:$0xff]
    %v1900 = vld [vmem:[%s1872 + $0xd8] sm:$0xff]
    %v1901 = vld [vmem:[%s1872 + $0xe0] sm:$0xff]
    %v1902 = vld [vmem:[%s1872 + $0xe8] sm:$0xff]
    %v1903 = vld [vmem:[%s1872 + $0xf0] sm:$0xff]
    %v1904 = vld [vmem:[%s1872 + $0xf8] sm:$0xff]
    %s1905 = scalar_lea.vmem [#allocation6], 1792
    %v1906 = vld [vmem:[%s1905] sm:$0xff]
    %v1907 = vld [vmem:[%s1905 + $0x8] sm:$0xff]
    %v1908 = vld [vmem:[%s1905 + $0x10] sm:$0xff]
    %v1909 = vld [vmem:[%s1905 + $0x18] sm:$0xff]
    %v1910 = vld [vmem:[%s1905 + $0x20] sm:$0xff]
    %v1911 = vld [vmem:[%s1905 + $0x28] sm:$0xff]
    %v1912 = vld [vmem:[%s1905 + $0x30] sm:$0xff]
    %v1913 = vld [vmem:[%s1905 + $0x38] sm:$0xff]
    %v1914 = vld [vmem:[%s1905 + $0x40] sm:$0xff]
    %v1915 = vld [vmem:[%s1905 + $0x48] sm:$0xff]
    %v1916 = vld [vmem:[%s1905 + $0x50] sm:$0xff]
    %v1917 = vld [vmem:[%s1905 + $0x58] sm:$0xff]
    %v1918 = vld [vmem:[%s1905 + $0x60] sm:$0xff]
    %v1919 = vld [vmem:[%s1905 + $0x68] sm:$0xff]
    %v1920 = vld [vmem:[%s1905 + $0x70] sm:$0xff]
    %v1921 = vld [vmem:[%s1905 + $0x78] sm:$0xff]
    %v1922 = vld [vmem:[%s1905 + $0x80] sm:$0xff]
    %v1923 = vld [vmem:[%s1905 + $0x88] sm:$0xff]
    %v1924 = vld [vmem:[%s1905 + $0x90] sm:$0xff]
    %v1925 = vld [vmem:[%s1905 + $0x98] sm:$0xff]
    %v1926 = vld [vmem:[%s1905 + $0xa0] sm:$0xff]
    %v1927 = vld [vmem:[%s1905 + $0xa8] sm:$0xff]
    %v1928 = vld [vmem:[%s1905 + $0xb0] sm:$0xff]
    %v1929 = vld [vmem:[%s1905 + $0xb8] sm:$0xff]
    %v1930 = vld [vmem:[%s1905 + $0xc0] sm:$0xff]
    %v1931 = vld [vmem:[%s1905 + $0xc8] sm:$0xff]
    %v1932 = vld [vmem:[%s1905 + $0xd0] sm:$0xff]
    %v1933 = vld [vmem:[%s1905 + $0xd8] sm:$0xff]
    %v1934 = vld [vmem:[%s1905 + $0xe0] sm:$0xff]
    %v1935 = vld [vmem:[%s1905 + $0xe8] sm:$0xff]
    %v1936 = vld [vmem:[%s1905 + $0xf0] sm:$0xff]
    %v1937 = vld [vmem:[%s1905 + $0xf8] sm:$0xff]
    %v1970 = vunpack.c.l.b16 %v1906
    %v1971 = vunpack.c.h.b16 %v1906
    %v1972 = vunpack.c.l.b16 %v1907
    %v1973 = vunpack.c.h.b16 %v1907
    %v1974 = vunpack.c.l.b16 %v1908
    %v1975 = vunpack.c.h.b16 %v1908
    %v1976 = vunpack.c.l.b16 %v1909
    %v1977 = vunpack.c.h.b16 %v1909
    %v1978 = vunpack.c.l.b16 %v1910
    %v1979 = vunpack.c.h.b16 %v1910
    %v1980 = vunpack.c.l.b16 %v1911
    %v1981 = vunpack.c.h.b16 %v1911
    %v1982 = vunpack.c.l.b16 %v1912
    %v1983 = vunpack.c.h.b16 %v1912
    %v1984 = vunpack.c.l.b16 %v1913
    %v1985 = vunpack.c.h.b16 %v1913
    %v1986 = vunpack.c.l.b16 %v1914
    %v1987 = vunpack.c.h.b16 %v1914
    %v1988 = vunpack.c.l.b16 %v1915
    %v1989 = vunpack.c.h.b16 %v1915
    %v1990 = vunpack.c.l.b16 %v1916
    %v1991 = vunpack.c.h.b16 %v1916
    %v1992 = vunpack.c.l.b16 %v1917
    %v1993 = vunpack.c.h.b16 %v1917
    %v1994 = vunpack.c.l.b16 %v1918
    %v1995 = vunpack.c.h.b16 %v1918
    %v1996 = vunpack.c.l.b16 %v1919
    %v1997 = vunpack.c.h.b16 %v1919
    %v1998 = vunpack.c.l.b16 %v1920
    %v1999 = vunpack.c.h.b16 %v1920
    %v2000 = vunpack.c.l.b16 %v1921
    %v2001 = vunpack.c.h.b16 %v1921
    %v2002 = vunpack.c.l.b16 %v1922
    %v2003 = vunpack.c.h.b16 %v1922
    %v2004 = vunpack.c.l.b16 %v1923
    %v2005 = vunpack.c.h.b16 %v1923
    %v2006 = vunpack.c.l.b16 %v1924
    %v2007 = vunpack.c.h.b16 %v1924
    %v2008 = vunpack.c.l.b16 %v1925
    %v2009 = vunpack.c.h.b16 %v1925
    %v2010 = vunpack.c.l.b16 %v1926
    %v2011 = vunpack.c.h.b16 %v1926
    %v2012 = vunpack.c.l.b16 %v1927
    %v2013 = vunpack.c.h.b16 %v1927
    %v2014 = vunpack.c.l.b16 %v1928
    %v2015 = vunpack.c.h.b16 %v1928
    %v2016 = vunpack.c.l.b16 %v1929
    %v2017 = vunpack.c.h.b16 %v1929
    %v2018 = vunpack.c.l.b16 %v1930
    %v2019 = vunpack.c.h.b16 %v1930
    %v2020 = vunpack.c.l.b16 %v1931
    %v2021 = vunpack.c.h.b16 %v1931
    %v2022 = vunpack.c.l.b16 %v1932
    %v2023 = vunpack.c.h.b16 %v1932
    %v2024 = vunpack.c.l.b16 %v1933
    %v2025 = vunpack.c.h.b16 %v1933
    %v2026 = vunpack.c.l.b16 %v1934
    %v2027 = vunpack.c.h.b16 %v1934
    %v2028 = vunpack.c.l.b16 %v1935
    %v2029 = vunpack.c.h.b16 %v1935
    %v2030 = vunpack.c.l.b16 %v1936
    %v2031 = vunpack.c.h.b16 %v1936
    %v2032 = vunpack.c.l.b16 %v1937
    %v2033 = vunpack.c.h.b16 %v1937
    %v2034 = vpack.c.b16 %v1972, %v1970
    %v2035 = vpack.c.b16 %v1973, %v1971
    %v2036 = vpack.c.b16 %v1976, %v1974
    %v2037 = vpack.c.b16 %v1977, %v1975
    %v2038 = vpack.c.b16 %v1980, %v1978
    %v2039 = vpack.c.b16 %v1981, %v1979
    %v2040 = vpack.c.b16 %v1984, %v1982
    %v2041 = vpack.c.b16 %v1985, %v1983
    %v2042 = vpack.c.b16 %v1988, %v1986
    %v2043 = vpack.c.b16 %v1989, %v1987
    %v2044 = vpack.c.b16 %v1992, %v1990
    %v2045 = vpack.c.b16 %v1993, %v1991
    %v2046 = vpack.c.b16 %v1996, %v1994
    %v2047 = vpack.c.b16 %v1997, %v1995
    %v2048 = vpack.c.b16 %v2000, %v1998
    %v2049 = vpack.c.b16 %v2001, %v1999
    %v2050 = vpack.c.b16 %v2004, %v2002
    %v2051 = vpack.c.b16 %v2005, %v2003
    %v2052 = vpack.c.b16 %v2008, %v2006
    %v2053 = vpack.c.b16 %v2009, %v2007
    %v2054 = vpack.c.b16 %v2012, %v2010
    %v2055 = vpack.c.b16 %v2013, %v2011
    %v2056 = vpack.c.b16 %v2016, %v2014
    %v2057 = vpack.c.b16 %v2017, %v2015
    %v2058 = vpack.c.b16 %v2020, %v2018
    %v2059 = vpack.c.b16 %v2021, %v2019
    %v2060 = vpack.c.b16 %v2024, %v2022
    %v2061 = vpack.c.b16 %v2025, %v2023
    %v2062 = vpack.c.b16 %v2028, %v2026
    %v2063 = vpack.c.b16 %v2029, %v2027
    %v2064 = vpack.c.b16 %v2032, %v2030
    %v2065 = vpack.c.b16 %v2033, %v2031
    %2098 = vmatprep.subr.bf16.mxu0 %v2035
    %2099 = vmatpush1.bf16.msra.mxu0 %v2034
    %2100 = vmatprep.subr.bf16.mxu0 %v2037
    %2101 = vmatpush1.bf16.msra.mxu0 %v2036
    %2102 = vmatprep.subr.bf16.mxu0 %v2039
    %2103 = vmatpush1.bf16.msra.mxu0 %v2038
    %2104 = vmatprep.subr.bf16.mxu0 %v2041
    %2105 = vmatpush1.bf16.msra.mxu0 %v2040
    %2106 = vmatprep.subr.bf16.mxu0 %v2043
    %2107 = vmatpush1.bf16.msra.mxu0 %v2042
    %2108 = vmatprep.subr.bf16.mxu0 %v2045
    %2109 = vmatpush1.bf16.msra.mxu0 %v2044
    %2110 = vmatprep.subr.bf16.mxu0 %v2047
    %2111 = vmatpush1.bf16.msra.mxu0 %v2046
    %2112 = vmatprep.subr.bf16.mxu0 %v2049
    %2113 = vmatpush1.bf16.msra.mxu0 %v2048
    %2114 = vmatprep.subr.bf16.mxu0 %v2051
    %2115 = vmatpush1.bf16.msra.mxu0 %v2050
    %2116 = vmatprep.subr.bf16.mxu0 %v2053
    %2117 = vmatpush1.bf16.msra.mxu0 %v2052
    %2118 = vmatprep.subr.bf16.mxu0 %v2055
    %2119 = vmatpush1.bf16.msra.mxu0 %v2054
    %2120 = vmatprep.subr.bf16.mxu0 %v2057
    %2121 = vmatpush1.bf16.msra.mxu0 %v2056
    %2122 = vmatprep.subr.bf16.mxu0 %v2059
    %2123 = vmatpush1.bf16.msra.mxu0 %v2058
    %2124 = vmatprep.subr.bf16.mxu0 %v2061
    %2125 = vmatpush1.bf16.msra.mxu0 %v2060
    %2126 = vmatprep.subr.bf16.mxu0 %v2063
    %2127 = vmatpush1.bf16.msra.mxu0 %v2062
    %2128 = vmatprep.subr.bf16.mxu0 %v2065
    %2129 = vmatpush1.bf16.msra.mxu0 %v2064
    %2130 = vmatprep.mubr.bf16.mxu0 %v1809
    %2131 = vmatmul.mubr.bf16.gmra.mrb[0].mxu0 %v1808
    %v2132 = vpop.f32.mrb[0].mxu0
    %v2133 = vadd.f32 0.0, %v2132
    %v2134 = vpop.f32.mrb[0].mxu0
    %v2135 = vadd.f32 0.0, %v2134
    %v2136 = vpop.f32.mrb[0].mxu0
    %v2137 = vadd.f32 0.0, %v2136
    %v2138 = vpop.f32.mrb[0].mxu0
    %v2139 = vadd.f32 0.0, %v2138
    %2140 = vmatprep.mubr.bf16.mxu0 %v1811
    %2141 = vmatmul.mubr.bf16.gmra.mrb[0].mxu0 %v1810
    %v2142 = vpop.f32.mrb[0].mxu0
    %v2143 = vadd.f32 0.0, %v2142
    %v2144 = vpop.f32.mrb[0].mxu0
    %v2145 = vadd.f32 0.0, %v2144
    %v2146 = vpop.f32.mrb[0].mxu0
    %v2147 = vadd.f32 0.0, %v2146
    %v2148 = vpop.f32.mrb[0].mxu0
    %v2149 = vadd.f32 0.0, %v2148
    %2150 = vdwg.mxu0
    %v2183 = vunpack.c.l.b16 %v1873
    %v2184 = vunpack.c.h.b16 %v1873
    %v2185 = vunpack.c.l.b16 %v1874
    %v2186 = vunpack.c.h.b16 %v1874
    %v2187 = vunpack.c.l.b16 %v1875
    %v2188 = vunpack.c.h.b16 %v1875
    %v2189 = vunpack.c.l.b16 %v1876
    %v2190 = vunpack.c.h.b16 %v1876
    %v2191 = vunpack.c.l.b16 %v1877
    %v2192 = vunpack.c.h.b16 %v1877
    %v2193 = vunpack.c.l.b16 %v1878
    %v2194 = vunpack.c.h.b16 %v1878
    %v2195 = vunpack.c.l.b16 %v1879
    %v2196 = vunpack.c.h.b16 %v1879
    %v2197 = vunpack.c.l.b16 %v1880
    %v2198 = vunpack.c.h.b16 %v1880
    %v2199 = vunpack.c.l.b16 %v1881
    %v2200 = vunpack.c.h.b16 %v1881
    %v2201 = vunpack.c.l.b16 %v1882
    %v2202 = vunpack.c.h.b16 %v1882
    %v2203 = vunpack.c.l.b16 %v1883
    %v2204 = vunpack.c.h.b16 %v1883
    %v2205 = vunpack.c.l.b16 %v1884
    %v2206 = vunpack.c.h.b16 %v1884
    %v2207 = vunpack.c.l.b16 %v1885
    %v2208 = vunpack.c.h.b16 %v1885
    %v2209 = vunpack.c.l.b16 %v1886
    %v2210 = vunpack.c.h.b16 %v1886
    %v2211 = vunpack.c.l.b16 %v1887
    %v2212 = vunpack.c.h.b16 %v1887
    %v2213 = vunpack.c.l.b16 %v1888
    %v2214 = vunpack.c.h.b16 %v1888
    %v2215 = vunpack.c.l.b16 %v1889
    %v2216 = vunpack.c.h.b16 %v1889
    %v2217 = vunpack.c.l.b16 %v1890
    %v2218 = vunpack.c.h.b16 %v1890
    %v2219 = vunpack.c.l.b16 %v1891
    %v2220 = vunpack.c.h.b16 %v1891
    %v2221 = vunpack.c.l.b16 %v1892
    %v2222 = vunpack.c.h.b16 %v1892
    %v2223 = vunpack.c.l.b16 %v1893
    %v2224 = vunpack.c.h.b16 %v1893
    %v2225 = vunpack.c.l.b16 %v1894
    %v2226 = vunpack.c.h.b16 %v1894
    %v2227 = vunpack.c.l.b16 %v1895
    %v2228 = vunpack.c.h.b16 %v1895
    %v2229 = vunpack.c.l.b16 %v1896
    %v2230 = vunpack.c.h.b16 %v1896
    %v2231 = vunpack.c.l.b16 %v1897
    %v2232 = vunpack.c.h.b16 %v1897
    %v2233 = vunpack.c.l.b16 %v1898
    %v2234 = vunpack.c.h.b16 %v1898
    %v2235 = vunpack.c.l.b16 %v1899
    %v2236 = vunpack.c.h.b16 %v1899
    %v2237 = vunpack.c.l.b16 %v1900
    %v2238 = vunpack.c.h.b16 %v1900
    %v2239 = vunpack.c.l.b16 %v1901
    %v2240 = vunpack.c.h.b16 %v1901
    %v2241 = vunpack.c.l.b16 %v1902
    %v2242 = vunpack.c.h.b16 %v1902
    %v2243 = vunpack.c.l.b16 %v1903
    %v2244 = vunpack.c.h.b16 %v1903
    %v2245 = vunpack.c.l.b16 %v1904
    %v2246 = vunpack.c.h.b16 %v1904
    %v2247 = vpack.c.b16 %v2185, %v2183
    %v2248 = vpack.c.b16 %v2186, %v2184
    %v2249 = vpack.c.b16 %v2189, %v2187
    %v2250 = vpack.c.b16 %v2190, %v2188
    %v2251 = vpack.c.b16 %v2193, %v2191
    %v2252 = vpack.c.b16 %v2194, %v2192
    %v2253 = vpack.c.b16 %v2197, %v2195
    %v2254 = vpack.c.b16 %v2198, %v2196
    %v2255 = vpack.c.b16 %v2201, %v2199
    %v2256 = vpack.c.b16 %v2202, %v2200
    %v2257 = vpack.c.b16 %v2205, %v2203
    %v2258 = vpack.c.b16 %v2206, %v2204
    %v2259 = vpack.c.b16 %v2209, %v2207
    %v2260 = vpack.c.b16 %v2210, %v2208
    %v2261 = vpack.c.b16 %v2213, %v2211
    %v2262 = vpack.c.b16 %v2214, %v2212
    %v2263 = vpack.c.b16 %v2217, %v2215
    %v2264 = vpack.c.b16 %v2218, %v2216
    %v2265 = vpack.c.b16 %v2221, %v2219
    %v2266 = vpack.c.b16 %v2222, %v2220
    %v2267 = vpack.c.b16 %v2225, %v2223
    %v2268 = vpack.c.b16 %v2226, %v2224
    %v2269 = vpack.c.b16 %v2229, %v2227
    %v2270 = vpack.c.b16 %v2230, %v2228
    %v2271 = vpack.c.b16 %v2233, %v2231
    %v2272 = vpack.c.b16 %v2234, %v2232
    %v2273 = vpack.c.b16 %v2237, %v2235
    %v2274 = vpack.c.b16 %v2238, %v2236
    %v2275 = vpack.c.b16 %v2241, %v2239
    %v2276 = vpack.c.b16 %v2242, %v2240
    %v2277 = vpack.c.b16 %v2245, %v2243
    %v2278 = vpack.c.b16 %v2246, %v2244
    %2311 = vmatprep.subr.bf16.mxu0 %v2248
    %2312 = vmatpush1.bf16.msra.mxu0 %v2247
    %2313 = vmatprep.subr.bf16.mxu0 %v2250
    %2314 = vmatpush1.bf16.msra.mxu0 %v2249
    %2315 = vmatprep.subr.bf16.mxu0 %v2252
    %2316 = vmatpush1.bf16.msra.mxu0 %v2251
    %2317 = vmatprep.subr.bf16.mxu0 %v2254
    %2318 = vmatpush1.bf16.msra.mxu0 %v2253
    %2319 = vmatprep.subr.bf16.mxu0 %v2256
    %2320 = vmatpush1.bf16.msra.mxu0 %v2255
    %2321 = vmatprep.subr.bf16.mxu0 %v2258
    %2322 = vmatpush1.bf16.msra.mxu0 %v2257
    %2323 = vmatprep.subr.bf16.mxu0 %v2260
    %2324 = vmatpush1.bf16.msra.mxu0 %v2259
    %2325 = vmatprep.subr.bf16.mxu0 %v2262
    %2326 = vmatpush1.bf16.msra.mxu0 %v2261
    %2327 = vmatprep.subr.bf16.mxu0 %v2264
    %2328 = vmatpush1.bf16.msra.mxu0 %v2263
    %2329 = vmatprep.subr.bf16.mxu0 %v2266
    %2330 = vmatpush1.bf16.msra.mxu0 %v2265
    %2331 = vmatprep.subr.bf16.mxu0 %v2268
    %2332 = vmatpush1.bf16.msra.mxu0 %v2267
    %2333 = vmatprep.subr.bf16.mxu0 %v2270
    %2334 = vmatpush1.bf16.msra.mxu0 %v2269
    %2335 = vmatprep.subr.bf16.mxu0 %v2272
    %2336 = vmatpush1.bf16.msra.mxu0 %v2271
    %2337 = vmatprep.subr.bf16.mxu0 %v2274
    %2338 = vmatpush1.bf16.msra.mxu0 %v2273
    %2339 = vmatprep.subr.bf16.mxu0 %v2276
    %2340 = vmatpush1.bf16.msra.mxu0 %v2275
    %2341 = vmatprep.subr.bf16.mxu0 %v2278
    %2342 = vmatpush1.bf16.msra.mxu0 %v2277
    %2343 = vmatprep.mubr.bf16.mxu0 %v1849
    %2344 = vmatmul.mubr.bf16.gmra.mrb[0].mxu0 %v1848
    %v2345 = vpop.f32.mrb[0].mxu0
    %v2346 = vadd.f32 %v2133, %v2345
    %v2347 = vpop.f32.mrb[0].mxu0
    %v2348 = vadd.f32 %v2135, %v2347
    %v2349 = vpop.f32.mrb[0].mxu0
    %v2350 = vadd.f32 %v2137, %v2349
    %v2351 = vpop.f32.mrb[0].mxu0
    %v2352 = vadd.f32 %v2139, %v2351
    %2353 = vmatprep.mubr.bf16.mxu0 %v1851
    %2354 = vmatmul.mubr.bf16.gmra.mrb[0].mxu0 %v1850
    %v2355 = vpop.f32.mrb[0].mxu0
    %v2356 = vadd.f32 %v2143, %v2355
    %v2357 = vpop.f32.mrb[0].mxu0
    %v2358 = vadd.f32 %v2145, %v2357
    %v2359 = vpop.f32.mrb[0].mxu0
    %v2360 = vadd.f32 %v2147, %v2359
    %v2361 = vpop.f32.mrb[0].mxu0
    %v2362 = vadd.f32 %v2149, %v2361
    %2363 = vdwg.mxu0
    %s2364 = scalar_lea.vmem [#allocation6], 2048
    %v2365 = vld [vmem:[%s2364] sm:$0xff]
    %v2366 = vld [vmem:[%s2364 + $0x8] sm:$0xff]
    %v2367 = vld [vmem:[%s2364 + $0x10] sm:$0xff]
    %v2368 = vld [vmem:[%s2364 + $0x18] sm:$0xff]
    %v2369 = vld [vmem:[%s2364 + $0x20] sm:$0xff]
    %v2370 = vld [vmem:[%s2364 + $0x28] sm:$0xff]
    %v2371 = vld [vmem:[%s2364 + $0x30] sm:$0xff]
    %v2372 = vld [vmem:[%s2364 + $0x38] sm:$0xff]
    %v2373 = vld [vmem:[%s2364 + $0x40] sm:$0xff]
    %v2374 = vld [vmem:[%s2364 + $0x48] sm:$0xff]
    %v2375 = vld [vmem:[%s2364 + $0x50] sm:$0xff]
    %v2376 = vld [vmem:[%s2364 + $0x58] sm:$0xff]
    %v2377 = vld [vmem:[%s2364 + $0x60] sm:$0xff]
    %v2378 = vld [vmem:[%s2364 + $0x68] sm:$0xff]
    %v2379 = vld [vmem:[%s2364 + $0x70] sm:$0xff]
    %v2380 = vld [vmem:[%s2364 + $0x78] sm:$0xff]
    %v2381 = vld [vmem:[%s2364 + $0x80] sm:$0xff]
    %v2382 = vld [vmem:[%s2364 + $0x88] sm:$0xff]
    %v2383 = vld [vmem:[%s2364 + $0x90] sm:$0xff]
    %v2384 = vld [vmem:[%s2364 + $0x98] sm:$0xff]
    %v2385 = vld [vmem:[%s2364 + $0xa0] sm:$0xff]
    %v2386 = vld [vmem:[%s2364 + $0xa8] sm:$0xff]
    %v2387 = vld [vmem:[%s2364 + $0xb0] sm:$0xff]
    %v2388 = vld [vmem:[%s2364 + $0xb8] sm:$0xff]
    %v2389 = vld [vmem:[%s2364 + $0xc0] sm:$0xff]
    %v2390 = vld [vmem:[%s2364 + $0xc8] sm:$0xff]
    %v2391 = vld [vmem:[%s2364 + $0xd0] sm:$0xff]
    %v2392 = vld [vmem:[%s2364 + $0xd8] sm:$0xff]
    %v2393 = vld [vmem:[%s2364 + $0xe0] sm:$0xff]
    %v2394 = vld [vmem:[%s2364 + $0xe8] sm:$0xff]
    %v2395 = vld [vmem:[%s2364 + $0xf0] sm:$0xff]
    %v2396 = vld [vmem:[%s2364 + $0xf8] sm:$0xff]
    %v2429 = vunpack.c.l.b16 %v2365
    %v2430 = vunpack.c.h.b16 %v2365
    %v2431 = vunpack.c.l.b16 %v2366
    %v2432 = vunpack.c.h.b16 %v2366
    %v2433 = vunpack.c.l.b16 %v2367
    %v2434 = vunpack.c.h.b16 %v2367
    %v2435 = vunpack.c.l.b16 %v2368
    %v2436 = vunpack.c.h.b16 %v2368
    %v2437 = vunpack.c.l.b16 %v2369
    %v2438 = vunpack.c.h.b16 %v2369
    %v2439 = vunpack.c.l.b16 %v2370
    %v2440 = vunpack.c.h.b16 %v2370
    %v2441 = vunpack.c.l.b16 %v2371
    %v2442 = vunpack.c.h.b16 %v2371
    %v2443 = vunpack.c.l.b16 %v2372
    %v2444 = vunpack.c.h.b16 %v2372
    %v2445 = vunpack.c.l.b16 %v2373
    %v2446 = vunpack.c.h.b16 %v2373
    %v2447 = vunpack.c.l.b16 %v2374
    %v2448 = vunpack.c.h.b16 %v2374
    %v2449 = vunpack.c.l.b16 %v2375
    %v2450 = vunpack.c.h.b16 %v2375
    %v2451 = vunpack.c.l.b16 %v2376
    %v2452 = vunpack.c.h.b16 %v2376
    %v2453 = vunpack.c.l.b16 %v2377
    %v2454 = vunpack.c.h.b16 %v2377
    %v2455 = vunpack.c.l.b16 %v2378
    %v2456 = vunpack.c.h.b16 %v2378
    %v2457 = vunpack.c.l.b16 %v2379
    %v2458 = vunpack.c.h.b16 %v2379
    %v2459 = vunpack.c.l.b16 %v2380
    %v2460 = vunpack.c.h.b16 %v2380
    %v2461 = vunpack.c.l.b16 %v2381
    %v2462 = vunpack.c.h.b16 %v2381
    %v2463 = vunpack.c.l.b16 %v2382
    %v2464 = vunpack.c.h.b16 %v2382
    %v2465 = vunpack.c.l.b16 %v2383
    %v2466 = vunpack.c.h.b16 %v2383
    %v2467 = vunpack.c.l.b16 %v2384
    %v2468 = vunpack.c.h.b16 %v2384
    %v2469 = vunpack.c.l.b16 %v2385
    %v2470 = vunpack.c.h.b16 %v2385
    %v2471 = vunpack.c.l.b16 %v2386
    %v2472 = vunpack.c.h.b16 %v2386
    %v2473 = vunpack.c.l.b16 %v2387
    %v2474 = vunpack.c.h.b16 %v2387
    %v2475 = vunpack.c.l.b16 %v2388
    %v2476 = vunpack.c.h.b16 %v2388
    %v2477 = vunpack.c.l.b16 %v2389
    %v2478 = vunpack.c.h.b16 %v2389
    %v2479 = vunpack.c.l.b16 %v2390
    %v2480 = vunpack.c.h.b16 %v2390
    %v2481 = vunpack.c.l.b16 %v2391
    %v2482 = vunpack.c.h.b16 %v2391
    %v2483 = vunpack.c.l.b16 %v2392
    %v2484 = vunpack.c.h.b16 %v2392
    %v2485 = vunpack.c.l.b16 %v2393
    %v2486 = vunpack.c.h.b16 %v2393
    %v2487 = vunpack.c.l.b16 %v2394
    %v2488 = vunpack.c.h.b16 %v2394
    %v2489 = vunpack.c.l.b16 %v2395
    %v2490 = vunpack.c.h.b16 %v2395
    %v2491 = vunpack.c.l.b16 %v2396
    %v2492 = vunpack.c.h.b16 %v2396
    %v2493 = vpack.c.b16 %v2431, %v2429
    %v2494 = vpack.c.b16 %v2432, %v2430
    %v2495 = vpack.c.b16 %v2435, %v2433
    %v2496 = vpack.c.b16 %v2436, %v2434
    %v2497 = vpack.c.b16 %v2439, %v2437
    %v2498 = vpack.c.b16 %v2440, %v2438
    %v2499 = vpack.c.b16 %v2443, %v2441
    %v2500 = vpack.c.b16 %v2444, %v2442
    %v2501 = vpack.c.b16 %v2447, %v2445
    %v2502 = vpack.c.b16 %v2448, %v2446
    %v2503 = vpack.c.b16 %v2451, %v2449
    %v2504 = vpack.c.b16 %v2452, %v2450
    %v2505 = vpack.c.b16 %v2455, %v2453
    %v2506 = vpack.c.b16 %v2456, %v2454
    %v2507 = vpack.c.b16 %v2459, %v2457
    %v2508 = vpack.c.b16 %v2460, %v2458
    %v2509 = vpack.c.b16 %v2463, %v2461
    %v2510 = vpack.c.b16 %v2464, %v2462
    %v2511 = vpack.c.b16 %v2467, %v2465
    %v2512 = vpack.c.b16 %v2468, %v2466
    %v2513 = vpack.c.b16 %v2471, %v2469
    %v2514 = vpack.c.b16 %v2472, %v2470
    %v2515 = vpack.c.b16 %v2475, %v2473
    %v2516 = vpack.c.b16 %v2476, %v2474
    %v2517 = vpack.c.b16 %v2479, %v2477
    %v2518 = vpack.c.b16 %v2480, %v2478
    %v2519 = vpack.c.b16 %v2483, %v2481
    %v2520 = vpack.c.b16 %v2484, %v2482
    %v2521 = vpack.c.b16 %v2487, %v2485
    %v2522 = vpack.c.b16 %v2488, %v2486
    %v2523 = vpack.c.b16 %v2491, %v2489
    %v2524 = vpack.c.b16 %v2492, %v2490
    %2557 = vmatprep.subr.bf16.mxu0 %v2494
    %2558 = vmatpush1.bf16.msra.mxu0 %v2493
    %2559 = vmatprep.subr.bf16.mxu0 %v2496
    %2560 = vmatpush1.bf16.msra.mxu0 %v2495
    %2561 = vmatprep.subr.bf16.mxu0 %v2498
    %2562 = vmatpush1.bf16.msra.mxu0 %v2497
    %2563 = vmatprep.subr.bf16.mxu0 %v2500
    %2564 = vmatpush1.bf16.msra.mxu0 %v2499
    %2565 = vmatprep.subr.bf16.mxu0 %v2502
    %2566 = vmatpush1.bf16.msra.mxu0 %v2501
    %2567 = vmatprep.subr.bf16.mxu0 %v2504
    %2568 = vmatpush1.bf16.msra.mxu0 %v2503
    %2569 = vmatprep.subr.bf16.mxu0 %v2506
    %2570 = vmatpush1.bf16.msra.mxu0 %v2505
    %2571 = vmatprep.subr.bf16.mxu0 %v2508
    %2572 = vmatpush1.bf16.msra.mxu0 %v2507
    %2573 = vmatprep.subr.bf16.mxu0 %v2510
    %2574 = vmatpush1.bf16.msra.mxu0 %v2509
    %2575 = vmatprep.subr.bf16.mxu0 %v2512
    %2576 = vmatpush1.bf16.msra.mxu0 %v2511
    %2577 = vmatprep.subr.bf16.mxu0 %v2514
    %2578 = vmatpush1.bf16.msra.mxu0 %v2513
    %2579 = vmatprep.subr.bf16.mxu0 %v2516
    %2580 = vmatpush1.bf16.msra.mxu0 %v2515
    %2581 = vmatprep.subr.bf16.mxu0 %v2518
    %2582 = vmatpush1.bf16.msra.mxu0 %v2517
    %2583 = vmatprep.subr.bf16.mxu0 %v2520
    %2584 = vmatpush1.bf16.msra.mxu0 %v2519
    %2585 = vmatprep.subr.bf16.mxu0 %v2522
    %2586 = vmatpush1.bf16.msra.mxu0 %v2521
    %2587 = vmatprep.subr.bf16.mxu0 %v2524
    %2588 = vmatpush1.bf16.msra.mxu0 %v2523
    %2589 = vmatprep.mubr.bf16.mxu0 %v1869
    %2590 = vmatmul.mubr.bf16.gmra.mrb[0].mxu0 %v1868
    %v2591 = vpop.f32.mrb[0].mxu0
    %v2592 = vadd.f32 0.0, %v2591
    %v2593 = vpop.f32.mrb[0].mxu0
    %v2594 = vadd.f32 0.0, %v2593
    %v2595 = vpop.f32.mrb[0].mxu0
    %v2596 = vadd.f32 0.0, %v2595
    %v2597 = vpop.f32.mrb[0].mxu0
    %v2598 = vadd.f32 0.0, %v2597
    %2599 = vmatprep.mubr.bf16.mxu0 %v1871
    %2600 = vmatmul.mubr.bf16.gmra.mrb[0].mxu0 %v1870
    %v2601 = vpop.f32.mrb[0].mxu0
    %v2602 = vadd.f32 0.0, %v2601
    %v2603 = vpop.f32.mrb[0].mxu0
    %v2604 = vadd.f32 0.0, %v2603
    %v2605 = vpop.f32.mrb[0].mxu0
    %v2606 = vadd.f32 0.0, %v2605
    %v2607 = vpop.f32.mrb[0].mxu0
    %v2608 = vadd.f32 0.0, %v2607
    %2609 = vdwg.mxu0
    %v2610 = vadd.f32 %v2346, %v2592
    %v2611 = vadd.f32 %v2348, %v2594
    %v2612 = vadd.f32 %v2350, %v2596
    %v2613 = vadd.f32 %v2352, %v2598
    %v2614 = vadd.f32 %v2356, %v2602
    %v2615 = vadd.f32 %v2358, %v2604
    %v2616 = vadd.f32 %v2360, %v2606
    %v2617 = vadd.f32 %v2362, %v2608
    %s2618 = scalar_lea.vmem [#allocation8], 4
    %v2619 = vld [vmem:[%s2618] sm:$0x3]
    %v2621 = vlaneseq
    %v2622 = vshrl.u32 %v2621, 7
    %v2623 = vsub.s32 0, %v2622
    %v2624 = vrot.slane %v2619, %v2623
    %v2625 = vlaneseq
    %v2626 = vshrl.u32 %v2625, 7
    %v2627 = vsub.s32 1, %v2626
    %v2628 = vrot.slane %v2619, %v2627
    %v2631 = vadd.f32 %v2610, %v2624
    %v2632 = vadd.f32 %v2611, %v2628
    %v2633 = vadd.f32 %v2612, %v2624
    %v2634 = vadd.f32 %v2613, %v2628
    %v2635 = vadd.f32 %v2614, %v2624
    %v2636 = vadd.f32 %v2615, %v2628
    %v2637 = vadd.f32 %v2616, %v2624
    %v2638 = vadd.f32 %v2617, %v2628
    %vm2639 = vcmp.ge.f32.partialorder %v2631, 0.0
    %vm2640 = vcmp.ge.f32.partialorder %v2632, 0.0
    %vm2641 = vcmp.ge.f32.partialorder %v2633, 0.0
    %vm2642 = vcmp.ge.f32.partialorder %v2634, 0.0
    %vm2643 = vcmp.ge.f32.partialorder %v2635, 0.0
    %vm2644 = vcmp.ge.f32.partialorder %v2636, 0.0
    %vm2645 = vcmp.ge.f32.partialorder %v2637, 0.0
    %vm2646 = vcmp.ge.f32.partialorder %v2638, 0.0
    %v2647 = vmul.f32 %v2631, 0.2
    %v2648 = vmul.f32 %v2632, 0.2
    %v2649 = vmul.f32 %v2633, 0.2
    %v2650 = vmul.f32 %v2634, 0.2
    %v2651 = vmul.f32 %v2635, 0.2
    %v2652 = vmul.f32 %v2636, 0.2
    %v2653 = vmul.f32 %v2637, 0.2
    %v2654 = vmul.f32 %v2638, 0.2
    %v2655 = vsel %vm2639, %v2631, %v2647
    %v2656 = vsel %vm2640, %v2632, %v2648
    %v2657 = vsel %vm2641, %v2633, %v2649
    %v2658 = vsel %vm2642, %v2634, %v2650
    %v2659 = vsel %vm2643, %v2635, %v2651
    %v2660 = vsel %vm2644, %v2636, %v2652
    %v2661 = vsel %vm2645, %v2637, %v2653
    %v2662 = vsel %vm2646, %v2638, %v2654
    %v2663 = vpack.c.bf16 %v2657, %v2655
    %v2664 = vpack.c.bf16 %v2658, %v2656
    %v2665 = vpack.c.bf16 %v2661, %v2659
    %v2666 = vpack.c.bf16 %v2662, %v2660
    %2667 = vst [vmem:[#allocation2] sm:$0xff] %v2663
    %2668 = vst [vmem:[#allocation2 + $0x8] sm:$0xff] %v2664
    %2669 = vst [vmem:[#allocation2 + $0x10] sm:$0xff] %v2665
    %2670 = vst [vmem:[#allocation2 + $0x18] sm:$0xff] %v2666
    %v2671 = vld [vmem:[#allocation2] sm:$0xff]
    %v2672 = vld [vmem:[#allocation2 + $0x8] sm:$0xff]
    %v2673 = vld [vmem:[#allocation2 + $0x10] sm:$0xff]
    %v2674 = vld [vmem:[#allocation2 + $0x18] sm:$0xff]
    %v2676 = vshrl.u32 %v2671, 16
    %v2679 = vshrl.u32 %v2672, 16
    %v2682 = vshrl.u32 %v2673, 16
    %v2685 = vshrl.u32 %v2674, 16
    %v2691 = vrot.slane %v2676, 7
    %v2692 = vshll.u32 %v2671, 16
    %v2694 = vor.u32 %v2691, %v2692
    %v2695 = vrot.slane %v2679, 7
    %v2696 = vshll.u32 %v2672, 16
    %v2698 = vor.u32 %v2695, %v2696
    %v2699 = vrot.slane %v2682, 7
    %v2700 = vshll.u32 %v2673, 16
    %v2702 = vor.u32 %v2699, %v2700
    %v2703 = vrot.slane %v2685, 7
    %v2704 = vshll.u32 %v2674, 16
    %v2706 = vor.u32 %v2703, %v2704
    %v2711 = vsel %vm120, %v2676, %v2694
    %v2712 = vsel %vm120, %v2679, %v2698
    %v2713 = vsel %vm120, %v2682, %v2702
    %v2714 = vsel %vm120, %v2685, %v2706
    %v2715 = vrot.slane %v2692, 1
    %v2716 = vor.u32 %v2676, %v2715
    %v2717 = vrot.slane %v2696, 1
    %v2718 = vor.u32 %v2679, %v2717
    %v2719 = vrot.slane %v2700, 1
    %v2720 = vor.u32 %v2682, %v2719
    %v2721 = vrot.slane %v2704, 1
    %v2722 = vor.u32 %v2685, %v2721
    %v2731 = vsel %vm143, %v2716, %v2692
    %v2732 = vsel %vm143, %v2718, %v2696
    %v2733 = vsel %vm143, %v2720, %v2700
    %v2734 = vsel %vm143, %v2722, %v2704
    %s2735 = scalar_lea.vmem [#allocation6], 2304
    %v2736 = vld [vmem:[%s2735] sm:$0xff]
    %v2737 = vld [vmem:[%s2735 + $0x8] sm:$0xff]
    %v2738 = vld [vmem:[%s2735 + $0x10] sm:$0xff]
    %v2739 = vld [vmem:[%s2735 + $0x18] sm:$0xff]
    %v2740 = vld [vmem:[%s2735 + $0x20] sm:$0xff]
    %v2741 = vld [vmem:[%s2735 + $0x28] sm:$0xff]
    %v2742 = vld [vmem:[%s2735 + $0x30] sm:$0xff]
    %v2743 = vld [vmem:[%s2735 + $0x38] sm:$0xff]
    %v2744 = vld [vmem:[%s2735 + $0x40] sm:$0xff]
    %v2745 = vld [vmem:[%s2735 + $0x48] sm:$0xff]
    %v2746 = vld [vmem:[%s2735 + $0x50] sm:$0xff]
    %v2747 = vld [vmem:[%s2735 + $0x58] sm:$0xff]
    %v2748 = vld [vmem:[%s2735 + $0x60] sm:$0xff]
    %v2749 = vld [vmem:[%s2735 + $0x68] sm:$0xff]
    %v2750 = vld [vmem:[%s2735 + $0x70] sm:$0xff]
    %v2751 = vld [vmem:[%s2735 + $0x78] sm:$0xff]
    %v2752 = vld [vmem:[%s2735 + $0x80] sm:$0xff]
    %v2753 = vld [vmem:[%s2735 + $0x88] sm:$0xff]
    %v2754 = vld [vmem:[%s2735 + $0x90] sm:$0xff]
    %v2755 = vld [vmem:[%s2735 + $0x98] sm:$0xff]
    %v2756 = vld [vmem:[%s2735 + $0xa0] sm:$0xff]
    %v2757 = vld [vmem:[%s2735 + $0xa8] sm:$0xff]
    %v2758 = vld [vmem:[%s2735 + $0xb0] sm:$0xff]
    %v2759 = vld [vmem:[%s2735 + $0xb8] sm:$0xff]
    %v2760 = vld [vmem:[%s2735 + $0xc0] sm:$0xff]
    %v2761 = vld [vmem:[%s2735 + $0xc8] sm:$0xff]
    %v2762 = vld [vmem:[%s2735 + $0xd0] sm:$0xff]
    %v2763 = vld [vmem:[%s2735 + $0xd8] sm:$0xff]
    %v2764 = vld [vmem:[%s2735 + $0xe0] sm:$0xff]
    %v2765 = vld [vmem:[%s2735 + $0xe8] sm:$0xff]
    %v2766 = vld [vmem:[%s2735 + $0xf0] sm:$0xff]
    %v2767 = vld [vmem:[%s2735 + $0xf8] sm:$0xff]
    %s2768 = scalar_lea.vmem [#allocation6], 2560
    %v2769 = vld [vmem:[%s2768] sm:$0xff]
    %v2770 = vld [vmem:[%s2768 + $0x8] sm:$0xff]
    %v2771 = vld [vmem:[%s2768 + $0x10] sm:$0xff]
    %v2772 = vld [vmem:[%s2768 + $0x18] sm:$0xff]
    %v2773 = vld [vmem:[%s2768 + $0x20] sm:$0xff]
    %v2774 = vld [vmem:[%s2768 + $0x28] sm:$0xff]
    %v2775 = vld [vmem:[%s2768 + $0x30] sm:$0xff]
    %v2776 = vld [vmem:[%s2768 + $0x38] sm:$0xff]
    %v2777 = vld [vmem:[%s2768 + $0x40] sm:$0xff]
    %v2778 = vld [vmem:[%s2768 + $0x48] sm:$0xff]
    %v2779 = vld [vmem:[%s2768 + $0x50] sm:$0xff]
    %v2780 = vld [vmem:[%s2768 + $0x58] sm:$0xff]
    %v2781 = vld [vmem:[%s2768 + $0x60] sm:$0xff]
    %v2782 = vld [vmem:[%s2768 + $0x68] sm:$0xff]
    %v2783 = vld [vmem:[%s2768 + $0x70] sm:$0xff]
    %v2784 = vld [vmem:[%s2768 + $0x78] sm:$0xff]
    %v2785 = vld [vmem:[%s2768 + $0x80] sm:$0xff]
    %v2786 = vld [vmem:[%s2768 + $0x88] sm:$0xff]
    %v2787 = vld [vmem:[%s2768 + $0x90] sm:$0xff]
    %v2788 = vld [vmem:[%s2768 + $0x98] sm:$0xff]
    %v2789 = vld [vmem:[%s2768 + $0xa0] sm:$0xff]
    %v2790 = vld [vmem:[%s2768 + $0xa8] sm:$0xff]
    %v2791 = vld [vmem:[%s2768 + $0xb0] sm:$0xff]
    %v2792 = vld [vmem:[%s2768 + $0xb8] sm:$0xff]
    %v2793 = vld [vmem:[%s2768 + $0xc0] sm:$0xff]
    %v2794 = vld [vmem:[%s2768 + $0xc8] sm:$0xff]
    %v2795 = vld [vmem:[%s2768 + $0xd0] sm:$0xff]
    %v2796 = vld [vmem:[%s2768 + $0xd8] sm:$0xff]
    %v2797 = vld [vmem:[%s2768 + $0xe0] sm:$0xff]
    %v2798 = vld [vmem:[%s2768 + $0xe8] sm:$0xff]
    %v2799 = vld [vmem:[%s2768 + $0xf0] sm:$0xff]
    %v2800 = vld [vmem:[%s2768 + $0xf8] sm:$0xff]
    %v2833 = vunpack.c.l.b16 %v2769
    %v2834 = vunpack.c.h.b16 %v2769
    %v2835 = vunpack.c.l.b16 %v2770
    %v2836 = vunpack.c.h.b16 %v2770
    %v2837 = vunpack.c.l.b16 %v2771
    %v2838 = vunpack.c.h.b16 %v2771
    %v2839 = vunpack.c.l.b16 %v2772
    %v2840 = vunpack.c.h.b16 %v2772
    %v2841 = vunpack.c.l.b16 %v2773
    %v2842 = vunpack.c.h.b16 %v2773
    %v2843 = vunpack.c.l.b16 %v2774
    %v2844 = vunpack.c.h.b16 %v2774
    %v2845 = vunpack.c.l.b16 %v2775
    %v2846 = vunpack.c.h.b16 %v2775
    %v2847 = vunpack.c.l.b16 %v2776
    %v2848 = vunpack.c.h.b16 %v2776
    %v2849 = vunpack.c.l.b16 %v2777
    %v2850 = vunpack.c.h.b16 %v2777
    %v2851 = vunpack.c.l.b16 %v2778
    %v2852 = vunpack.c.h.b16 %v2778
    %v2853 = vunpack.c.l.b16 %v2779
    %v2854 = vunpack.c.h.b16 %v2779
    %v2855 = vunpack.c.l.b16 %v2780
    %v2856 = vunpack.c.h.b16 %v2780
    %v2857 = vunpack.c.l.b16 %v2781
    %v2858 = vunpack.c.h.b16 %v2781
    %v2859 = vunpack.c.l.b16 %v2782
    %v2860 = vunpack.c.h.b16 %v2782
    %v2861 = vunpack.c.l.b16 %v2783
    %v2862 = vunpack.c.h.b16 %v2783
    %v2863 = vunpack.c.l.b16 %v2784
    %v2864 = vunpack.c.h.b16 %v2784
    %v2865 = vunpack.c.l.b16 %v2785
    %v2866 = vunpack.c.h.b16 %v2785
    %v2867 = vunpack.c.l.b16 %v2786
    %v2868 = vunpack.c.h.b16 %v2786
    %v2869 = vunpack.c.l.b16 %v2787
    %v2870 = vunpack.c.h.b16 %v2787
    %v2871 = vunpack.c.l.b16 %v2788
    %v2872 = vunpack.c.h.b16 %v2788
    %v2873 = vunpack.c.l.b16 %v2789
    %v2874 = vunpack.c.h.b16 %v2789
    %v2875 = vunpack.c.l.b16 %v2790
    %v2876 = vunpack.c.h.b16 %v2790
    %v2877 = vunpack.c.l.b16 %v2791
    %v2878 = vunpack.c.h.b16 %v2791
    %v2879 = vunpack.c.l.b16 %v2792
    %v2880 = vunpack.c.h.b16 %v2792
    %v2881 = vunpack.c.l.b16 %v2793
    %v2882 = vunpack.c.h.b16 %v2793
    %v2883 = vunpack.c.l.b16 %v2794
    %v2884 = vunpack.c.h.b16 %v2794
    %v2885 = vunpack.c.l.b16 %v2795
    %v2886 = vunpack.c.h.b16 %v2795
    %v2887 = vunpack.c.l.b16 %v2796
    %v2888 = vunpack.c.h.b16 %v2796
    %v2889 = vunpack.c.l.b16 %v2797
    %v2890 = vunpack.c.h.b16 %v2797
    %v2891 = vunpack.c.l.b16 %v2798
    %v2892 = vunpack.c.h.b16 %v2798
    %v2893 = vunpack.c.l.b16 %v2799
    %v2894 = vunpack.c.h.b16 %v2799
    %v2895 = vunpack.c.l.b16 %v2800
    %v2896 = vunpack.c.h.b16 %v2800
    %v2897 = vpack.c.b16 %v2835, %v2833
    %v2898 = vpack.c.b16 %v2836, %v2834
    %v2899 = vpack.c.b16 %v2839, %v2837
    %v2900 = vpack.c.b16 %v2840, %v2838
    %v2901 = vpack.c.b16 %v2843, %v2841
    %v2902 = vpack.c.b16 %v2844, %v2842
    %v2903 = vpack.c.b16 %v2847, %v2845
    %v2904 = vpack.c.b16 %v2848, %v2846
    %v2905 = vpack.c.b16 %v2851, %v2849
    %v2906 = vpack.c.b16 %v2852, %v2850
    %v2907 = vpack.c.b16 %v2855, %v2853
    %v2908 = vpack.c.b16 %v2856, %v2854
    %v2909 = vpack.c.b16 %v2859, %v2857
    %v2910 = vpack.c.b16 %v2860, %v2858
    %v2911 = vpack.c.b16 %v2863, %v2861
    %v2912 = vpack.c.b16 %v2864, %v2862
    %v2913 = vpack.c.b16 %v2867, %v2865
    %v2914 = vpack.c.b16 %v2868, %v2866
    %v2915 = vpack.c.b16 %v2871, %v2869
    %v2916 = vpack.c.b16 %v2872, %v2870
    %v2917 = vpack.c.b16 %v2875, %v2873
    %v2918 = vpack.c.b16 %v2876, %v2874
    %v2919 = vpack.c.b16 %v2879, %v2877
    %v2920 = vpack.c.b16 %v2880, %v2878
    %v2921 = vpack.c.b16 %v2883, %v2881
    %v2922 = vpack.c.b16 %v2884, %v2882
    %v2923 = vpack.c.b16 %v2887, %v2885
    %v2924 = vpack.c.b16 %v2888, %v2886
    %v2925 = vpack.c.b16 %v2891, %v2889
    %v2926 = vpack.c.b16 %v2892, %v2890
    %v2927 = vpack.c.b16 %v2895, %v2893
    %v2928 = vpack.c.b16 %v2896, %v2894
    %2961 = vmatprep.subr.bf16.mxu0 %v2898
    %2962 = vmatpush1.bf16.msra.mxu0 %v2897
    %2963 = vmatprep.subr.bf16.mxu0 %v2900
    %2964 = vmatpush1.bf16.msra.mxu0 %v2899
    %2965 = vmatprep.subr.bf16.mxu0 %v2902
    %2966 = vmatpush1.bf16.msra.mxu0 %v2901
    %2967 = vmatprep.subr.bf16.mxu0 %v2904
    %2968 = vmatpush1.bf16.msra.mxu0 %v2903
    %2969 = vmatprep.subr.bf16.mxu0 %v2906
    %2970 = vmatpush1.bf16.msra.mxu0 %v2905
    %2971 = vmatprep.subr.bf16.mxu0 %v2908
    %2972 = vmatpush1.bf16.msra.mxu0 %v2907
    %2973 = vmatprep.subr.bf16.mxu0 %v2910
    %2974 = vmatpush1.bf16.msra.mxu0 %v2909
    %2975 = vmatprep.subr.bf16.mxu0 %v2912
    %2976 = vmatpush1.bf16.msra.mxu0 %v2911
    %2977 = vmatprep.subr.bf16.mxu0 %v2914
    %2978 = vmatpush1.bf16.msra.mxu0 %v2913
    %2979 = vmatprep.subr.bf16.mxu0 %v2916
    %2980 = vmatpush1.bf16.msra.mxu0 %v2915
    %2981 = vmatprep.subr.bf16.mxu0 %v2918
    %2982 = vmatpush1.bf16.msra.mxu0 %v2917
    %2983 = vmatprep.subr.bf16.mxu0 %v2920
    %2984 = vmatpush1.bf16.msra.mxu0 %v2919
    %2985 = vmatprep.subr.bf16.mxu0 %v2922
    %2986 = vmatpush1.bf16.msra.mxu0 %v2921
    %2987 = vmatprep.subr.bf16.mxu0 %v2924
    %2988 = vmatpush1.bf16.msra.mxu0 %v2923
    %2989 = vmatprep.subr.bf16.mxu0 %v2926
    %2990 = vmatpush1.bf16.msra.mxu0 %v2925
    %2991 = vmatprep.subr.bf16.mxu0 %v2928
    %2992 = vmatpush1.bf16.msra.mxu0 %v2927
    %2993 = vmatprep.mubr.bf16.mxu0 %v2672
    %2994 = vmatmul.mubr.bf16.gmra.mrb[0].mxu0 %v2671
    %v2995 = vpop.f32.mrb[0].mxu0
    %v2996 = vadd.f32 0.0, %v2995
    %v2997 = vpop.f32.mrb[0].mxu0
    %v2998 = vadd.f32 0.0, %v2997
    %v2999 = vpop.f32.mrb[0].mxu0
    %v3000 = vadd.f32 0.0, %v2999
    %v3001 = vpop.f32.mrb[0].mxu0
    %v3002 = vadd.f32 0.0, %v3001
    %3003 = vmatprep.mubr.bf16.mxu0 %v2674
    %3004 = vmatmul.mubr.bf16.gmra.mrb[0].mxu0 %v2673
    %v3005 = vpop.f32.mrb[0].mxu0
    %v3006 = vadd.f32 0.0, %v3005
    %v3007 = vpop.f32.mrb[0].mxu0
    %v3008 = vadd.f32 0.0, %v3007
    %v3009 = vpop.f32.mrb[0].mxu0
    %v3010 = vadd.f32 0.0, %v3009
    %v3011 = vpop.f32.mrb[0].mxu0
    %v3012 = vadd.f32 0.0, %v3011
    %3013 = vdwg.mxu0
    %v3046 = vunpack.c.l.b16 %v2736
    %v3047 = vunpack.c.h.b16 %v2736
    %v3048 = vunpack.c.l.b16 %v2737
    %v3049 = vunpack.c.h.b16 %v2737
    %v3050 = vunpack.c.l.b16 %v2738
    %v3051 = vunpack.c.h.b16 %v2738
    %v3052 = vunpack.c.l.b16 %v2739
    %v3053 = vunpack.c.h.b16 %v2739
    %v3054 = vunpack.c.l.b16 %v2740
    %v3055 = vunpack.c.h.b16 %v2740
    %v3056 = vunpack.c.l.b16 %v2741
    %v3057 = vunpack.c.h.b16 %v2741
    %v3058 = vunpack.c.l.b16 %v2742
    %v3059 = vunpack.c.h.b16 %v2742
    %v3060 = vunpack.c.l.b16 %v2743
    %v3061 = vunpack.c.h.b16 %v2743
    %v3062 = vunpack.c.l.b16 %v2744
    %v3063 = vunpack.c.h.b16 %v2744
    %v3064 = vunpack.c.l.b16 %v2745
    %v3065 = vunpack.c.h.b16 %v2745
    %v3066 = vunpack.c.l.b16 %v2746
    %v3067 = vunpack.c.h.b16 %v2746
    %v3068 = vunpack.c.l.b16 %v2747
    %v3069 = vunpack.c.h.b16 %v2747
    %v3070 = vunpack.c.l.b16 %v2748
    %v3071 = vunpack.c.h.b16 %v2748
    %v3072 = vunpack.c.l.b16 %v2749
    %v3073 = vunpack.c.h.b16 %v2749
    %v3074 = vunpack.c.l.b16 %v2750
    %v3075 = vunpack.c.h.b16 %v2750
    %v3076 = vunpack.c.l.b16 %v2751
    %v3077 = vunpack.c.h.b16 %v2751
    %v3078 = vunpack.c.l.b16 %v2752
    %v3079 = vunpack.c.h.b16 %v2752
    %v3080 = vunpack.c.l.b16 %v2753
    %v3081 = vunpack.c.h.b16 %v2753
    %v3082 = vunpack.c.l.b16 %v2754
    %v3083 = vunpack.c.h.b16 %v2754
    %v3084 = vunpack.c.l.b16 %v2755
    %v3085 = vunpack.c.h.b16 %v2755
    %v3086 = vunpack.c.l.b16 %v2756
    %v3087 = vunpack.c.h.b16 %v2756
    %v3088 = vunpack.c.l.b16 %v2757
    %v3089 = vunpack.c.h.b16 %v2757
    %v3090 = vunpack.c.l.b16 %v2758
    %v3091 = vunpack.c.h.b16 %v2758
    %v3092 = vunpack.c.l.b16 %v2759
    %v3093 = vunpack.c.h.b16 %v2759
    %v3094 = vunpack.c.l.b16 %v2760
    %v3095 = vunpack.c.h.b16 %v2760
    %v3096 = vunpack.c.l.b16 %v2761
    %v3097 = vunpack.c.h.b16 %v2761
    %v3098 = vunpack.c.l.b16 %v2762
    %v3099 = vunpack.c.h.b16 %v2762
    %v3100 = vunpack.c.l.b16 %v2763
    %v3101 = vunpack.c.h.b16 %v2763
    %v3102 = vunpack.c.l.b16 %v2764
    %v3103 = vunpack.c.h.b16 %v2764
    %v3104 = vunpack.c.l.b16 %v2765
    %v3105 = vunpack.c.h.b16 %v2765
    %v3106 = vunpack.c.l.b16 %v2766
    %v3107 = vunpack.c.h.b16 %v2766
    %v3108 = vunpack.c.l.b16 %v2767
    %v3109 = vunpack.c.h.b16 %v2767
    %v3110 = vpack.c.b16 %v3048, %v3046
    %v3111 = vpack.c.b16 %v3049, %v3047
    %v3112 = vpack.c.b16 %v3052, %v3050
    %v3113 = vpack.c.b16 %v3053, %v3051
    %v3114 = vpack.c.b16 %v3056, %v3054
    %v3115 = vpack.c.b16 %v3057, %v3055
    %v3116 = vpack.c.b16 %v3060, %v3058
    %v3117 = vpack.c.b16 %v3061, %v3059
    %v3118 = vpack.c.b16 %v3064, %v3062
    %v3119 = vpack.c.b16 %v3065, %v3063
    %v3120 = vpack.c.b16 %v3068, %v3066
    %v3121 = vpack.c.b16 %v3069, %v3067
    %v3122 = vpack.c.b16 %v3072, %v3070
    %v3123 = vpack.c.b16 %v3073, %v3071
    %v3124 = vpack.c.b16 %v3076, %v3074
    %v3125 = vpack.c.b16 %v3077, %v3075
    %v3126 = vpack.c.b16 %v3080, %v3078
    %v3127 = vpack.c.b16 %v3081, %v3079
    %v3128 = vpack.c.b16 %v3084, %v3082
    %v3129 = vpack.c.b16 %v3085, %v3083
    %v3130 = vpack.c.b16 %v3088, %v3086
    %v3131 = vpack.c.b16 %v3089, %v3087
    %v3132 = vpack.c.b16 %v3092, %v3090
    %v3133 = vpack.c.b16 %v3093, %v3091
    %v3134 = vpack.c.b16 %v3096, %v3094
    %v3135 = vpack.c.b16 %v3097, %v3095
    %v3136 = vpack.c.b16 %v3100, %v3098
    %v3137 = vpack.c.b16 %v3101, %v3099
    %v3138 = vpack.c.b16 %v3104, %v3102
    %v3139 = vpack.c.b16 %v3105, %v3103
    %v3140 = vpack.c.b16 %v3108, %v3106
    %v3141 = vpack.c.b16 %v3109, %v3107
    %3174 = vmatprep.subr.bf16.mxu0 %v3111
    %3175 = vmatpush1.bf16.msra.mxu0 %v3110
    %3176 = vmatprep.subr.bf16.mxu0 %v3113
    %3177 = vmatpush1.bf16.msra.mxu0 %v3112
    %3178 = vmatprep.subr.bf16.mxu0 %v3115
    %3179 = vmatpush1.bf16.msra.mxu0 %v3114
    %3180 = vmatprep.subr.bf16.mxu0 %v3117
    %3181 = vmatpush1.bf16.msra.mxu0 %v3116
    %3182 = vmatprep.subr.bf16.mxu0 %v3119
    %3183 = vmatpush1.bf16.msra.mxu0 %v3118
    %3184 = vmatprep.subr.bf16.mxu0 %v3121
    %3185 = vmatpush1.bf16.msra.mxu0 %v3120
    %3186 = vmatprep.subr.bf16.mxu0 %v3123
    %3187 = vmatpush1.bf16.msra.mxu0 %v3122
    %3188 = vmatprep.subr.bf16.mxu0 %v3125
    %3189 = vmatpush1.bf16.msra.mxu0 %v3124
    %3190 = vmatprep.subr.bf16.mxu0 %v3127
    %3191 = vmatpush1.bf16.msra.mxu0 %v3126
    %3192 = vmatprep.subr.bf16.mxu0 %v3129
    %3193 = vmatpush1.bf16.msra.mxu0 %v3128
    %3194 = vmatprep.subr.bf16.mxu0 %v3131
    %3195 = vmatpush1.bf16.msra.mxu0 %v3130
    %3196 = vmatprep.subr.bf16.mxu0 %v3133
    %3197 = vmatpush1.bf16.msra.mxu0 %v3132
    %3198 = vmatprep.subr.bf16.mxu0 %v3135
    %3199 = vmatpush1.bf16.msra.mxu0 %v3134
    %3200 = vmatprep.subr.bf16.mxu0 %v3137
    %3201 = vmatpush1.bf16.msra.mxu0 %v3136
    %3202 = vmatprep.subr.bf16.mxu0 %v3139
    %3203 = vmatpush1.bf16.msra.mxu0 %v3138
    %3204 = vmatprep.subr.bf16.mxu0 %v3141
    %3205 = vmatpush1.bf16.msra.mxu0 %v3140
    %3206 = vmatprep.mubr.bf16.mxu0 %v2712
    %3207 = vmatmul.mubr.bf16.gmra.mrb[0].mxu0 %v2711
    %v3208 = vpop.f32.mrb[0].mxu0
    %v3209 = vadd.f32 %v2996, %v3208
    %v3210 = vpop.f32.mrb[0].mxu0
    %v3211 = vadd.f32 %v2998, %v3210
    %v3212 = vpop.f32.mrb[0].mxu0
    %v3213 = vadd.f32 %v3000, %v3212
    %v3214 = vpop.f32.mrb[0].mxu0
    %v3215 = vadd.f32 %v3002, %v3214
    %3216 = vmatprep.mubr.bf16.mxu0 %v2714
    %3217 = vmatmul.mubr.bf16.gmra.mrb[0].mxu0 %v2713
    %v3218 = vpop.f32.mrb[0].mxu0
    %v3219 = vadd.f32 %v3006, %v3218
    %v3220 = vpop.f32.mrb[0].mxu0
    %v3221 = vadd.f32 %v3008, %v3220
    %v3222 = vpop.f32.mrb[0].mxu0
    %v3223 = vadd.f32 %v3010, %v3222
    %v3224 = vpop.f32.mrb[0].mxu0
    %v3225 = vadd.f32 %v3012, %v3224
    %3226 = vdwg.mxu0
    %s3227 = scalar_lea.vmem [#allocation6], 2816
    %v3228 = vld [vmem:[%s3227] sm:$0xff]
    %v3229 = vld [vmem:[%s3227 + $0x8] sm:$0xff]
    %v3230 = vld [vmem:[%s3227 + $0x10] sm:$0xff]
    %v3231 = vld [vmem:[%s3227 + $0x18] sm:$0xff]
    %v3232 = vld [vmem:[%s3227 + $0x20] sm:$0xff]
    %v3233 = vld [vmem:[%s3227 + $0x28] sm:$0xff]
    %v3234 = vld [vmem:[%s3227 + $0x30] sm:$0xff]
    %v3235 = vld [vmem:[%s3227 + $0x38] sm:$0xff]
    %v3236 = vld [vmem:[%s3227 + $0x40] sm:$0xff]
    %v3237 = vld [vmem:[%s3227 + $0x48] sm:$0xff]
    %v3238 = vld [vmem:[%s3227 + $0x50] sm:$0xff]
    %v3239 = vld [vmem:[%s3227 + $0x58] sm:$0xff]
    %v3240 = vld [vmem:[%s3227 + $0x60] sm:$0xff]
    %v3241 = vld [vmem:[%s3227 + $0x68] sm:$0xff]
    %v3242 = vld [vmem:[%s3227 + $0x70] sm:$0xff]
    %v3243 = vld [vmem:[%s3227 + $0x78] sm:$0xff]
    %v3244 = vld [vmem:[%s3227 + $0x80] sm:$0xff]
    %v3245 = vld [vmem:[%s3227 + $0x88] sm:$0xff]
    %v3246 = vld [vmem:[%s3227 + $0x90] sm:$0xff]
    %v3247 = vld [vmem:[%s3227 + $0x98] sm:$0xff]
    %v3248 = vld [vmem:[%s3227 + $0xa0] sm:$0xff]
    %v3249 = vld [vmem:[%s3227 + $0xa8] sm:$0xff]
    %v3250 = vld [vmem:[%s3227 + $0xb0] sm:$0xff]
    %v3251 = vld [vmem:[%s3227 + $0xb8] sm:$0xff]
    %v3252 = vld [vmem:[%s3227 + $0xc0] sm:$0xff]
    %v3253 = vld [vmem:[%s3227 + $0xc8] sm:$0xff]
    %v3254 = vld [vmem:[%s3227 + $0xd0] sm:$0xff]
    %v3255 = vld [vmem:[%s3227 + $0xd8] sm:$0xff]
    %v3256 = vld [vmem:[%s3227 + $0xe0] sm:$0xff]
    %v3257 = vld [vmem:[%s3227 + $0xe8] sm:$0xff]
    %v3258 = vld [vmem:[%s3227 + $0xf0] sm:$0xff]
    %v3259 = vld [vmem:[%s3227 + $0xf8] sm:$0xff]
    %v3292 = vunpack.c.l.b16 %v3228
    %v3293 = vunpack.c.h.b16 %v3228
    %v3294 = vunpack.c.l.b16 %v3229
    %v3295 = vunpack.c.h.b16 %v3229
    %v3296 = vunpack.c.l.b16 %v3230
    %v3297 = vunpack.c.h.b16 %v3230
    %v3298 = vunpack.c.l.b16 %v3231
    %v3299 = vunpack.c.h.b16 %v3231
    %v3300 = vunpack.c.l.b16 %v3232
    %v3301 = vunpack.c.h.b16 %v3232
    %v3302 = vunpack.c.l.b16 %v3233
    %v3303 = vunpack.c.h.b16 %v3233
    %v3304 = vunpack.c.l.b16 %v3234
    %v3305 = vunpack.c.h.b16 %v3234
    %v3306 = vunpack.c.l.b16 %v3235
    %v3307 = vunpack.c.h.b16 %v3235
    %v3308 = vunpack.c.l.b16 %v3236
    %v3309 = vunpack.c.h.b16 %v3236
    %v3310 = vunpack.c.l.b16 %v3237
    %v3311 = vunpack.c.h.b16 %v3237
    %v3312 = vunpack.c.l.b16 %v3238
    %v3313 = vunpack.c.h.b16 %v3238
    %v3314 = vunpack.c.l.b16 %v3239
    %v3315 = vunpack.c.h.b16 %v3239
    %v3316 = vunpack.c.l.b16 %v3240
    %v3317 = vunpack.c.h.b16 %v3240
    %v3318 = vunpack.c.l.b16 %v3241
    %v3319 = vunpack.c.h.b16 %v3241
    %v3320 = vunpack.c.l.b16 %v3242
    %v3321 = vunpack.c.h.b16 %v3242
    %v3322 = vunpack.c.l.b16 %v3243
    %v3323 = vunpack.c.h.b16 %v3243
    %v3324 = vunpack.c.l.b16 %v3244
    %v3325 = vunpack.c.h.b16 %v3244
    %v3326 = vunpack.c.l.b16 %v3245
    %v3327 = vunpack.c.h.b16 %v3245
    %v3328 = vunpack.c.l.b16 %v3246
    %v3329 = vunpack.c.h.b16 %v3246
    %v3330 = vunpack.c.l.b16 %v3247
    %v3331 = vunpack.c.h.b16 %v3247
    %v3332 = vunpack.c.l.b16 %v3248
    %v3333 = vunpack.c.h.b16 %v3248
    %v3334 = vunpack.c.l.b16 %v3249
    %v3335 = vunpack.c.h.b16 %v3249
    %v3336 = vunpack.c.l.b16 %v3250
    %v3337 = vunpack.c.h.b16 %v3250
    %v3338 = vunpack.c.l.b16 %v3251
    %v3339 = vunpack.c.h.b16 %v3251
    %v3340 = vunpack.c.l.b16 %v3252
    %v3341 = vunpack.c.h.b16 %v3252
    %v3342 = vunpack.c.l.b16 %v3253
    %v3343 = vunpack.c.h.b16 %v3253
    %v3344 = vunpack.c.l.b16 %v3254
    %v3345 = vunpack.c.h.b16 %v3254
    %v3346 = vunpack.c.l.b16 %v3255
    %v3347 = vunpack.c.h.b16 %v3255
    %v3348 = vunpack.c.l.b16 %v3256
    %v3349 = vunpack.c.h.b16 %v3256
    %v3350 = vunpack.c.l.b16 %v3257
    %v3351 = vunpack.c.h.b16 %v3257
    %v3352 = vunpack.c.l.b16 %v3258
    %v3353 = vunpack.c.h.b16 %v3258
    %v3354 = vunpack.c.l.b16 %v3259
    %v3355 = vunpack.c.h.b16 %v3259
    %v3356 = vpack.c.b16 %v3294, %v3292
    %v3357 = vpack.c.b16 %v3295, %v3293
    %v3358 = vpack.c.b16 %v3298, %v3296
    %v3359 = vpack.c.b16 %v3299, %v3297
    %v3360 = vpack.c.b16 %v3302, %v3300
    %v3361 = vpack.c.b16 %v3303, %v3301
    %v3362 = vpack.c.b16 %v3306, %v3304
    %v3363 = vpack.c.b16 %v3307, %v3305
    %v3364 = vpack.c.b16 %v3310, %v3308
    %v3365 = vpack.c.b16 %v3311, %v3309
    %v3366 = vpack.c.b16 %v3314, %v3312
    %v3367 = vpack.c.b16 %v3315, %v3313
    %v3368 = vpack.c.b16 %v3318, %v3316
    %v3369 = vpack.c.b16 %v3319, %v3317
    %v3370 = vpack.c.b16 %v3322, %v3320
    %v3371 = vpack.c.b16 %v3323, %v3321
    %v3372 = vpack.c.b16 %v3326, %v3324
    %v3373 = vpack.c.b16 %v3327, %v3325
    %v3374 = vpack.c.b16 %v3330, %v3328
    %v3375 = vpack.c.b16 %v3331, %v3329
    %v3376 = vpack.c.b16 %v3334, %v3332
    %v3377 = vpack.c.b16 %v3335, %v3333
    %v3378 = vpack.c.b16 %v3338, %v3336
    %v3379 = vpack.c.b16 %v3339, %v3337
    %v3380 = vpack.c.b16 %v3342, %v3340
    %v3381 = vpack.c.b16 %v3343, %v3341
    %v3382 = vpack.c.b16 %v3346, %v3344
    %v3383 = vpack.c.b16 %v3347, %v3345
    %v3384 = vpack.c.b16 %v3350, %v3348
    %v3385 = vpack.c.b16 %v3351, %v3349
    %v3386 = vpack.c.b16 %v3354, %v3352
    %v3387 = vpack.c.b16 %v3355, %v3353
    %3420 = vmatprep.subr.bf16.mxu0 %v3357
    %3421 = vmatpush1.bf16.msra.mxu0 %v3356
    %3422 = vmatprep.subr.bf16.mxu0 %v3359
    %3423 = vmatpush1.bf16.msra.mxu0 %v3358
    %3424 = vmatprep.subr.bf16.mxu0 %v3361
    %3425 = vmatpush1.bf16.msra.mxu0 %v3360
    %3426 = vmatprep.subr.bf16.mxu0 %v3363
    %3427 = vmatpush1.bf16.msra.mxu0 %v3362
    %3428 = vmatprep.subr.bf16.mxu0 %v3365
    %3429 = vmatpush1.bf16.msra.mxu0 %v3364
    %3430 = vmatprep.subr.bf16.mxu0 %v3367
    %3431 = vmatpush1.bf16.msra.mxu0 %v3366
    %3432 = vmatprep.subr.bf16.mxu0 %v3369
    %3433 = vmatpush1.bf16.msra.mxu0 %v3368
    %3434 = vmatprep.subr.bf16.mxu0 %v3371
    %3435 = vmatpush1.bf16.msra.mxu0 %v3370
    %3436 = vmatprep.subr.bf16.mxu0 %v3373
    %3437 = vmatpush1.bf16.msra.mxu0 %v3372
    %3438 = vmatprep.subr.bf16.mxu0 %v3375
    %3439 = vmatpush1.bf16.msra.mxu0 %v3374
    %3440 = vmatprep.subr.bf16.mxu0 %v3377
    %3441 = vmatpush1.bf16.msra.mxu0 %v3376
    %3442 = vmatprep.subr.bf16.mxu0 %v3379
    %3443 = vmatpush1.bf16.msra.mxu0 %v3378
    %3444 = vmatprep.subr.bf16.mxu0 %v3381
    %3445 = vmatpush1.bf16.msra.mxu0 %v3380
    %3446 = vmatprep.subr.bf16.mxu0 %v3383
    %3447 = vmatpush1.bf16.msra.mxu0 %v3382
    %3448 = vmatprep.subr.bf16.mxu0 %v3385
    %3449 = vmatpush1.bf16.msra.mxu0 %v3384
    %3450 = vmatprep.subr.bf16.mxu0 %v3387
    %3451 = vmatpush1.bf16.msra.mxu0 %v3386
    %3452 = vmatprep.mubr.bf16.mxu0 %v2732
    %3453 = vmatmul.mubr.bf16.gmra.mrb[0].mxu0 %v2731
    %v3454 = vpop.f32.mrb[0].mxu0
    %v3455 = vadd.f32 0.0, %v3454
    %v3456 = vpop.f32.mrb[0].mxu0
    %v3457 = vadd.f32 0.0, %v3456
    %v3458 = vpop.f32.mrb[0].mxu0
    %v3459 = vadd.f32 0.0, %v3458
    %v3460 = vpop.f32.mrb[0].mxu0
    %v3461 = vadd.f32 0.0, %v3460
    %3462 = vmatprep.mubr.bf16.mxu0 %v2734
    %3463 = vmatmul.mubr.bf16.gmra.mrb[0].mxu0 %v2733
    %v3464 = vpop.f32.mrb[0].mxu0
    %v3465 = vadd.f32 0.0, %v3464
    %v3466 = vpop.f32.mrb[0].mxu0
    %v3467 = vadd.f32 0.0, %v3466
    %v3468 = vpop.f32.mrb[0].mxu0
    %v3469 = vadd.f32 0.0, %v3468
    %v3470 = vpop.f32.mrb[0].mxu0
    %v3471 = vadd.f32 0.0, %v3470
    %3472 = vdwg.mxu0
    %v3473 = vadd.f32 %v3209, %v3455
    %v3474 = vadd.f32 %v3211, %v3457
    %v3475 = vadd.f32 %v3213, %v3459
    %v3476 = vadd.f32 %v3215, %v3461
    %v3477 = vadd.f32 %v3219, %v3465
    %v3478 = vadd.f32 %v3221, %v3467
    %v3479 = vadd.f32 %v3223, %v3469
    %v3480 = vadd.f32 %v3225, %v3471
    %s3481 = scalar_lea.vmem [#allocation8], 6
    %v3482 = vld [vmem:[%s3481] sm:$0x3]
    %v3484 = vlaneseq
    %v3485 = vshrl.u32 %v3484, 7
    %v3486 = vsub.s32 0, %v3485
    %v3487 = vrot.slane %v3482, %v3486
    %v3488 = vlaneseq
    %v3489 = vshrl.u32 %v3488, 7
    %v3490 = vsub.s32 1, %v3489
    %v3491 = vrot.slane %v3482, %v3490
    %v3494 = vadd.f32 %v3473, %v3487
    %v3495 = vadd.f32 %v3474, %v3491
    %v3496 = vadd.f32 %v3475, %v3487
    %v3497 = vadd.f32 %v3476, %v3491
    %v3498 = vadd.f32 %v3477, %v3487
    %v3499 = vadd.f32 %v3478, %v3491
    %v3500 = vadd.f32 %v3479, %v3487
    %v3501 = vadd.f32 %v3480, %v3491
    %vm3502 = vcmp.ge.f32.partialorder %v3494, 0.0
    %vm3503 = vcmp.ge.f32.partialorder %v3495, 0.0
    %vm3504 = vcmp.ge.f32.partialorder %v3496, 0.0
    %vm3505 = vcmp.ge.f32.partialorder %v3497, 0.0
    %vm3506 = vcmp.ge.f32.partialorder %v3498, 0.0
    %vm3507 = vcmp.ge.f32.partialorder %v3499, 0.0
    %vm3508 = vcmp.ge.f32.partialorder %v3500, 0.0
    %vm3509 = vcmp.ge.f32.partialorder %v3501, 0.0
    %v3510 = vmul.f32 %v3494, 0.2
    %v3511 = vmul.f32 %v3495, 0.2
    %v3512 = vmul.f32 %v3496, 0.2
    %v3513 = vmul.f32 %v3497, 0.2
    %v3514 = vmul.f32 %v3498, 0.2
    %v3515 = vmul.f32 %v3499, 0.2
    %v3516 = vmul.f32 %v3500, 0.2
    %v3517 = vmul.f32 %v3501, 0.2
    %v3518 = vsel %vm3502, %v3494, %v3510
    %v3519 = vsel %vm3503, %v3495, %v3511
    %v3520 = vsel %vm3504, %v3496, %v3512
    %v3521 = vsel %vm3505, %v3497, %v3513
    %v3522 = vsel %vm3506, %v3498, %v3514
    %v3523 = vsel %vm3507, %v3499, %v3515
    %v3524 = vsel %vm3508, %v3500, %v3516
    %v3525 = vsel %vm3509, %v3501, %v3517
    %v3526 = vpack.c.bf16 %v3520, %v3518
    %v3527 = vpack.c.bf16 %v3521, %v3519
    %v3528 = vpack.c.bf16 %v3524, %v3522
    %v3529 = vpack.c.bf16 %v3525, %v3523
    %3530 = vst [vmem:[#allocation2] sm:$0xff] %v3526
    %3531 = vst [vmem:[#allocation2 + $0x8] sm:$0xff] %v3527
    %3532 = vst [vmem:[#allocation2 + $0x10] sm:$0xff] %v3528
    %3533 = vst [vmem:[#allocation2 + $0x18] sm:$0xff] %v3529
    %v3534 = vld [vmem:[#allocation2] sm:$0xff]
    %v3535 = vld [vmem:[#allocation2 + $0x8] sm:$0xff]
    %v3536 = vld [vmem:[#allocation2 + $0x10] sm:$0xff]
    %v3537 = vld [vmem:[#allocation2 + $0x18] sm:$0xff]
    %v3539 = vshrl.u32 %v3534, 16
    %v3542 = vshrl.u32 %v3535, 16
    %v3545 = vshrl.u32 %v3536, 16
    %v3548 = vshrl.u32 %v3537, 16
    %v3554 = vrot.slane %v3539, 7
    %v3555 = vshll.u32 %v3534, 16
    %v3557 = vor.u32 %v3554, %v3555
    %v3558 = vrot.slane %v3542, 7
    %v3559 = vshll.u32 %v3535, 16
    %v3561 = vor.u32 %v3558, %v3559
    %v3562 = vrot.slane %v3545, 7
    %v3563 = vshll.u32 %v3536, 16
    %v3565 = vor.u32 %v3562, %v3563
    %v3566 = vrot.slane %v3548, 7
    %v3567 = vshll.u32 %v3537, 16
    %v3569 = vor.u32 %v3566, %v3567
    %v3574 = vsel %vm120, %v3539, %v3557
    %v3575 = vsel %vm120, %v3542, %v3561
    %v3576 = vsel %vm120, %v3545, %v3565
    %v3577 = vsel %vm120, %v3548, %v3569
    %v3578 = vrot.slane %v3555, 1
    %v3579 = vor.u32 %v3539, %v3578
    %v3580 = vrot.slane %v3559, 1
    %v3581 = vor.u32 %v3542, %v3580
    %v3582 = vrot.slane %v3563, 1
    %v3583 = vor.u32 %v3545, %v3582
    %v3584 = vrot.slane %v3567, 1
    %v3585 = vor.u32 %v3548, %v3584
    %v3594 = vsel %vm143, %v3579, %v3555
    %v3595 = vsel %vm143, %v3581, %v3559
    %v3596 = vsel %vm143, %v3583, %v3563
    %v3597 = vsel %vm143, %v3585, %v3567
    %s3598 = scalar_lea.vmem [#allocation6], 3072
    %v3599 = vld [vmem:[%s3598] sm:$0xff]
    %v3600 = vld [vmem:[%s3598 + $0x8] sm:$0xff]
    %v3601 = vld [vmem:[%s3598 + $0x10] sm:$0xff]
    %v3602 = vld [vmem:[%s3598 + $0x18] sm:$0xff]
    %v3603 = vld [vmem:[%s3598 + $0x20] sm:$0xff]
    %v3604 = vld [vmem:[%s3598 + $0x28] sm:$0xff]
    %v3605 = vld [vmem:[%s3598 + $0x30] sm:$0xff]
    %v3606 = vld [vmem:[%s3598 + $0x38] sm:$0xff]
    %v3607 = vld [vmem:[%s3598 + $0x40] sm:$0xff]
    %v3608 = vld [vmem:[%s3598 + $0x48] sm:$0xff]
    %v3609 = vld [vmem:[%s3598 + $0x50] sm:$0xff]
    %v3610 = vld [vmem:[%s3598 + $0x58] sm:$0xff]
    %v3611 = vld [vmem:[%s3598 + $0x60] sm:$0xff]
    %v3612 = vld [vmem:[%s3598 + $0x68] sm:$0xff]
    %v3613 = vld [vmem:[%s3598 + $0x70] sm:$0xff]
    %v3614 = vld [vmem:[%s3598 + $0x78] sm:$0xff]
    %v3615 = vld [vmem:[%s3598 + $0x80] sm:$0xff]
    %v3616 = vld [vmem:[%s3598 + $0x88] sm:$0xff]
    %v3617 = vld [vmem:[%s3598 + $0x90] sm:$0xff]
    %v3618 = vld [vmem:[%s3598 + $0x98] sm:$0xff]
    %v3619 = vld [vmem:[%s3598 + $0xa0] sm:$0xff]
    %v3620 = vld [vmem:[%s3598 + $0xa8] sm:$0xff]
    %v3621 = vld [vmem:[%s3598 + $0xb0] sm:$0xff]
    %v3622 = vld [vmem:[%s3598 + $0xb8] sm:$0xff]
    %v3623 = vld [vmem:[%s3598 + $0xc0] sm:$0xff]
    %v3624 = vld [vmem:[%s3598 + $0xc8] sm:$0xff]
    %v3625 = vld [vmem:[%s3598 + $0xd0] sm:$0xff]
    %v3626 = vld [vmem:[%s3598 + $0xd8] sm:$0xff]
    %v3627 = vld [vmem:[%s3598 + $0xe0] sm:$0xff]
    %v3628 = vld [vmem:[%s3598 + $0xe8] sm:$0xff]
    %v3629 = vld [vmem:[%s3598 + $0xf0] sm:$0xff]
    %v3630 = vld [vmem:[%s3598 + $0xf8] sm:$0xff]
    %s3631 = scalar_lea.vmem [#allocation6], 3328
    %v3632 = vld [vmem:[%s3631] sm:$0xff]
    %v3633 = vld [vmem:[%s3631 + $0x8] sm:$0xff]
    %v3634 = vld [vmem:[%s3631 + $0x10] sm:$0xff]
    %v3635 = vld [vmem:[%s3631 + $0x18] sm:$0xff]
    %v3636 = vld [vmem:[%s3631 + $0x20] sm:$0xff]
    %v3637 = vld [vmem:[%s3631 + $0x28] sm:$0xff]
    %v3638 = vld [vmem:[%s3631 + $0x30] sm:$0xff]
    %v3639 = vld [vmem:[%s3631 + $0x38] sm:$0xff]
    %v3640 = vld [vmem:[%s3631 + $0x40] sm:$0xff]
    %v3641 = vld [vmem:[%s3631 + $0x48] sm:$0xff]
    %v3642 = vld [vmem:[%s3631 + $0x50] sm:$0xff]
    %v3643 = vld [vmem:[%s3631 + $0x58] sm:$0xff]
    %v3644 = vld [vmem:[%s3631 + $0x60] sm:$0xff]
    %v3645 = vld [vmem:[%s3631 + $0x68] sm:$0xff]
    %v3646 = vld [vmem:[%s3631 + $0x70] sm:$0xff]
    %v3647 = vld [vmem:[%s3631 + $0x78] sm:$0xff]
    %v3648 = vld [vmem:[%s3631 + $0x80] sm:$0xff]
    %v3649 = vld [vmem:[%s3631 + $0x88] sm:$0xff]
    %v3650 = vld [vmem:[%s3631 + $0x90] sm:$0xff]
    %v3651 = vld [vmem:[%s3631 + $0x98] sm:$0xff]
    %v3652 = vld [vmem:[%s3631 + $0xa0] sm:$0xff]
    %v3653 = vld [vmem:[%s3631 + $0xa8] sm:$0xff]
    %v3654 = vld [vmem:[%s3631 + $0xb0] sm:$0xff]
    %v3655 = vld [vmem:[%s3631 + $0xb8] sm:$0xff]
    %v3656 = vld [vmem:[%s3631 + $0xc0] sm:$0xff]
    %v3657 = vld [vmem:[%s3631 + $0xc8] sm:$0xff]
    %v3658 = vld [vmem:[%s3631 + $0xd0] sm:$0xff]
    %v3659 = vld [vmem:[%s3631 + $0xd8] sm:$0xff]
    %v3660 = vld [vmem:[%s3631 + $0xe0] sm:$0xff]
    %v3661 = vld [vmem:[%s3631 + $0xe8] sm:$0xff]
    %v3662 = vld [vmem:[%s3631 + $0xf0] sm:$0xff]
    %v3663 = vld [vmem:[%s3631 + $0xf8] sm:$0xff]
    %v3696 = vunpack.c.l.b16 %v3632
    %v3697 = vunpack.c.h.b16 %v3632
    %v3698 = vunpack.c.l.b16 %v3633
    %v3699 = vunpack.c.h.b16 %v3633
    %v3700 = vunpack.c.l.b16 %v3634
    %v3701 = vunpack.c.h.b16 %v3634
    %v3702 = vunpack.c.l.b16 %v3635
    %v3703 = vunpack.c.h.b16 %v3635
    %v3704 = vunpack.c.l.b16 %v3636
    %v3705 = vunpack.c.h.b16 %v3636
    %v3706 = vunpack.c.l.b16 %v3637
    %v3707 = vunpack.c.h.b16 %v3637
    %v3708 = vunpack.c.l.b16 %v3638
    %v3709 = vunpack.c.h.b16 %v3638
    %v3710 = vunpack.c.l.b16 %v3639
    %v3711 = vunpack.c.h.b16 %v3639
    %v3712 = vunpack.c.l.b16 %v3640
    %v3713 = vunpack.c.h.b16 %v3640
    %v3714 = vunpack.c.l.b16 %v3641
    %v3715 = vunpack.c.h.b16 %v3641
    %v3716 = vunpack.c.l.b16 %v3642
    %v3717 = vunpack.c.h.b16 %v3642
    %v3718 = vunpack.c.l.b16 %v3643
    %v3719 = vunpack.c.h.b16 %v3643
    %v3720 = vunpack.c.l.b16 %v3644
    %v3721 = vunpack.c.h.b16 %v3644
    %v3722 = vunpack.c.l.b16 %v3645
    %v3723 = vunpack.c.h.b16 %v3645
    %v3724 = vunpack.c.l.b16 %v3646
    %v3725 = vunpack.c.h.b16 %v3646
    %v3726 = vunpack.c.l.b16 %v3647
    %v3727 = vunpack.c.h.b16 %v3647
    %v3728 = vunpack.c.l.b16 %v3648
    %v3729 = vunpack.c.h.b16 %v3648
    %v3730 = vunpack.c.l.b16 %v3649
    %v3731 = vunpack.c.h.b16 %v3649
    %v3732 = vunpack.c.l.b16 %v3650
    %v3733 = vunpack.c.h.b16 %v3650
    %v3734 = vunpack.c.l.b16 %v3651
    %v3735 = vunpack.c.h.b16 %v3651
    %v3736 = vunpack.c.l.b16 %v3652
    %v3737 = vunpack.c.h.b16 %v3652
    %v3738 = vunpack.c.l.b16 %v3653
    %v3739 = vunpack.c.h.b16 %v3653
    %v3740 = vunpack.c.l.b16 %v3654
    %v3741 = vunpack.c.h.b16 %v3654
    %v3742 = vunpack.c.l.b16 %v3655
    %v3743 = vunpack.c.h.b16 %v3655
    %v3744 = vunpack.c.l.b16 %v3656
    %v3745 = vunpack.c.h.b16 %v3656
    %v3746 = vunpack.c.l.b16 %v3657
    %v3747 = vunpack.c.h.b16 %v3657
    %v3748 = vunpack.c.l.b16 %v3658
    %v3749 = vunpack.c.h.b16 %v3658
    %v3750 = vunpack.c.l.b16 %v3659
    %v3751 = vunpack.c.h.b16 %v3659
    %v3752 = vunpack.c.l.b16 %v3660
    %v3753 = vunpack.c.h.b16 %v3660
    %v3754 = vunpack.c.l.b16 %v3661
    %v3755 = vunpack.c.h.b16 %v3661
    %v3756 = vunpack.c.l.b16 %v3662
    %v3757 = vunpack.c.h.b16 %v3662
    %v3758 = vunpack.c.l.b16 %v3663
    %v3759 = vunpack.c.h.b16 %v3663
    %v3760 = vpack.c.b16 %v3698, %v3696
    %v3761 = vpack.c.b16 %v3699, %v3697
    %v3762 = vpack.c.b16 %v3702, %v3700
    %v3763 = vpack.c.b16 %v3703, %v3701
    %v3764 = vpack.c.b16 %v3706, %v3704
    %v3765 = vpack.c.b16 %v3707, %v3705
    %v3766 = vpack.c.b16 %v3710, %v3708
    %v3767 = vpack.c.b16 %v3711, %v3709
    %v3768 = vpack.c.b16 %v3714, %v3712
    %v3769 = vpack.c.b16 %v3715, %v3713
    %v3770 = vpack.c.b16 %v3718, %v3716
    %v3771 = vpack.c.b16 %v3719, %v3717
    %v3772 = vpack.c.b16 %v3722, %v3720
    %v3773 = vpack.c.b16 %v3723, %v3721
    %v3774 = vpack.c.b16 %v3726, %v3724
    %v3775 = vpack.c.b16 %v3727, %v3725
    %v3776 = vpack.c.b16 %v3730, %v3728
    %v3777 = vpack.c.b16 %v3731, %v3729
    %v3778 = vpack.c.b16 %v3734, %v3732
    %v3779 = vpack.c.b16 %v3735, %v3733
    %v3780 = vpack.c.b16 %v3738, %v3736
    %v3781 = vpack.c.b16 %v3739, %v3737
    %v3782 = vpack.c.b16 %v3742, %v3740
    %v3783 = vpack.c.b16 %v3743, %v3741
    %v3784 = vpack.c.b16 %v3746, %v3744
    %v3785 = vpack.c.b16 %v3747, %v3745
    %v3786 = vpack.c.b16 %v3750, %v3748
    %v3787 = vpack.c.b16 %v3751, %v3749
    %v3788 = vpack.c.b16 %v3754, %v3752
    %v3789 = vpack.c.b16 %v3755, %v3753
    %v3790 = vpack.c.b16 %v3758, %v3756
    %v3791 = vpack.c.b16 %v3759, %v3757
    %3824 = vmatprep.subr.bf16.mxu0 %v3761
    %3825 = vmatpush1.bf16.msra.mxu0 %v3760
    %3826 = vmatprep.subr.bf16.mxu0 %v3763
    %3827 = vmatpush1.bf16.msra.mxu0 %v3762
    %3828 = vmatprep.subr.bf16.mxu0 %v3765
    %3829 = vmatpush1.bf16.msra.mxu0 %v3764
    %3830 = vmatprep.subr.bf16.mxu0 %v3767
    %3831 = vmatpush1.bf16.msra.mxu0 %v3766
    %3832 = vmatprep.subr.bf16.mxu0 %v3769
    %3833 = vmatpush1.bf16.msra.mxu0 %v3768
    %3834 = vmatprep.subr.bf16.mxu0 %v3771
    %3835 = vmatpush1.bf16.msra.mxu0 %v3770
    %3836 = vmatprep.subr.bf16.mxu0 %v3773
    %3837 = vmatpush1.bf16.msra.mxu0 %v3772
    %3838 = vmatprep.subr.bf16.mxu0 %v3775
    %3839 = vmatpush1.bf16.msra.mxu0 %v3774
    %3840 = vmatprep.subr.bf16.mxu0 %v3777
    %3841 = vmatpush1.bf16.msra.mxu0 %v3776
    %3842 = vmatprep.subr.bf16.mxu0 %v3779
    %3843 = vmatpush1.bf16.msra.mxu0 %v3778
    %3844 = vmatprep.subr.bf16.mxu0 %v3781
    %3845 = vmatpush1.bf16.msra.mxu0 %v3780
    %3846 = vmatprep.subr.bf16.mxu0 %v3783
    %3847 = vmatpush1.bf16.msra.mxu0 %v3782
    %3848 = vmatprep.subr.bf16.mxu0 %v3785
    %3849 = vmatpush1.bf16.msra.mxu0 %v3784
    %3850 = vmatprep.subr.bf16.mxu0 %v3787
    %3851 = vmatpush1.bf16.msra.mxu0 %v3786
    %3852 = vmatprep.subr.bf16.mxu0 %v3789
    %3853 = vmatpush1.bf16.msra.mxu0 %v3788
    %3854 = vmatprep.subr.bf16.mxu0 %v3791
    %3855 = vmatpush1.bf16.msra.mxu0 %v3790
    %3856 = vmatprep.mubr.bf16.mxu0 %v3535
    %3857 = vmatmul.mubr.bf16.gmra.mrb[0].mxu0 %v3534
    %v3858 = vpop.f32.mrb[0].mxu0
    %v3859 = vadd.f32 0.0, %v3858
    %v3860 = vpop.f32.mrb[0].mxu0
    %v3861 = vadd.f32 0.0, %v3860
    %v3862 = vpop.f32.mrb[0].mxu0
    %v3863 = vadd.f32 0.0, %v3862
    %v3864 = vpop.f32.mrb[0].mxu0
    %v3865 = vadd.f32 0.0, %v3864
    %3866 = vmatprep.mubr.bf16.mxu0 %v3537
    %3867 = vmatmul.mubr.bf16.gmra.mrb[0].mxu0 %v3536
    %v3868 = vpop.f32.mrb[0].mxu0
    %v3869 = vadd.f32 0.0, %v3868
    %v3870 = vpop.f32.mrb[0].mxu0
    %v3871 = vadd.f32 0.0, %v3870
    %v3872 = vpop.f32.mrb[0].mxu0
    %v3873 = vadd.f32 0.0, %v3872
    %v3874 = vpop.f32.mrb[0].mxu0
    %v3875 = vadd.f32 0.0, %v3874
    %3876 = vdwg.mxu0
    %v3909 = vunpack.c.l.b16 %v3599
    %v3910 = vunpack.c.h.b16 %v3599
    %v3911 = vunpack.c.l.b16 %v3600
    %v3912 = vunpack.c.h.b16 %v3600
    %v3913 = vunpack.c.l.b16 %v3601
    %v3914 = vunpack.c.h.b16 %v3601
    %v3915 = vunpack.c.l.b16 %v3602
    %v3916 = vunpack.c.h.b16 %v3602
    %v3917 = vunpack.c.l.b16 %v3603
    %v3918 = vunpack.c.h.b16 %v3603
    %v3919 = vunpack.c.l.b16 %v3604
    %v3920 = vunpack.c.h.b16 %v3604
    %v3921 = vunpack.c.l.b16 %v3605
    %v3922 = vunpack.c.h.b16 %v3605
    %v3923 = vunpack.c.l.b16 %v3606
    %v3924 = vunpack.c.h.b16 %v3606
    %v3925 = vunpack.c.l.b16 %v3607
    %v3926 = vunpack.c.h.b16 %v3607
    %v3927 = vunpack.c.l.b16 %v3608
    %v3928 = vunpack.c.h.b16 %v3608
    %v3929 = vunpack.c.l.b16 %v3609
    %v3930 = vunpack.c.h.b16 %v3609
    %v3931 = vunpack.c.l.b16 %v3610
    %v3932 = vunpack.c.h.b16 %v3610
    %v3933 = vunpack.c.l.b16 %v3611
    %v3934 = vunpack.c.h.b16 %v3611
    %v3935 = vunpack.c.l.b16 %v3612
    %v3936 = vunpack.c.h.b16 %v3612
    %v3937 = vunpack.c.l.b16 %v3613
    %v3938 = vunpack.c.h.b16 %v3613
    %v3939 = vunpack.c.l.b16 %v3614
    %v3940 = vunpack.c.h.b16 %v3614
    %v3941 = vunpack.c.l.b16 %v3615
    %v3942 = vunpack.c.h.b16 %v3615
    %v3943 = vunpack.c.l.b16 %v3616
    %v3944 = vunpack.c.h.b16 %v3616
    %v3945 = vunpack.c.l.b16 %v3617
    %v3946 = vunpack.c.h.b16 %v3617
    %v3947 = vunpack.c.l.b16 %v3618
    %v3948 = vunpack.c.h.b16 %v3618
    %v3949 = vunpack.c.l.b16 %v3619
    %v3950 = vunpack.c.h.b16 %v3619
    %v3951 = vunpack.c.l.b16 %v3620
    %v3952 = vunpack.c.h.b16 %v3620
    %v3953 = vunpack.c.l.b16 %v3621
    %v3954 = vunpack.c.h.b16 %v3621
    %v3955 = vunpack.c.l.b16 %v3622
    %v3956 = vunpack.c.h.b16 %v3622
    %v3957 = vunpack.c.l.b16 %v3623
    %v3958 = vunpack.c.h.b16 %v3623
    %v3959 = vunpack.c.l.b16 %v3624
    %v3960 = vunpack.c.h.b16 %v3624
    %v3961 = vunpack.c.l.b16 %v3625
    %v3962 = vunpack.c.h.b16 %v3625
    %v3963 = vunpack.c.l.b16 %v3626
    %v3964 = vunpack.c.h.b16 %v3626
    %v3965 = vunpack.c.l.b16 %v3627
    %v3966 = vunpack.c.h.b16 %v3627
    %v3967 = vunpack.c.l.b16 %v3628
    %v3968 = vunpack.c.h.b16 %v3628
    %v3969 = vunpack.c.l.b16 %v3629
    %v3970 = vunpack.c.h.b16 %v3629
    %v3971 = vunpack.c.l.b16 %v3630
    %v3972 = vunpack.c.h.b16 %v3630
    %v3973 = vpack.c.b16 %v3911, %v3909
    %v3974 = vpack.c.b16 %v3912, %v3910
    %v3975 = vpack.c.b16 %v3915, %v3913
    %v3976 = vpack.c.b16 %v3916, %v3914
    %v3977 = vpack.c.b16 %v3919, %v3917
    %v3978 = vpack.c.b16 %v3920, %v3918
    %v3979 = vpack.c.b16 %v3923, %v3921
    %v3980 = vpack.c.b16 %v3924, %v3922
    %v3981 = vpack.c.b16 %v3927, %v3925
    %v3982 = vpack.c.b16 %v3928, %v3926
    %v3983 = vpack.c.b16 %v3931, %v3929
    %v3984 = vpack.c.b16 %v3932, %v3930
    %v3985 = vpack.c.b16 %v3935, %v3933
    %v3986 = vpack.c.b16 %v3936, %v3934
    %v3987 = vpack.c.b16 %v3939, %v3937
    %v3988 = vpack.c.b16 %v3940, %v3938
    %v3989 = vpack.c.b16 %v3943, %v3941
    %v3990 = vpack.c.b16 %v3944, %v3942
    %v3991 = vpack.c.b16 %v3947, %v3945
    %v3992 = vpack.c.b16 %v3948, %v3946
    %v3993 = vpack.c.b16 %v3951, %v3949
    %v3994 = vpack.c.b16 %v3952, %v3950
    %v3995 = vpack.c.b16 %v3955, %v3953
    %v3996 = vpack.c.b16 %v3956, %v3954
    %v3997 = vpack.c.b16 %v3959, %v3957
    %v3998 = vpack.c.b16 %v3960, %v3958
    %v3999 = vpack.c.b16 %v3963, %v3961
    %v4000 = vpack.c.b16 %v3964, %v3962
    %v4001 = vpack.c.b16 %v3967, %v3965
    %v4002 = vpack.c.b16 %v3968, %v3966
    %v4003 = vpack.c.b16 %v3971, %v3969
    %v4004 = vpack.c.b16 %v3972, %v3970
    %4037 = vmatprep.subr.bf16.mxu0 %v3974
    %4038 = vmatpush1.bf16.msra.mxu0 %v3973
    %4039 = vmatprep.subr.bf16.mxu0 %v3976
    %4040 = vmatpush1.bf16.msra.mxu0 %v3975
    %4041 = vmatprep.subr.bf16.mxu0 %v3978
    %4042 = vmatpush1.bf16.msra.mxu0 %v3977
    %4043 = vmatprep.subr.bf16.mxu0 %v3980
    %4044 = vmatpush1.bf16.msra.mxu0 %v3979
    %4045 = vmatprep.subr.bf16.mxu0 %v3982
    %4046 = vmatpush1.bf16.msra.mxu0 %v3981
    %4047 = vmatprep.subr.bf16.mxu0 %v3984
    %4048 = vmatpush1.bf16.msra.mxu0 %v3983
    %4049 = vmatprep.subr.bf16.mxu0 %v3986
    %4050 = vmatpush1.bf16.msra.mxu0 %v3985
    %4051 = vmatprep.subr.bf16.mxu0 %v3988
    %4052 = vmatpush1.bf16.msra.mxu0 %v3987
    %4053 = vmatprep.subr.bf16.mxu0 %v3990
    %4054 = vmatpush1.bf16.msra.mxu0 %v3989
    %4055 = vmatprep.subr.bf16.mxu0 %v3992
    %4056 = vmatpush1.bf16.msra.mxu0 %v3991
    %4057 = vmatprep.subr.bf16.mxu0 %v3994
    %4058 = vmatpush1.bf16.msra.mxu0 %v3993
    %4059 = vmatprep.subr.bf16.mxu0 %v3996
    %4060 = vmatpush1.bf16.msra.mxu0 %v3995
    %4061 = vmatprep.subr.bf16.mxu0 %v3998
    %4062 = vmatpush1.bf16.msra.mxu0 %v3997
    %4063 = vmatprep.subr.bf16.mxu0 %v4000
    %4064 = vmatpush1.bf16.msra.mxu0 %v3999
    %4065 = vmatprep.subr.bf16.mxu0 %v4002
    %4066 = vmatpush1.bf16.msra.mxu0 %v4001
    %4067 = vmatprep.subr.bf16.mxu0 %v4004
    %4068 = vmatpush1.bf16.msra.mxu0 %v4003
    %4069 = vmatprep.mubr.bf16.mxu0 %v3575
    %4070 = vmatmul.mubr.bf16.gmra.mrb[0].mxu0 %v3574
    %v4071 = vpop.f32.mrb[0].mxu0
    %v4072 = vadd.f32 %v3859, %v4071
    %v4073 = vpop.f32.mrb[0].mxu0
    %v4074 = vadd.f32 %v3861, %v4073
    %v4075 = vpop.f32.mrb[0].mxu0
    %v4076 = vadd.f32 %v3863, %v4075
    %v4077 = vpop.f32.mrb[0].mxu0
    %v4078 = vadd.f32 %v3865, %v4077
    %4079 = vmatprep.mubr.bf16.mxu0 %v3577
    %4080 = vmatmul.mubr.bf16.gmra.mrb[0].mxu0 %v3576
    %v4081 = vpop.f32.mrb[0].mxu0
    %v4082 = vadd.f32 %v3869, %v4081
    %v4083 = vpop.f32.mrb[0].mxu0
    %v4084 = vadd.f32 %v3871, %v4083
    %v4085 = vpop.f32.mrb[0].mxu0
    %v4086 = vadd.f32 %v3873, %v4085
    %v4087 = vpop.f32.mrb[0].mxu0
    %v4088 = vadd.f32 %v3875, %v4087
    %4089 = vdwg.mxu0
    %s4090 = scalar_lea.vmem [#allocation6], 3584
    %v4091 = vld [vmem:[%s4090] sm:$0xff]
    %v4092 = vld [vmem:[%s4090 + $0x8] sm:$0xff]
    %v4093 = vld [vmem:[%s4090 + $0x10] sm:$0xff]
    %v4094 = vld [vmem:[%s4090 + $0x18] sm:$0xff]
    %v4095 = vld [vmem:[%s4090 + $0x20] sm:$0xff]
    %v4096 = vld [vmem:[%s4090 + $0x28] sm:$0xff]
    %v4097 = vld [vmem:[%s4090 + $0x30] sm:$0xff]
    %v4098 = vld [vmem:[%s4090 + $0x38] sm:$0xff]
    %v4099 = vld [vmem:[%s4090 + $0x40] sm:$0xff]
    %v4100 = vld [vmem:[%s4090 + $0x48] sm:$0xff]
    %v4101 = vld [vmem:[%s4090 + $0x50] sm:$0xff]
    %v4102 = vld [vmem:[%s4090 + $0x58] sm:$0xff]
    %v4103 = vld [vmem:[%s4090 + $0x60] sm:$0xff]
    %v4104 = vld [vmem:[%s4090 + $0x68] sm:$0xff]
    %v4105 = vld [vmem:[%s4090 + $0x70] sm:$0xff]
    %v4106 = vld [vmem:[%s4090 + $0x78] sm:$0xff]
    %v4107 = vld [vmem:[%s4090 + $0x80] sm:$0xff]
    %v4108 = vld [vmem:[%s4090 + $0x88] sm:$0xff]
    %v4109 = vld [vmem:[%s4090 + $0x90] sm:$0xff]
    %v4110 = vld [vmem:[%s4090 + $0x98] sm:$0xff]
    %v4111 = vld [vmem:[%s4090 + $0xa0] sm:$0xff]
    %v4112 = vld [vmem:[%s4090 + $0xa8] sm:$0xff]
    %v4113 = vld [vmem:[%s4090 + $0xb0] sm:$0xff]
    %v4114 = vld [vmem:[%s4090 + $0xb8] sm:$0xff]
    %v4115 = vld [vmem:[%s4090 + $0xc0] sm:$0xff]
    %v4116 = vld [vmem:[%s4090 + $0xc8] sm:$0xff]
    %v4117 = vld [vmem:[%s4090 + $0xd0] sm:$0xff]
    %v4118 = vld [vmem:[%s4090 + $0xd8] sm:$0xff]
    %v4119 = vld [vmem:[%s4090 + $0xe0] sm:$0xff]
    %v4120 = vld [vmem:[%s4090 + $0xe8] sm:$0xff]
    %v4121 = vld [vmem:[%s4090 + $0xf0] sm:$0xff]
    %v4122 = vld [vmem:[%s4090 + $0xf8] sm:$0xff]
    %v4155 = vunpack.c.l.b16 %v4091
    %v4156 = vunpack.c.h.b16 %v4091
    %v4157 = vunpack.c.l.b16 %v4092
    %v4158 = vunpack.c.h.b16 %v4092
    %v4159 = vunpack.c.l.b16 %v4093
    %v4160 = vunpack.c.h.b16 %v4093
    %v4161 = vunpack.c.l.b16 %v4094
    %v4162 = vunpack.c.h.b16 %v4094
    %v4163 = vunpack.c.l.b16 %v4095
    %v4164 = vunpack.c.h.b16 %v4095
    %v4165 = vunpack.c.l.b16 %v4096
    %v4166 = vunpack.c.h.b16 %v4096
    %v4167 = vunpack.c.l.b16 %v4097
    %v4168 = vunpack.c.h.b16 %v4097
    %v4169 = vunpack.c.l.b16 %v4098
    %v4170 = vunpack.c.h.b16 %v4098
    %v4171 = vunpack.c.l.b16 %v4099
    %v4172 = vunpack.c.h.b16 %v4099
    %v4173 = vunpack.c.l.b16 %v4100
    %v4174 = vunpack.c.h.b16 %v4100
    %v4175 = vunpack.c.l.b16 %v4101
    %v4176 = vunpack.c.h.b16 %v4101
    %v4177 = vunpack.c.l.b16 %v4102
    %v4178 = vunpack.c.h.b16 %v4102
    %v4179 = vunpack.c.l.b16 %v4103
    %v4180 = vunpack.c.h.b16 %v4103
    %v4181 = vunpack.c.l.b16 %v4104
    %v4182 = vunpack.c.h.b16 %v4104
    %v4183 = vunpack.c.l.b16 %v4105
    %v4184 = vunpack.c.h.b16 %v4105
    %v4185 = vunpack.c.l.b16 %v4106
    %v4186 = vunpack.c.h.b16 %v4106
    %v4187 = vunpack.c.l.b16 %v4107
    %v4188 = vunpack.c.h.b16 %v4107
    %v4189 = vunpack.c.l.b16 %v4108
    %v4190 = vunpack.c.h.b16 %v4108
    %v4191 = vunpack.c.l.b16 %v4109
    %v4192 = vunpack.c.h.b16 %v4109
    %v4193 = vunpack.c.l.b16 %v4110
    %v4194 = vunpack.c.h.b16 %v4110
    %v4195 = vunpack.c.l.b16 %v4111
    %v4196 = vunpack.c.h.b16 %v4111
    %v4197 = vunpack.c.l.b16 %v4112
    %v4198 = vunpack.c.h.b16 %v4112
    %v4199 = vunpack.c.l.b16 %v4113
    %v4200 = vunpack.c.h.b16 %v4113
    %v4201 = vunpack.c.l.b16 %v4114
    %v4202 = vunpack.c.h.b16 %v4114
    %v4203 = vunpack.c.l.b16 %v4115
    %v4204 = vunpack.c.h.b16 %v4115
    %v4205 = vunpack.c.l.b16 %v4116
    %v4206 = vunpack.c.h.b16 %v4116
    %v4207 = vunpack.c.l.b16 %v4117
    %v4208 = vunpack.c.h.b16 %v4117
    %v4209 = vunpack.c.l.b16 %v4118
    %v4210 = vunpack.c.h.b16 %v4118
    %v4211 = vunpack.c.l.b16 %v4119
    %v4212 = vunpack.c.h.b16 %v4119
    %v4213 = vunpack.c.l.b16 %v4120
    %v4214 = vunpack.c.h.b16 %v4120
    %v4215 = vunpack.c.l.b16 %v4121
    %v4216 = vunpack.c.h.b16 %v4121
    %v4217 = vunpack.c.l.b16 %v4122
    %v4218 = vunpack.c.h.b16 %v4122
    %v4219 = vpack.c.b16 %v4157, %v4155
    %v4220 = vpack.c.b16 %v4158, %v4156
    %v4221 = vpack.c.b16 %v4161, %v4159
    %v4222 = vpack.c.b16 %v4162, %v4160
    %v4223 = vpack.c.b16 %v4165, %v4163
    %v4224 = vpack.c.b16 %v4166, %v4164
    %v4225 = vpack.c.b16 %v4169, %v4167
    %v4226 = vpack.c.b16 %v4170, %v4168
    %v4227 = vpack.c.b16 %v4173, %v4171
    %v4228 = vpack.c.b16 %v4174, %v4172
    %v4229 = vpack.c.b16 %v4177, %v4175
    %v4230 = vpack.c.b16 %v4178, %v4176
    %v4231 = vpack.c.b16 %v4181, %v4179
    %v4232 = vpack.c.b16 %v4182, %v4180
    %v4233 = vpack.c.b16 %v4185, %v4183
    %v4234 = vpack.c.b16 %v4186, %v4184
    %v4235 = vpack.c.b16 %v4189, %v4187
    %v4236 = vpack.c.b16 %v4190, %v4188
    %v4237 = vpack.c.b16 %v4193, %v4191
    %v4238 = vpack.c.b16 %v4194, %v4192
    %v4239 = vpack.c.b16 %v4197, %v4195
    %v4240 = vpack.c.b16 %v4198, %v4196
    %v4241 = vpack.c.b16 %v4201, %v4199
    %v4242 = vpack.c.b16 %v4202, %v4200
    %v4243 = vpack.c.b16 %v4205, %v4203
    %v4244 = vpack.c.b16 %v4206, %v4204
    %v4245 = vpack.c.b16 %v4209, %v4207
    %v4246 = vpack.c.b16 %v4210, %v4208
    %v4247 = vpack.c.b16 %v4213, %v4211
    %v4248 = vpack.c.b16 %v4214, %v4212
    %v4249 = vpack.c.b16 %v4217, %v4215
    %v4250 = vpack.c.b16 %v4218, %v4216
    %4283 = vmatprep.subr.bf16.mxu0 %v4220
    %4284 = vmatpush1.bf16.msra.mxu0 %v4219
    %4285 = vmatprep.subr.bf16.mxu0 %v4222
    %4286 = vmatpush1.bf16.msra.mxu0 %v4221
    %4287 = vmatprep.subr.bf16.mxu0 %v4224
    %4288 = vmatpush1.bf16.msra.mxu0 %v4223
    %4289 = vmatprep.subr.bf16.mxu0 %v4226
    %4290 = vmatpush1.bf16.msra.mxu0 %v4225
    %4291 = vmatprep.subr.bf16.mxu0 %v4228
    %4292 = vmatpush1.bf16.msra.mxu0 %v4227
    %4293 = vmatprep.subr.bf16.mxu0 %v4230
    %4294 = vmatpush1.bf16.msra.mxu0 %v4229
    %4295 = vmatprep.subr.bf16.mxu0 %v4232
    %4296 = vmatpush1.bf16.msra.mxu0 %v4231
    %4297 = vmatprep.subr.bf16.mxu0 %v4234
    %4298 = vmatpush1.bf16.msra.mxu0 %v4233
    %4299 = vmatprep.subr.bf16.mxu0 %v4236
    %4300 = vmatpush1.bf16.msra.mxu0 %v4235
    %4301 = vmatprep.subr.bf16.mxu0 %v4238
    %4302 = vmatpush1.bf16.msra.mxu0 %v4237
    %4303 = vmatprep.subr.bf16.mxu0 %v4240
    %4304 = vmatpush1.bf16.msra.mxu0 %v4239
    %4305 = vmatprep.subr.bf16.mxu0 %v4242
    %4306 = vmatpush1.bf16.msra.mxu0 %v4241
    %4307 = vmatprep.subr.bf16.mxu0 %v4244
    %4308 = vmatpush1.bf16.msra.mxu0 %v4243
    %4309 = vmatprep.subr.bf16.mxu0 %v4246
    %4310 = vmatpush1.bf16.msra.mxu0 %v4245
    %4311 = vmatprep.subr.bf16.mxu0 %v4248
    %4312 = vmatpush1.bf16.msra.mxu0 %v4247
    %4313 = vmatprep.subr.bf16.mxu0 %v4250
    %4314 = vmatpush1.bf16.msra.mxu0 %v4249
    %4315 = vmatprep.mubr.bf16.mxu0 %v3595
    %4316 = vmatmul.mubr.bf16.gmra.mrb[0].mxu0 %v3594
    %v4317 = vpop.f32.mrb[0].mxu0
    %v4318 = vadd.f32 0.0, %v4317
    %v4319 = vpop.f32.mrb[0].mxu0
    %v4320 = vadd.f32 0.0, %v4319
    %v4321 = vpop.f32.mrb[0].mxu0
    %v4322 = vadd.f32 0.0, %v4321
    %v4323 = vpop.f32.mrb[0].mxu0
    %v4324 = vadd.f32 0.0, %v4323
    %4325 = vmatprep.mubr.bf16.mxu0 %v3597
    %4326 = vmatmul.mubr.bf16.gmra.mrb[0].mxu0 %v3596
    %v4327 = vpop.f32.mrb[0].mxu0
    %v4328 = vadd.f32 0.0, %v4327
    %v4329 = vpop.f32.mrb[0].mxu0
    %v4330 = vadd.f32 0.0, %v4329
    %v4331 = vpop.f32.mrb[0].mxu0
    %v4332 = vadd.f32 0.0, %v4331
    %v4333 = vpop.f32.mrb[0].mxu0
    %v4334 = vadd.f32 0.0, %v4333
    %4335 = vdwg.mxu0
    %v4336 = vadd.f32 %v4072, %v4318
    %v4337 = vadd.f32 %v4074, %v4320
    %v4338 = vadd.f32 %v4076, %v4322
    %v4339 = vadd.f32 %v4078, %v4324
    %v4340 = vadd.f32 %v4082, %v4328
    %v4341 = vadd.f32 %v4084, %v4330
    %v4342 = vadd.f32 %v4086, %v4332
    %v4343 = vadd.f32 %v4088, %v4334
    %s4344 = scalar_lea.vmem [#allocation8], 8
    %v4345 = vld [vmem:[%s4344] sm:$0x3]
    %v4347 = vlaneseq
    %v4348 = vshrl.u32 %v4347, 7
    %v4349 = vsub.s32 0, %v4348
    %v4350 = vrot.slane %v4345, %v4349
    %v4351 = vlaneseq
    %v4352 = vshrl.u32 %v4351, 7
    %v4353 = vsub.s32 1, %v4352
    %v4354 = vrot.slane %v4345, %v4353
    %v4357 = vadd.f32 %v4336, %v4350
    %v4358 = vadd.f32 %v4337, %v4354
    %v4359 = vadd.f32 %v4338, %v4350
    %v4360 = vadd.f32 %v4339, %v4354
    %v4361 = vadd.f32 %v4340, %v4350
    %v4362 = vadd.f32 %v4341, %v4354
    %v4363 = vadd.f32 %v4342, %v4350
    %v4364 = vadd.f32 %v4343, %v4354
    %vm4365 = vcmp.ge.f32.partialorder %v4357, 0.0
    %vm4366 = vcmp.ge.f32.partialorder %v4358, 0.0
    %vm4367 = vcmp.ge.f32.partialorder %v4359, 0.0
    %vm4368 = vcmp.ge.f32.partialorder %v4360, 0.0
    %vm4369 = vcmp.ge.f32.partialorder %v4361, 0.0
    %vm4370 = vcmp.ge.f32.partialorder %v4362, 0.0
    %vm4371 = vcmp.ge.f32.partialorder %v4363, 0.0
    %vm4372 = vcmp.ge.f32.partialorder %v4364, 0.0
    %v4373 = vmul.f32 %v4357, 0.2
    %v4374 = vmul.f32 %v4358, 0.2
    %v4375 = vmul.f32 %v4359, 0.2
    %v4376 = vmul.f32 %v4360, 0.2
    %v4377 = vmul.f32 %v4361, 0.2
    %v4378 = vmul.f32 %v4362, 0.2
    %v4379 = vmul.f32 %v4363, 0.2
    %v4380 = vmul.f32 %v4364, 0.2
    %v4381 = vsel %vm4365, %v4357, %v4373
    %v4382 = vsel %vm4366, %v4358, %v4374
    %v4383 = vsel %vm4367, %v4359, %v4375
    %v4384 = vsel %vm4368, %v4360, %v4376
    %v4385 = vsel %vm4369, %v4361, %v4377
    %v4386 = vsel %vm4370, %v4362, %v4378
    %v4387 = vsel %vm4371, %v4363, %v4379
    %v4388 = vsel %vm4372, %v4364, %v4380
    %4389 = vst [vmem:[#allocation9] sm:$0xff] %v4381
    %4390 = vst.msk [vmem:[#allocation9 + $0x8] sm:$0xff] %vm74, %v4382
    %4391 = vst [vmem:[#allocation9 + $0x10] sm:$0xff] %v4383
    %4392 = vst.msk [vmem:[#allocation9 + $0x18] sm:$0xff] %vm74, %v4384
    %4393 = vst [vmem:[#allocation9 + $0x20] sm:$0xff] %v4385
    %4394 = vst.msk [vmem:[#allocation9 + $0x28] sm:$0xff] %vm74, %v4386
    %4395 = vst [vmem:[#allocation9 + $0x30] sm:$0xff] %v4387
    %4396 = vst.msk [vmem:[#allocation9 + $0x38] sm:$0xff] %vm74, %v4388
    // Predicated region
    $region26: #{tpu_custom_call.1} parent=1 // pred_check
      _
    $region27: #{tpu_custom_call.1} parent=1 // pred_check_branch
      %4398 = sbr.rel (0) target = $region29
    $region28: #{tpu_custom_call.1} parent=1 // pred_region
      %s4400 = ssub.s32 1024, 1024
      %4401 = vsyncadd [#allocation5], %s4400
      %s4402 = sshll.u32 [#allocation9], 4
      %s4403 = int_to_ptr.vmem [resolvable:$true] %s4402
      %4408 = dma.vmem_to_hbm [thread:$0]  %s4403, 1024, %s3, [#allocation5], 256, 256, 16
    $region29: #{tpu_custom_call.1} parent=1 // pred_fallthru
      _
    // Predicated region
    $region30: #{tpu_custom_call.1} parent=1 // pred_check
      _
    $region31: #{tpu_custom_call.1} parent=1 // pred_check_branch
      %4410 = sbr.rel (0) target = $region33
    $region32: #{tpu_custom_call.1} parent=1 // pred_region
      %4411 = dma.done [#allocation5], 1024
    $region33: #{tpu_custom_call.1} parent=1 // pred_fallthru
      _
    %4412 = vsyncpa [#allocation4], 1
    %4413 = vsyncpa [#allocation7], 1
    %4414 = vsyncpa [#allocation5], 1

</llo_original>
